<compile_context>
chip_gen: v6e
topology: v6e:2x2x1
jax: 0.10.0
libtpu: 0.0.40
codegen_flags: <defaults>
</compile_context>

<pallas_src>
import functools

import jax
import jax.numpy as jnp
from jax.experimental import pallas as pl
from jax.experimental.pallas import tpu as pltpu


# ---------------------------------------------------------------------------
# Fused per-iteration Pallas kernel (one grid step per image).
#   t  = u @ A + cb                              (FFT-domain gradient step)
#   h  = relu( sum_k W1_k @ (t @ S_k) + b1map )  (conv1, /255 + sigma folded)
#   y  = sum_k (W2_k @ h) @ S_k + b2             (conv2)
#   u' = y * 255 * 0.5 + 0.5 * t                 (PnP combine)
# ---------------------------------------------------------------------------
def _pnp_iter_kernel(u_ref, cb_ref, a_ref, s_ref, w1_ref, b1m_ref,
                     w2_ref, b2_ref, o_ref):
    hw = u_ref.shape[2]
    cout = w2_ref.shape[1]

    u = u_ref[0]                                           # (C, HW) f32
    # --- FFT-domain gradient step as one precomputed affine operator (f32) ---
    t = jnp.dot(u, a_ref[...],
                preferred_element_type=jnp.float32) + cb_ref[0]   # (C, HW)

    tb = t.astype(jnp.bfloat16)
    # --- conv1: 9 shift-matrix taps, zero padding handled by S_k ------------
    acc1 = b1m_ref[...]                                    # (F, HW) f32
    for k in range(9):                                     # static, unrolled
        ts = jnp.dot(tb, s_ref[k],
                     preferred_element_type=jnp.float32).astype(jnp.bfloat16)
        acc1 = acc1 + jnp.dot(w1_ref[k], ts,
                              preferred_element_type=jnp.float32)
    hid = jnp.maximum(acc1, 0.0).astype(jnp.bfloat16)      # (F, HW)

    # --- conv2: apply (small) weights first, then shift ---------------------
    acc2 = jnp.zeros((cout, hw), jnp.float32)
    for k in range(9):
        hk = jnp.dot(w2_ref[k], hid,
                     preferred_element_type=jnp.float32).astype(jnp.bfloat16)
        acc2 = acc2 + jnp.dot(hk, s_ref[k],
                              preferred_element_type=jnp.float32)
    y = acc2 + b2_ref[...]                                 # (Cout, HW)

    # u = model(t/255, sigma) * 255 * 0.5 + 0.5 * t   (fused combine)
    o_ref[0] = y * (255.0 * 0.5) + 0.5 * t


def pnp_iteration(u, cb, a_op, s_bf, w1k, b1map, w2k, b2):
    n, c, hw = u.shape
    img_spec = pl.BlockSpec((1, c, hw), lambda b: (b, 0, 0))
    const2 = lambda arr: pl.BlockSpec(arr.shape, lambda b: (0, 0))
    const3 = lambda arr: pl.BlockSpec(arr.shape, lambda b: (0, 0, 0))

    return pl.pallas_call(
        _pnp_iter_kernel,
        out_shape=jax.ShapeDtypeStruct((n, c, hw), jnp.float32),
        grid_spec=pltpu.PrefetchScalarGridSpec(
            num_scalar_prefetch=0,
            grid=(n,),
            in_specs=[img_spec, img_spec,
                      const2(a_op), const3(s_bf),
                      const3(w1k), const2(b1map),
                      const3(w2k), const2(b2)],
            out_specs=img_spec,
        ),
        compiler_params=pltpu.CompilerParams(
            dimension_semantics=("parallel",)),
    )(u, cb, a_op, s_bf, w1k, b1map, w2k, b2)


# ---------------------------------------------------------------------------
# Host / XLA precompute (loop- and batch-invariant constants)
# ---------------------------------------------------------------------------
def p2o(psf, shape):
    """deblur.p2o: zero-pad PSF to image size, circularly center, FFT2."""
    kh, kw = psf.shape[-2], psf.shape[-1]
    otf = jnp.zeros(psf.shape[:-2] + tuple(shape), psf.dtype)
    otf = otf.at[..., :kh, :kw].set(psf)
    otf = jnp.roll(otf, -int(kh / 2), axis=-2)
    otf = jnp.roll(otf, -int(kw / 2), axis=-1)
    return jnp.fft.fftn(otf, axes=(-2, -1))


def build_grad_operator(abs_k, lamb):
    """A such that  u_row @ A = u - lamb * real(IFFT2(|K|^2 * FFT2(u)))."""
    h, w = abs_k.shape
    hw = h * w
    eye_imgs = jnp.eye(hw, dtype=jnp.float32).reshape(hw, h, w)
    resp = jnp.real(jnp.fft.ifftn(
        abs_k[None, :, :] * jnp.fft.fftn(eye_imgs, axes=(-2, -1)),
        axes=(-2, -1)))
    r_mat = resp.reshape(hw, hw).astype(jnp.float32)   # row j = response to e_j
    return jnp.eye(hw, dtype=jnp.float32) - lamb * r_mat


def build_shift_matrices(h, w):
    """S_k (HW, HW): (x_flat @ S_k)[q] = x at position q shifted by tap k,
    zero-filled at image borders (3x3 conv, padding=1)."""
    hw = h * w
    ys, xs = jnp.meshgrid(jnp.arange(h), jnp.arange(w), indexing="ij")
    mats = []
    for dy in range(3):
        for dx in range(3):
            sy = ys + (dy - 1)
            sx = xs + (dx - 1)
            valid = ((sy >= 0) & (sy < h) & (sx >= 0) & (sx < w)).reshape(-1)
            src = (jnp.clip(sy, 0, h - 1) * w
                   + jnp.clip(sx, 0, w - 1)).reshape(-1)
            oh = jax.nn.one_hot(src, hw, dtype=jnp.float32)      # (dst, src)
            oh = oh * valid[:, None].astype(jnp.float32)
            mats.append(oh.T)                                     # (src, dst)
    return jnp.stack(mats, axis=0)                                # (9, HW, HW)


def init_denoiser_params(c_img, hidden=16, c_out=3, key=None):
    # TODO(synk): the original `model` is a pretrained DRUNet (weights not
    # available); a deterministic synthetic 2-layer 3x3-conv denoiser stands in.
    key = jax.random.PRNGKey(0) if key is None else key
    k1, k2, k3, k4, k5 = jax.random.split(key, 5)
    return {
        "w1_img": 0.05 * jax.random.normal(k1, (hidden, 9, c_img), jnp.float32),
        "w1_sig": 0.05 * jax.random.normal(k2, (hidden, 9), jnp.float32),
        "b1":     0.05 * jax.random.normal(k3, (hidden, 1), jnp.float32),
        "w2":     0.05 * jax.random.normal(k4, (c_out, 9, hidden), jnp.float32),
        "b2":     0.05 * jax.random.normal(k5, (c_out, 1), jnp.float32),
    }


# ---------------------------------------------------------------------------
# Forward pass (JAX/Pallas equivalent of PnP_ADMM.forward)
# ---------------------------------------------------------------------------
def _pnp_admm_forward(kernel_psf, initial_uv, f, clean, params,
                      nb=3, lamb=690.0, denoisor_sigma=25.0):
    del initial_uv  # unused in the PyTorch forward as well
    del clean       # only feeds PSNR/SSIM bookkeeping (see TODO below)

    f = f * 255.0
    n, c, h, w = f.shape
    hw = h * w

    fft_k = p2o(kernel_psf, (h, w))                       # (1,1,H,W) complex
    fft_kH = jnp.conj(fft_k)
    abs_k = jnp.real(fft_kH * fft_k)[0, 0].astype(jnp.float32)

    # Affine form of the gradient step:  t = u @ A + cb
    a_op = build_grad_operator(abs_k, lamb)               # (HW, HW) f32
    g = jnp.real(jnp.fft.ifftn(fft_kH * jnp.fft.fftn(f, axes=(-2, -1)),
                               axes=(-2, -1)))
    cb = (lamb * g).reshape(n, c, hw).astype(jnp.float32)

    # Shift matrices and folded denoiser constants.
    s_mats = build_shift_matrices(h, w)                   # (9, HW, HW) f32
    counts = jnp.sum(s_mats, axis=1)                      # (9, HW) valid-tap mask
    s_bf = s_mats.astype(jnp.bfloat16)
    # /255 input scaling folded into layer-1 image weights.
    w1k = jnp.transpose(params["w1_img"] / 255.0, (1, 0, 2)).astype(jnp.bfloat16)
    # Constant sigma channel (value = denoisor_sigma, zero-padded at borders)
    # folded into a per-pixel bias map.
    b1map = (params["b1"]
             + denoisor_sigma * jnp.dot(params["w1_sig"], counts)
             ).astype(jnp.float32)                        # (F, HW)
    w2k = jnp.transpose(params["w2"], (1, 0, 2)).astype(jnp.bfloat16)
    b2 = params["b2"].astype(jnp.float32)

    u0 = f.reshape(n, c, hw)

    def body(_, u):
        # TODO(synk): self.get_psnr_i (PSNR/SSIM/PIL logging via util.*) has no
        # effect on the returned tensor and is skipped.
        return pnp_iteration(u, cb, a_op, s_bf, w1k, b1map, w2k, b2)

    u = jax.lax.fori_loop(0, nb, body, u0)
    return jnp.clip(u.reshape(n, c, h, w), 0.0, 255.0)


pnp_admm_forward = jax.jit(_pnp_admm_forward, static_argnames=("nb",))


if __name__ == "__main__":
    key = jax.random.PRNGKey(0)
    kk, kf, ki, kc, kp = jax.random.split(key, 5)

    N, C, H, W = 2, 3, 16, 16
    psf = jax.random.uniform(kk, (1, 1, 5, 5), jnp.float32) + 0.1
    psf = psf / jnp.sum(psf)                              # normalized blur PSF
    f = jax.random.uniform(kf, (N, C, H, W), jnp.float32)  # blurred image in [0,1]
    initial_uv = jax.random.uniform(ki, (N, C, H, W), jnp.float32)
    clean = jax.random.uniform(kc, (N, C, H, W), jnp.float32)

    params = init_denoiser_params(c_img=C, hidden=16, c_out=C, key=kp)

    out = pnp_admm_forward(psf, initial_uv, f, clean, params,
                           nb=3, lamb=690.0, denoisor_sigma=25.0)
    out = jax.block_until_ready(out)
    assert out.shape == (N, C, H, W)
    assert bool(jnp.all(jnp.isfinite(out)))
    print("KERNEL_OK")
</pallas_src>

<mosaic_0001>
module attributes {stable_mosaic.version = 11 : i64} {
  func.func @_pnp_iter_kernel(%arg0: i32, %arg1: memref<1x3x256xf32, #tpu.memory_space<vmem>>, %arg2: memref<1x3x256xf32, #tpu.memory_space<vmem>>, %arg3: memref<256x256xf32, #tpu.memory_space<vmem>>, %arg4: memref<9x256x256xbf16, #tpu.memory_space<vmem>>, %arg5: memref<9x16x3xbf16, #tpu.memory_space<vmem>>, %arg6: memref<16x256xf32, #tpu.memory_space<vmem>>, %arg7: memref<9x3x16xbf16, #tpu.memory_space<vmem>>, %arg8: memref<3x1xf32, #tpu.memory_space<vmem>>, %arg9: memref<1x3x256xf32, #tpu.memory_space<vmem>>) attributes {dimension_semantics = [#tpu.dimension_semantics<parallel>], iteration_bounds = array<i64: 2>, scalar_prefetch = 0 : i64, scratch_operands = 0 : i64, tpu.core_type = #tpu.core_type<tc>, window_params = [{transform_indices = @transform_0, window_bounds = array<i64: 1, 3, 256>}, {transform_indices = @transform_1, window_bounds = array<i64: 1, 3, 256>}, {pipeline_mode = #tpu.pipeline_mode<synchronous>, transform_indices = @transform_2, window_bounds = array<i64: 256, 256>}, {pipeline_mode = #tpu.pipeline_mode<synchronous>, transform_indices = @transform_3, window_bounds = array<i64: 9, 256, 256>}, {pipeline_mode = #tpu.pipeline_mode<synchronous>, transform_indices = @transform_4, window_bounds = array<i64: 9, 16, 3>}, {pipeline_mode = #tpu.pipeline_mode<synchronous>, transform_indices = @transform_5, window_bounds = array<i64: 16, 256>}, {pipeline_mode = #tpu.pipeline_mode<synchronous>, transform_indices = @transform_6, window_bounds = array<i64: 9, 3, 16>}, {pipeline_mode = #tpu.pipeline_mode<synchronous>, transform_indices = @transform_7, window_bounds = array<i64: 3, 1>}, {transform_indices = @transform_8, window_bounds = array<i64: 1, 3, 256>}]} {
    %c0 = arith.constant 0 : index
    %c0_0 = arith.constant 0 : index
    %c0_1 = arith.constant 0 : index
    %0 = vector.load %arg1[%c0, %c0_0, %c0_1] : memref<1x3x256xf32, #tpu.memory_space<vmem>>, vector<1x3x256xf32>
    %1 = vector.shape_cast %0 : vector<1x3x256xf32> to vector<3x256xf32>
    %c0_2 = arith.constant 0 : index
    %c0_3 = arith.constant 0 : index
    %2 = vector.load %arg3[%c0_2, %c0_3] : memref<256x256xf32, #tpu.memory_space<vmem>>, vector<256x256xf32>
    %cst = arith.constant dense<0.000000e+00> : vector<3x256xf32>
    %3 = tpu.matmul %1, %2, %cst {dimension_numbers = #tpu.dot_dimension_numbers<[1], [0], [0], [1], [0, 0, 1, 1], [], []>} : vector<3x256xf32>, vector<256x256xf32>, vector<3x256xf32> -> vector<3x256xf32>
    %c0_4 = arith.constant 0 : index
    %c0_5 = arith.constant 0 : index
    %c0_6 = arith.constant 0 : index
    %4 = vector.load %arg2[%c0_4, %c0_5, %c0_6] : memref<1x3x256xf32, #tpu.memory_space<vmem>>, vector<1x3x256xf32>
    %5 = vector.shape_cast %4 : vector<1x3x256xf32> to vector<3x256xf32>
    %6 = arith.addf %3, %5 : vector<3x256xf32>
    %7 = arith.truncf %6 : vector<3x256xf32> to vector<3x256xbf16>
    %c0_7 = arith.constant 0 : index
    %c0_8 = arith.constant 0 : index
    %8 = vector.load %arg6[%c0_7, %c0_8] : memref<16x256xf32, #tpu.memory_space<vmem>>, vector<16x256xf32>
    %c0_9 = arith.constant 0 : index
    %c0_10 = arith.constant 0 : index
    %c0_11 = arith.constant 0 : index
    %9 = vector.load %arg4[%c0_9, %c0_10, %c0_11] : memref<9x256x256xbf16, #tpu.memory_space<vmem>>, vector<1x256x256xbf16>
    %10 = vector.shape_cast %9 : vector<1x256x256xbf16> to vector<256x256xbf16>
    %cst_12 = arith.constant dense<0.000000e+00> : vector<3x256xf32>
    %11 = tpu.matmul %7, %10, %cst_12 {dimension_numbers = #tpu.dot_dimension_numbers<[1], [0], [0], [1], [0, 0, 1, 1], [], []>} : vector<3x256xbf16>, vector<256x256xbf16>, vector<3x256xf32> -> vector<3x256xf32>
    %12 = arith.truncf %11 : vector<3x256xf32> to vector<3x256xbf16>
    %c0_13 = arith.constant 0 : index
    %c0_14 = arith.constant 0 : index
    %c0_15 = arith.constant 0 : index
    %13 = vector.load %arg5[%c0_13, %c0_14, %c0_15] : memref<9x16x3xbf16, #tpu.memory_space<vmem>>, vector<1x16x3xbf16>
    %14 = vector.shape_cast %13 : vector<1x16x3xbf16> to vector<16x3xbf16>
    %cst_16 = arith.constant dense<0.000000e+00> : vector<16x256xf32>
    %15 = tpu.matmul %14, %12, %cst_16 {dimension_numbers = #tpu.dot_dimension_numbers<[1], [0], [0], [1], [0, 0, 1, 1], [], []>} : vector<16x3xbf16>, vector<3x256xbf16>, vector<16x256xf32> -> vector<16x256xf32>
    %16 = arith.addf %8, %15 : vector<16x256xf32>
    %c1 = arith.constant 1 : index
    %c0_17 = arith.constant 0 : index
    %c0_18 = arith.constant 0 : index
    %17 = vector.load %arg4[%c1, %c0_17, %c0_18] : memref<9x256x256xbf16, #tpu.memory_space<vmem>>, vector<1x256x256xbf16>
    %18 = vector.shape_cast %17 : vector<1x256x256xbf16> to vector<256x256xbf16>
    %cst_19 = arith.constant dense<0.000000e+00> : vector<3x256xf32>
    %19 = tpu.matmul %7, %18, %cst_19 {dimension_numbers = #tpu.dot_dimension_numbers<[1], [0], [0], [1], [0, 0, 1, 1], [], []>} : vector<3x256xbf16>, vector<256x256xbf16>, vector<3x256xf32> -> vector<3x256xf32>
    %20 = arith.truncf %19 : vector<3x256xf32> to vector<3x256xbf16>
    %c1_20 = arith.constant 1 : index
    %c0_21 = arith.constant 0 : index
    %c0_22 = arith.constant 0 : index
    %21 = vector.load %arg5[%c1_20, %c0_21, %c0_22] : memref<9x16x3xbf16, #tpu.memory_space<vmem>>, vector<1x16x3xbf16>
    %22 = vector.shape_cast %21 : vector<1x16x3xbf16> to vector<16x3xbf16>
    %cst_23 = arith.constant dense<0.000000e+00> : vector<16x256xf32>
    %23 = tpu.matmul %22, %20, %cst_23 {dimension_numbers = #tpu.dot_dimension_numbers<[1], [0], [0], [1], [0, 0, 1, 1], [], []>} : vector<16x3xbf16>, vector<3x256xbf16>, vector<16x256xf32> -> vector<16x256xf32>
    %24 = arith.addf %16, %23 : vector<16x256xf32>
    %c2 = arith.constant 2 : index
    %c0_24 = arith.constant 0 : index
    %c0_25 = arith.constant 0 : index
    %25 = vector.load %arg4[%c2, %c0_24, %c0_25] : memref<9x256x256xbf16, #tpu.memory_space<vmem>>, vector<1x256x256xbf16>
    %26 = vector.shape_cast %25 : vector<1x256x256xbf16> to vector<256x256xbf16>
    %cst_26 = arith.constant dense<0.000000e+00> : vector<3x256xf32>
    %27 = tpu.matmul %7, %26, %cst_26 {dimension_numbers = #tpu.dot_dimension_numbers<[1], [0], [0], [1], [0, 0, 1, 1], [], []>} : vector<3x256xbf16>, vector<256x256xbf16>, vector<3x256xf32> -> vector<3x256xf32>
    %28 = arith.truncf %27 : vector<3x256xf32> to vector<3x256xbf16>
    %c2_27 = arith.constant 2 : index
    %c0_28 = arith.constant 0 : index
    %c0_29 = arith.constant 0 : index
    %29 = vector.load %arg5[%c2_27, %c0_28, %c0_29] : memref<9x16x3xbf16, #tpu.memory_space<vmem>>, vector<1x16x3xbf16>
    %30 = vector.shape_cast %29 : vector<1x16x3xbf16> to vector<16x3xbf16>
    %cst_30 = arith.constant dense<0.000000e+00> : vector<16x256xf32>
    %31 = tpu.matmul %30, %28, %cst_30 {dimension_numbers = #tpu.dot_dimension_numbers<[1], [0], [0], [1], [0, 0, 1, 1], [], []>} : vector<16x3xbf16>, vector<3x256xbf16>, vector<16x256xf32> -> vector<16x256xf32>
    %32 = arith.addf %24, %31 : vector<16x256xf32>
    %c3 = arith.constant 3 : index
    %c0_31 = arith.constant 0 : index
    %c0_32 = arith.constant 0 : index
    %33 = vector.load %arg4[%c3, %c0_31, %c0_32] : memref<9x256x256xbf16, #tpu.memory_space<vmem>>, vector<1x256x256xbf16>
    %34 = vector.shape_cast %33 : vector<1x256x256xbf16> to vector<256x256xbf16>
    %cst_33 = arith.constant dense<0.000000e+00> : vector<3x256xf32>
    %35 = tpu.matmul %7, %34, %cst_33 {dimension_numbers = #tpu.dot_dimension_numbers<[1], [0], [0], [1], [0, 0, 1, 1], [], []>} : vector<3x256xbf16>, vector<256x256xbf16>, vector<3x256xf32> -> vector<3x256xf32>
    %36 = arith.truncf %35 : vector<3x256xf32> to vector<3x256xbf16>
    %c3_34 = arith.constant 3 : index
    %c0_35 = arith.constant 0 : index
    %c0_36 = arith.constant 0 : index
    %37 = vector.load %arg5[%c3_34, %c0_35, %c0_36] : memref<9x16x3xbf16, #tpu.memory_space<vmem>>, vector<1x16x3xbf16>
    %38 = vector.shape_cast %37 : vector<1x16x3xbf16> to vector<16x3xbf16>
    %cst_37 = arith.constant dense<0.000000e+00> : vector<16x256xf32>
    %39 = tpu.matmul %38, %36, %cst_37 {dimension_numbers = #tpu.dot_dimension_numbers<[1], [0], [0], [1], [0, 0, 1, 1], [], []>} : vector<16x3xbf16>, vector<3x256xbf16>, vector<16x256xf32> -> vector<16x256xf32>
    %40 = arith.addf %32, %39 : vector<16x256xf32>
    %c4 = arith.constant 4 : index
    %c0_38 = arith.constant 0 : index
    %c0_39 = arith.constant 0 : index
    %41 = vector.load %arg4[%c4, %c0_38, %c0_39] : memref<9x256x256xbf16, #tpu.memory_space<vmem>>, vector<1x256x256xbf16>
    %42 = vector.shape_cast %41 : vector<1x256x256xbf16> to vector<256x256xbf16>
    %cst_40 = arith.constant dense<0.000000e+00> : vector<3x256xf32>
    %43 = tpu.matmul %7, %42, %cst_40 {dimension_numbers = #tpu.dot_dimension_numbers<[1], [0], [0], [1], [0, 0, 1, 1], [], []>} : vector<3x256xbf16>, vector<256x256xbf16>, vector<3x256xf32> -> vector<3x256xf32>
    %44 = arith.truncf %43 : vector<3x256xf32> to vector<3x256xbf16>
    %c4_41 = arith.constant 4 : index
    %c0_42 = arith.constant 0 : index
    %c0_43 = arith.constant 0 : index
    %45 = vector.load %arg5[%c4_41, %c0_42, %c0_43] : memref<9x16x3xbf16, #tpu.memory_space<vmem>>, vector<1x16x3xbf16>
    %46 = vector.shape_cast %45 : vector<1x16x3xbf16> to vector<16x3xbf16>
    %cst_44 = arith.constant dense<0.000000e+00> : vector<16x256xf32>
    %47 = tpu.matmul %46, %44, %cst_44 {dimension_numbers = #tpu.dot_dimension_numbers<[1], [0], [0], [1], [0, 0, 1, 1], [], []>} : vector<16x3xbf16>, vector<3x256xbf16>, vector<16x256xf32> -> vector<16x256xf32>
    %48 = arith.addf %40, %47 : vector<16x256xf32>
    %c5 = arith.constant 5 : index
    %c0_45 = arith.constant 0 : index
    %c0_46 = arith.constant 0 : index
    %49 = vector.load %arg4[%c5, %c0_45, %c0_46] : memref<9x256x256xbf16, #tpu.memory_space<vmem>>, vector<1x256x256xbf16>
    %50 = vector.shape_cast %49 : vector<1x256x256xbf16> to vector<256x256xbf16>
    %cst_47 = arith.constant dense<0.000000e+00> : vector<3x256xf32>
    %51 = tpu.matmul %7, %50, %cst_47 {dimension_numbers = #tpu.dot_dimension_numbers<[1], [0], [0], [1], [0, 0, 1, 1], [], []>} : vector<3x256xbf16>, vector<256x256xbf16>, vector<3x256xf32> -> vector<3x256xf32>
    %52 = arith.truncf %51 : vector<3x256xf32> to vector<3x256xbf16>
    %c5_48 = arith.constant 5 : index
    %c0_49 = arith.constant 0 : index
    %c0_50 = arith.constant 0 : index
    %53 = vector.load %arg5[%c5_48, %c0_49, %c0_50] : memref<9x16x3xbf16, #tpu.memory_space<vmem>>, vector<1x16x3xbf16>
    %54 = vector.shape_cast %53 : vector<1x16x3xbf16> to vector<16x3xbf16>
    %cst_51 = arith.constant dense<0.000000e+00> : vector<16x256xf32>
    %55 = tpu.matmul %54, %52, %cst_51 {dimension_numbers = #tpu.dot_dimension_numbers<[1], [0], [0], [1], [0, 0, 1, 1], [], []>} : vector<16x3xbf16>, vector<3x256xbf16>, vector<16x256xf32> -> vector<16x256xf32>
    %56 = arith.addf %48, %55 : vector<16x256xf32>
    %c6 = arith.constant 6 : index
    %c0_52 = arith.constant 0 : index
    %c0_53 = arith.constant 0 : index
    %57 = vector.load %arg4[%c6, %c0_52, %c0_53] : memref<9x256x256xbf16, #tpu.memory_space<vmem>>, vector<1x256x256xbf16>
    %58 = vector.shape_cast %57 : vector<1x256x256xbf16> to vector<256x256xbf16>
    %cst_54 = arith.constant dense<0.000000e+00> : vector<3x256xf32>
    %59 = tpu.matmul %7, %58, %cst_54 {dimension_numbers = #tpu.dot_dimension_numbers<[1], [0], [0], [1], [0, 0, 1, 1], [], []>} : vector<3x256xbf16>, vector<256x256xbf16>, vector<3x256xf32> -> vector<3x256xf32>
    %60 = arith.truncf %59 : vector<3x256xf32> to vector<3x256xbf16>
    %c6_55 = arith.constant 6 : index
    %c0_56 = arith.constant 0 : index
    %c0_57 = arith.constant 0 : index
    %61 = vector.load %arg5[%c6_55, %c0_56, %c0_57] : memref<9x16x3xbf16, #tpu.memory_space<vmem>>, vector<1x16x3xbf16>
    %62 = vector.shape_cast %61 : vector<1x16x3xbf16> to vector<16x3xbf16>
    %cst_58 = arith.constant dense<0.000000e+00> : vector<16x256xf32>
    %63 = tpu.matmul %62, %60, %cst_58 {dimension_numbers = #tpu.dot_dimension_numbers<[1], [0], [0], [1], [0, 0, 1, 1], [], []>} : vector<16x3xbf16>, vector<3x256xbf16>, vector<16x256xf32> -> vector<16x256xf32>
    %64 = arith.addf %56, %63 : vector<16x256xf32>
    %c7 = arith.constant 7 : index
    %c0_59 = arith.constant 0 : index
    %c0_60 = arith.constant 0 : index
    %65 = vector.load %arg4[%c7, %c0_59, %c0_60] : memref<9x256x256xbf16, #tpu.memory_space<vmem>>, vector<1x256x256xbf16>
    %66 = vector.shape_cast %65 : vector<1x256x256xbf16> to vector<256x256xbf16>
    %cst_61 = arith.constant dense<0.000000e+00> : vector<3x256xf32>
    %67 = tpu.matmul %7, %66, %cst_61 {dimension_numbers = #tpu.dot_dimension_numbers<[1], [0], [0], [1], [0, 0, 1, 1], [], []>} : vector<3x256xbf16>, vector<256x256xbf16>, vector<3x256xf32> -> vector<3x256xf32>
    %68 = arith.truncf %67 : vector<3x256xf32> to vector<3x256xbf16>
    %c7_62 = arith.constant 7 : index
    %c0_63 = arith.constant 0 : index
    %c0_64 = arith.constant 0 : index
    %69 = vector.load %arg5[%c7_62, %c0_63, %c0_64] : memref<9x16x3xbf16, #tpu.memory_space<vmem>>, vector<1x16x3xbf16>
    %70 = vector.shape_cast %69 : vector<1x16x3xbf16> to vector<16x3xbf16>
    %cst_65 = arith.constant dense<0.000000e+00> : vector<16x256xf32>
    %71 = tpu.matmul %70, %68, %cst_65 {dimension_numbers = #tpu.dot_dimension_numbers<[1], [0], [0], [1], [0, 0, 1, 1], [], []>} : vector<16x3xbf16>, vector<3x256xbf16>, vector<16x256xf32> -> vector<16x256xf32>
    %72 = arith.addf %64, %71 : vector<16x256xf32>
    %c8 = arith.constant 8 : index
    %c0_66 = arith.constant 0 : index
    %c0_67 = arith.constant 0 : index
    %73 = vector.load %arg4[%c8, %c0_66, %c0_67] : memref<9x256x256xbf16, #tpu.memory_space<vmem>>, vector<1x256x256xbf16>
    %74 = vector.shape_cast %73 : vector<1x256x256xbf16> to vector<256x256xbf16>
    %cst_68 = arith.constant dense<0.000000e+00> : vector<3x256xf32>
    %75 = tpu.matmul %7, %74, %cst_68 {dimension_numbers = #tpu.dot_dimension_numbers<[1], [0], [0], [1], [0, 0, 1, 1], [], []>} : vector<3x256xbf16>, vector<256x256xbf16>, vector<3x256xf32> -> vector<3x256xf32>
    %76 = arith.truncf %75 : vector<3x256xf32> to vector<3x256xbf16>
    %c8_69 = arith.constant 8 : index
    %c0_70 = arith.constant 0 : index
    %c0_71 = arith.constant 0 : index
    %77 = vector.load %arg5[%c8_69, %c0_70, %c0_71] : memref<9x16x3xbf16, #tpu.memory_space<vmem>>, vector<1x16x3xbf16>
    %78 = vector.shape_cast %77 : vector<1x16x3xbf16> to vector<16x3xbf16>
    %cst_72 = arith.constant dense<0.000000e+00> : vector<16x256xf32>
    %79 = tpu.matmul %78, %76, %cst_72 {dimension_numbers = #tpu.dot_dimension_numbers<[1], [0], [0], [1], [0, 0, 1, 1], [], []>} : vector<16x3xbf16>, vector<3x256xbf16>, vector<16x256xf32> -> vector<16x256xf32>
    %80 = arith.addf %72, %79 : vector<16x256xf32>
    %cst_73 = arith.constant 0.000000e+00 : f32
    %81 = vector.broadcast %cst_73 : f32 to vector<16x256xf32>
    %82 = arith.maximumf %80, %81 : vector<16x256xf32>
    %83 = arith.truncf %82 : vector<16x256xf32> to vector<16x256xbf16>
    %cst_74 = arith.constant 0.000000e+00 : f32
    %84 = vector.broadcast %cst_74 : f32 to vector<3x256xf32>
    %c0_75 = arith.constant 0 : index
    %c0_76 = arith.constant 0 : index
    %c0_77 = arith.constant 0 : index
    %85 = vector.load %arg7[%c0_75, %c0_76, %c0_77] : memref<9x3x16xbf16, #tpu.memory_space<vmem>>, vector<1x3x16xbf16>
    %86 = vector.shape_cast %85 : vector<1x3x16xbf16> to vector<3x16xbf16>
    %cst_78 = arith.constant dense<0.000000e+00> : vector<3x256xf32>
    %87 = tpu.matmul %86, %83, %cst_78 {dimension_numbers = #tpu.dot_dimension_numbers<[1], [0], [0], [1], [0, 0, 1, 1], [], []>} : vector<3x16xbf16>, vector<16x256xbf16>, vector<3x256xf32> -> vector<3x256xf32>
    %88 = arith.truncf %87 : vector<3x256xf32> to vector<3x256xbf16>
    %c0_79 = arith.constant 0 : index
    %c0_80 = arith.constant 0 : index
    %c0_81 = arith.constant 0 : index
    %89 = vector.load %arg4[%c0_79, %c0_80, %c0_81] : memref<9x256x256xbf16, #tpu.memory_space<vmem>>, vector<1x256x256xbf16>
    %90 = vector.shape_cast %89 : vector<1x256x256xbf16> to vector<256x256xbf16>
    %cst_82 = arith.constant dense<0.000000e+00> : vector<3x256xf32>
    %91 = tpu.matmul %88, %90, %cst_82 {dimension_numbers = #tpu.dot_dimension_numbers<[1], [0], [0], [1], [0, 0, 1, 1], [], []>} : vector<3x256xbf16>, vector<256x256xbf16>, vector<3x256xf32> -> vector<3x256xf32>
    %92 = arith.addf %84, %91 : vector<3x256xf32>
    %c1_83 = arith.constant 1 : index
    %c0_84 = arith.constant 0 : index
    %c0_85 = arith.constant 0 : index
    %93 = vector.load %arg7[%c1_83, %c0_84, %c0_85] : memref<9x3x16xbf16, #tpu.memory_space<vmem>>, vector<1x3x16xbf16>
    %94 = vector.shape_cast %93 : vector<1x3x16xbf16> to vector<3x16xbf16>
    %cst_86 = arith.constant dense<0.000000e+00> : vector<3x256xf32>
    %95 = tpu.matmul %94, %83, %cst_86 {dimension_numbers = #tpu.dot_dimension_numbers<[1], [0], [0], [1], [0, 0, 1, 1], [], []>} : vector<3x16xbf16>, vector<16x256xbf16>, vector<3x256xf32> -> vector<3x256xf32>
    %96 = arith.truncf %95 : vector<3x256xf32> to vector<3x256xbf16>
    %c1_87 = arith.constant 1 : index
    %c0_88 = arith.constant 0 : index
    %c0_89 = arith.constant 0 : index
    %97 = vector.load %arg4[%c1_87, %c0_88, %c0_89] : memref<9x256x256xbf16, #tpu.memory_space<vmem>>, vector<1x256x256xbf16>
    %98 = vector.shape_cast %97 : vector<1x256x256xbf16> to vector<256x256xbf16>
    %cst_90 = arith.constant dense<0.000000e+00> : vector<3x256xf32>
    %99 = tpu.matmul %96, %98, %cst_90 {dimension_numbers = #tpu.dot_dimension_numbers<[1], [0], [0], [1], [0, 0, 1, 1], [], []>} : vector<3x256xbf16>, vector<256x256xbf16>, vector<3x256xf32> -> vector<3x256xf32>
    %100 = arith.addf %92, %99 : vector<3x256xf32>
    %c2_91 = arith.constant 2 : index
    %c0_92 = arith.constant 0 : index
    %c0_93 = arith.constant 0 : index
    %101 = vector.load %arg7[%c2_91, %c0_92, %c0_93] : memref<9x3x16xbf16, #tpu.memory_space<vmem>>, vector<1x3x16xbf16>
    %102 = vector.shape_cast %101 : vector<1x3x16xbf16> to vector<3x16xbf16>
    %cst_94 = arith.constant dense<0.000000e+00> : vector<3x256xf32>
    %103 = tpu.matmul %102, %83, %cst_94 {dimension_numbers = #tpu.dot_dimension_numbers<[1], [0], [0], [1], [0, 0, 1, 1], [], []>} : vector<3x16xbf16>, vector<16x256xbf16>, vector<3x256xf32> -> vector<3x256xf32>
    %104 = arith.truncf %103 : vector<3x256xf32> to vector<3x256xbf16>
    %c2_95 = arith.constant 2 : index
    %c0_96 = arith.constant 0 : index
    %c0_97 = arith.constant 0 : index
    %105 = vector.load %arg4[%c2_95, %c0_96, %c0_97] : memref<9x256x256xbf16, #tpu.memory_space<vmem>>, vector<1x256x256xbf16>
    %106 = vector.shape_cast %105 : vector<1x256x256xbf16> to vector<256x256xbf16>
    %cst_98 = arith.constant dense<0.000000e+00> : vector<3x256xf32>
    %107 = tpu.matmul %104, %106, %cst_98 {dimension_numbers = #tpu.dot_dimension_numbers<[1], [0], [0], [1], [0, 0, 1, 1], [], []>} : vector<3x256xbf16>, vector<256x256xbf16>, vector<3x256xf32> -> vector<3x256xf32>
    %108 = arith.addf %100, %107 : vector<3x256xf32>
    %c3_99 = arith.constant 3 : index
    %c0_100 = arith.constant 0 : index
    %c0_101 = arith.constant 0 : index
    %109 = vector.load %arg7[%c3_99, %c0_100, %c0_101] : memref<9x3x16xbf16, #tpu.memory_space<vmem>>, vector<1x3x16xbf16>
    %110 = vector.shape_cast %109 : vector<1x3x16xbf16> to vector<3x16xbf16>
    %cst_102 = arith.constant dense<0.000000e+00> : vector<3x256xf32>
    %111 = tpu.matmul %110, %83, %cst_102 {dimension_numbers = #tpu.dot_dimension_numbers<[1], [0], [0], [1], [0, 0, 1, 1], [], []>} : vector<3x16xbf16>, vector<16x256xbf16>, vector<3x256xf32> -> vector<3x256xf32>
    %112 = arith.truncf %111 : vector<3x256xf32> to vector<3x256xbf16>
    %c3_103 = arith.constant 3 : index
    %c0_104 = arith.constant 0 : index
    %c0_105 = arith.constant 0 : index
    %113 = vector.load %arg4[%c3_103, %c0_104, %c0_105] : memref<9x256x256xbf16, #tpu.memory_space<vmem>>, vector<1x256x256xbf16>
    %114 = vector.shape_cast %113 : vector<1x256x256xbf16> to vector<256x256xbf16>
    %cst_106 = arith.constant dense<0.000000e+00> : vector<3x256xf32>
    %115 = tpu.matmul %112, %114, %cst_106 {dimension_numbers = #tpu.dot_dimension_numbers<[1], [0], [0], [1], [0, 0, 1, 1], [], []>} : vector<3x256xbf16>, vector<256x256xbf16>, vector<3x256xf32> -> vector<3x256xf32>
    %116 = arith.addf %108, %115 : vector<3x256xf32>
    %c4_107 = arith.constant 4 : index
    %c0_108 = arith.constant 0 : index
    %c0_109 = arith.constant 0 : index
    %117 = vector.load %arg7[%c4_107, %c0_108, %c0_109] : memref<9x3x16xbf16, #tpu.memory_space<vmem>>, vector<1x3x16xbf16>
    %118 = vector.shape_cast %117 : vector<1x3x16xbf16> to vector<3x16xbf16>
    %cst_110 = arith.constant dense<0.000000e+00> : vector<3x256xf32>
    %119 = tpu.matmul %118, %83, %cst_110 {dimension_numbers = #tpu.dot_dimension_numbers<[1], [0], [0], [1], [0, 0, 1, 1], [], []>} : vector<3x16xbf16>, vector<16x256xbf16>, vector<3x256xf32> -> vector<3x256xf32>
    %120 = arith.truncf %119 : vector<3x256xf32> to vector<3x256xbf16>
    %c4_111 = arith.constant 4 : index
    %c0_112 = arith.constant 0 : index
    %c0_113 = arith.constant 0 : index
    %121 = vector.load %arg4[%c4_111, %c0_112, %c0_113] : memref<9x256x256xbf16, #tpu.memory_space<vmem>>, vector<1x256x256xbf16>
    %122 = vector.shape_cast %121 : vector<1x256x256xbf16> to vector<256x256xbf16>
    %cst_114 = arith.constant dense<0.000000e+00> : vector<3x256xf32>
    %123 = tpu.matmul %120, %122, %cst_114 {dimension_numbers = #tpu.dot_dimension_numbers<[1], [0], [0], [1], [0, 0, 1, 1], [], []>} : vector<3x256xbf16>, vector<256x256xbf16>, vector<3x256xf32> -> vector<3x256xf32>
    %124 = arith.addf %116, %123 : vector<3x256xf32>
    %c5_115 = arith.constant 5 : index
    %c0_116 = arith.constant 0 : index
    %c0_117 = arith.constant 0 : index
    %125 = vector.load %arg7[%c5_115, %c0_116, %c0_117] : memref<9x3x16xbf16, #tpu.memory_space<vmem>>, vector<1x3x16xbf16>
    %126 = vector.shape_cast %125 : vector<1x3x16xbf16> to vector<3x16xbf16>
    %cst_118 = arith.constant dense<0.000000e+00> : vector<3x256xf32>
    %127 = tpu.matmul %126, %83, %cst_118 {dimension_numbers = #tpu.dot_dimension_numbers<[1], [0], [0], [1], [0, 0, 1, 1], [], []>} : vector<3x16xbf16>, vector<16x256xbf16>, vector<3x256xf32> -> vector<3x256xf32>
    %128 = arith.truncf %127 : vector<3x256xf32> to vector<3x256xbf16>
    %c5_119 = arith.constant 5 : index
    %c0_120 = arith.constant 0 : index
    %c0_121 = arith.constant 0 : index
    %129 = vector.load %arg4[%c5_119, %c0_120, %c0_121] : memref<9x256x256xbf16, #tpu.memory_space<vmem>>, vector<1x256x256xbf16>
    %130 = vector.shape_cast %129 : vector<1x256x256xbf16> to vector<256x256xbf16>
    %cst_122 = arith.constant dense<0.000000e+00> : vector<3x256xf32>
    %131 = tpu.matmul %128, %130, %cst_122 {dimension_numbers = #tpu.dot_dimension_numbers<[1], [0], [0], [1], [0, 0, 1, 1], [], []>} : vector<3x256xbf16>, vector<256x256xbf16>, vector<3x256xf32> -> vector<3x256xf32>
    %132 = arith.addf %124, %131 : vector<3x256xf32>
    %c6_123 = arith.constant 6 : index
    %c0_124 = arith.constant 0 : index
    %c0_125 = arith.constant 0 : index
    %133 = vector.load %arg7[%c6_123, %c0_124, %c0_125] : memref<9x3x16xbf16, #tpu.memory_space<vmem>>, vector<1x3x16xbf16>
    %134 = vector.shape_cast %133 : vector<1x3x16xbf16> to vector<3x16xbf16>
    %cst_126 = arith.constant dense<0.000000e+00> : vector<3x256xf32>
    %135 = tpu.matmul %134, %83, %cst_126 {dimension_numbers = #tpu.dot_dimension_numbers<[1], [0], [0], [1], [0, 0, 1, 1], [], []>} : vector<3x16xbf16>, vector<16x256xbf16>, vector<3x256xf32> -> vector<3x256xf32>
    %136 = arith.truncf %135 : vector<3x256xf32> to vector<3x256xbf16>
    %c6_127 = arith.constant 6 : index
    %c0_128 = arith.constant 0 : index
    %c0_129 = arith.constant 0 : index
    %137 = vector.load %arg4[%c6_127, %c0_128, %c0_129] : memref<9x256x256xbf16, #tpu.memory_space<vmem>>, vector<1x256x256xbf16>
    %138 = vector.shape_cast %137 : vector<1x256x256xbf16> to vector<256x256xbf16>
    %cst_130 = arith.constant dense<0.000000e+00> : vector<3x256xf32>
    %139 = tpu.matmul %136, %138, %cst_130 {dimension_numbers = #tpu.dot_dimension_numbers<[1], [0], [0], [1], [0, 0, 1, 1], [], []>} : vector<3x256xbf16>, vector<256x256xbf16>, vector<3x256xf32> -> vector<3x256xf32>
    %140 = arith.addf %132, %139 : vector<3x256xf32>
    %c7_131 = arith.constant 7 : index
    %c0_132 = arith.constant 0 : index
    %c0_133 = arith.constant 0 : index
    %141 = vector.load %arg7[%c7_131, %c0_132, %c0_133] : memref<9x3x16xbf16, #tpu.memory_space<vmem>>, vector<1x3x16xbf16>
    %142 = vector.shape_cast %141 : vector<1x3x16xbf16> to vector<3x16xbf16>
    %cst_134 = arith.constant dense<0.000000e+00> : vector<3x256xf32>
    %143 = tpu.matmul %142, %83, %cst_134 {dimension_numbers = #tpu.dot_dimension_numbers<[1], [0], [0], [1], [0, 0, 1, 1], [], []>} : vector<3x16xbf16>, vector<16x256xbf16>, vector<3x256xf32> -> vector<3x256xf32>
    %144 = arith.truncf %143 : vector<3x256xf32> to vector<3x256xbf16>
    %c7_135 = arith.constant 7 : index
    %c0_136 = arith.constant 0 : index
    %c0_137 = arith.constant 0 : index
    %145 = vector.load %arg4[%c7_135, %c0_136, %c0_137] : memref<9x256x256xbf16, #tpu.memory_space<vmem>>, vector<1x256x256xbf16>
    %146 = vector.shape_cast %145 : vector<1x256x256xbf16> to vector<256x256xbf16>
    %cst_138 = arith.constant dense<0.000000e+00> : vector<3x256xf32>
    %147 = tpu.matmul %144, %146, %cst_138 {dimension_numbers = #tpu.dot_dimension_numbers<[1], [0], [0], [1], [0, 0, 1, 1], [], []>} : vector<3x256xbf16>, vector<256x256xbf16>, vector<3x256xf32> -> vector<3x256xf32>
    %148 = arith.addf %140, %147 : vector<3x256xf32>
    %c8_139 = arith.constant 8 : index
    %c0_140 = arith.constant 0 : index
    %c0_141 = arith.constant 0 : index
    %149 = vector.load %arg7[%c8_139, %c0_140, %c0_141] : memref<9x3x16xbf16, #tpu.memory_space<vmem>>, vector<1x3x16xbf16>
    %150 = vector.shape_cast %149 : vector<1x3x16xbf16> to vector<3x16xbf16>
    %cst_142 = arith.constant dense<0.000000e+00> : vector<3x256xf32>
    %151 = tpu.matmul %150, %83, %cst_142 {dimension_numbers = #tpu.dot_dimension_numbers<[1], [0], [0], [1], [0, 0, 1, 1], [], []>} : vector<3x16xbf16>, vector<16x256xbf16>, vector<3x256xf32> -> vector<3x256xf32>
    %152 = arith.truncf %151 : vector<3x256xf32> to vector<3x256xbf16>
    %c8_143 = arith.constant 8 : index
    %c0_144 = arith.constant 0 : index
    %c0_145 = arith.constant 0 : index
    %153 = vector.load %arg4[%c8_143, %c0_144, %c0_145] : memref<9x256x256xbf16, #tpu.memory_space<vmem>>, vector<1x256x256xbf16>
    %154 = vector.shape_cast %153 : vector<1x256x256xbf16> to vector<256x256xbf16>
    %cst_146 = arith.constant dense<0.000000e+00> : vector<3x256xf32>
    %155 = tpu.matmul %152, %154, %cst_146 {dimension_numbers = #tpu.dot_dimension_numbers<[1], [0], [0], [1], [0, 0, 1, 1], [], []>} : vector<3x256xbf16>, vector<256x256xbf16>, vector<3x256xf32> -> vector<3x256xf32>
    %156 = arith.addf %148, %155 : vector<3x256xf32>
    %c0_147 = arith.constant 0 : index
    %c0_148 = arith.constant 0 : index
    %157 = vector.load %arg8[%c0_147, %c0_148] : memref<3x1xf32, #tpu.memory_space<vmem>>, vector<3x1xf32>
    %158 = vector.broadcast %157 : vector<3x1xf32> to vector<3x256xf32>
    %159 = arith.addf %156, %158 : vector<3x256xf32>
    %cst_149 = arith.constant 1.275000e+02 : f32
    %160 = vector.broadcast %cst_149 : f32 to vector<3x256xf32>
    %161 = arith.mulf %159, %160 : vector<3x256xf32>
    %cst_150 = arith.constant 5.000000e-01 : f32
    %162 = vector.broadcast %cst_150 : f32 to vector<3x256xf32>
    %163 = arith.mulf %162, %6 : vector<3x256xf32>
    %164 = arith.addf %161, %163 : vector<3x256xf32>
    %c0_151 = arith.constant 0 : index
    %c0_152 = arith.constant 0 : index
    %c0_153 = arith.constant 0 : index
    %165 = vector.load %arg9[%c0_151, %c0_152, %c0_153] : memref<1x3x256xf32, #tpu.memory_space<vmem>>, vector<1x3x256xf32>
    %166 = vector.shape_cast %165 : vector<1x3x256xf32> to vector<3x256xf32>
    %167 = vector.shape_cast %164 : vector<3x256xf32> to vector<1x3x256xf32>
    tpu.vector_store %arg9[%c0_151, %c0_152, %c0_153], %167 {strides = array<i32>} : memref<1x3x256xf32, #tpu.memory_space<vmem>>, vector<1x3x256xf32>,
    return
  }
  func.func @transform_0(%arg0: i32) -> (i32, i32, i32) {
    %c0_i32 = arith.constant 0 : i32
    %c0_i32_0 = arith.constant 0 : i32
    %c0_i32_1 = arith.constant 0 : i32
    return %arg0, %c0_i32, %c0_i32_0 : i32, i32, i32
  }
  func.func @transform_1(%arg0: i32) -> (i32, i32, i32) {
    %c0_i32 = arith.constant 0 : i32
    %c0_i32_0 = arith.constant 0 : i32
    %c0_i32_1 = arith.constant 0 : i32
    return %arg0, %c0_i32, %c0_i32_0 : i32, i32, i32
  }
  func.func @transform_2(%arg0: i32) -> (i32, i32) {
    %c0_i32 = arith.constant 0 : i32
    %c0_i32_0 = arith.constant 0 : i32
    %c0_i32_1 = arith.constant 0 : i32
    return %c0_i32, %c0_i32_0 : i32, i32
  }
  func.func @transform_3(%arg0: i32) -> (i32, i32, i32) {
    %c0_i32 = arith.constant 0 : i32
    %c0_i32_0 = arith.constant 0 : i32
    %c0_i32_1 = arith.constant 0 : i32
    %c0_i32_2 = arith.constant 0 : i32
    return %c0_i32, %c0_i32_0, %c0_i32_1 : i32, i32, i32
  }
  func.func @transform_4(%arg0: i32) -> (i32, i32, i32) {
    %c0_i32 = arith.constant 0 : i32
    %c0_i32_0 = arith.constant 0 : i32
    %c0_i32_1 = arith.constant 0 : i32
    %c0_i32_2 = arith.constant 0 : i32
    return %c0_i32, %c0_i32_0, %c0_i32_1 : i32, i32, i32
  }
  func.func @transform_5(%arg0: i32) -> (i32, i32) {
    %c0_i32 = arith.constant 0 : i32
    %c0_i32_0 = arith.constant 0 : i32
    %c0_i32_1 = arith.constant 0 : i32
    return %c0_i32, %c0_i32_0 : i32, i32
  }
  func.func @transform_6(%arg0: i32) -> (i32, i32, i32) {
    %c0_i32 = arith.constant 0 : i32
    %c0_i32_0 = arith.constant 0 : i32
    %c0_i32_1 = arith.constant 0 : i32
    %c0_i32_2 = arith.constant 0 : i32
    return %c0_i32, %c0_i32_0, %c0_i32_1 : i32, i32, i32
  }
  func.func @transform_7(%arg0: i32) -> (i32, i32) {
    %c0_i32 = arith.constant 0 : i32
    %c0_i32_0 = arith.constant 0 : i32
    %c0_i32_1 = arith.constant 0 : i32
    return %c0_i32, %c0_i32_0 : i32, i32
  }
  func.func @transform_8(%arg0: i32) -> (i32, i32, i32) {
    %c0_i32 = arith.constant 0 : i32
    %c0_i32_0 = arith.constant 0 : i32
    %c0_i32_1 = arith.constant 0 : i32
    return %arg0, %c0_i32, %c0_i32_0 : i32, i32, i32
  }
}

</mosaic_0001>

<llo_original>
// kernel: closed_call.3
$region0: #{closed_call.3}
  #allocation0 [shape = 'u32[]', space=smem, size = 0x4, offset = 0x4, fixed_abs, tag = 'smem constant byte address 0x4 - core index']
  #allocation1 [shape = 'u32[144,128]{1,0:T(1,128)}', space=vmem, size = 0x12000, scoped, tag = 'internal scratch']
  %s0 = inlined_call_operand.vmem [shape: f32[2,3,256], index: 0, kind: input, shape index: {}]
  %s1 = inlined_call_operand.vmem [shape: f32[2,3,256], index: 1, kind: input, shape index: {}]
  %s2 = inlined_call_operand.vmem [shape: f32[256,256], index: 2, kind: input, shape index: {}]
  %s3 = inlined_call_operand.vmem [shape: bf16[9,256,256], index: 3, kind: input, shape index: {}]
  %s4 = inlined_call_operand.vmem [shape: bf16[9,16,3], index: 4, kind: input, shape index: {}]
  %s5 = inlined_call_operand.vmem [shape: f32[16,256], index: 5, kind: input, shape index: {}]
  %s6 = inlined_call_operand.vmem [shape: bf16[9,3,16], index: 6, kind: input, shape index: {}]
  %s7 = inlined_call_operand.vmem [shape: f32[3,1], index: 7, kind: input, shape index: {}]
  %s8 = inlined_call_operand.vmem [shape: f32[2,3,256], index: 8, kind: output, shape index: {}]
  %s9 = sld [smem:[#allocation0]]
  $region65: #{closed_call.3} parent=0
    _
  %s11 = ssub.s32 1, %s9
  %s12 = scalar_select 0, %s11, %s9
  loop: start=0, step=1, limit=4
  $region2: #{closed_call.3} parent=0 // loop_pre_header
    _
  $region3: #{closed_call.3} parent=0 // loop_header
    %s14 = sphi 0, %s18
    %p15 = scmp.ge.s32.totalorder %s14, 4
    %s24 = sphi 0, %s26
    %s27 = sphi 0, %s24
    %s28 = sphi 0, %s27
    %s44 = sphi 0, %s28
    %s50 = sphi 0, %s52
    %s53 = sphi 0, %s50
    %s54 = sphi 0, %s53
    %s70 = sphi 0, %s54
    %s74 = sphi 0, %s74
    %s76 = sphi 0, %s74
    %s77 = sphi 0, %s76
    %s91 = sphi 0, %s77
    %s95 = sphi 0, %s95
    %s97 = sphi 0, %s95
    %s98 = sphi 0, %s97
    %s112 = sphi 0, %s98
    %s116 = sphi 0, %s116
    %s118 = sphi 0, %s116
    %s119 = sphi 0, %s118
    %s133 = sphi 0, %s119
    %s137 = sphi 0, %s137
    %s139 = sphi 0, %s137
    %s140 = sphi 0, %s139
    %s154 = sphi 0, %s140
    %s158 = sphi 0, %s158
    %s160 = sphi 0, %s158
    %s161 = sphi 0, %s160
    %s175 = sphi 0, %s161
    %s179 = sphi 0, %s179
    %s181 = sphi 0, %s179
    %s182 = sphi 0, %s181
    %s196 = sphi 0, %s182
    %s202 = sphi 0, %s204
    %s205 = sphi 0, %s202
    %s206 = sphi 0, %s205
    %s222 = sphi 0, %s206
  $region4: #{closed_call.3} parent=0 // loop_header_branch
    %17 = sbr.rel (%p15) target = $region8
  $region5: #{closed_call.3} parent=0 // loop_body
    %s19 = ssub.s32 %s14, 1
    %s20 = ssub.s32 %s14, 2
    %s21 = sadd.s32 %s14, 1
    %s22 = ssub.s32 %s14, %s21
    %p23 = scmp.eq.s32.totalorder %s22, 0
    %s25 = sadd.s32 %s24, 1
    %s26 = scalar_select %p23, %s24, %s25
    %p29 = pneg %p23
    %p30 = scmp.eq.s32.totalorder %s14, 1
    %p31 = por %p29, %p30
    %p32 = scmp.ne.s32.totalorder %s24, %s27
    %p33 = scmp.eq.s32.totalorder %s14, 0
    %p34 = por %p32, %p33
    %p35 = scmp.ne.s32.totalorder %s24, %s27
    %p36 = scmp.eq.s32.totalorder %s19, 1
    %p37 = por %p35, %p36
    %p38 = scmp.ne.s32.totalorder %s27, %s28
    %p39 = scmp.eq.s32.totalorder %s19, 0
    %p40 = por %p38, %p39
    %p41 = scmp.ne.s32.totalorder %s27, %s28
    %p42 = scmp.eq.s32.totalorder %s20, 1
    %p43 = por %p41, %p42
    %p45 = scmp.ne.s32.totalorder %s28, %s44
    %p46 = scmp.eq.s32.totalorder %s20, 0
    %p47 = por %p45, %p46
    %s48 = ssub.s32 %s14, %s21
    %p49 = scmp.eq.s32.totalorder %s48, 0
    %s51 = sadd.s32 %s50, 1
    %s52 = scalar_select %p49, %s50, %s51
    %p55 = pneg %p49
    %p56 = scmp.eq.s32.totalorder %s14, 1
    %p57 = por %p55, %p56
    %p58 = scmp.ne.s32.totalorder %s50, %s53
    %p59 = scmp.eq.s32.totalorder %s14, 0
    %p60 = por %p58, %p59
    %p61 = scmp.ne.s32.totalorder %s50, %s53
    %p62 = scmp.eq.s32.totalorder %s19, 1
    %p63 = por %p61, %p62
    %p64 = scmp.ne.s32.totalorder %s53, %s54
    %p65 = scmp.eq.s32.totalorder %s19, 0
    %p66 = por %p64, %p65
    %p67 = scmp.ne.s32.totalorder %s53, %s54
    %p68 = scmp.eq.s32.totalorder %s20, 1
    %p69 = por %p67, %p68
    %p71 = scmp.ne.s32.totalorder %s54, %s70
    %p72 = scmp.eq.s32.totalorder %s20, 0
    %p73 = por %p71, %p72
    %s75 = sadd.s32 %s74, 1
    %p78 = scmp.eq.s32.totalorder %s14, 1
    %p79 = scmp.ne.s32.totalorder %s74, %s76
    %p80 = scmp.eq.s32.totalorder %s14, 0
    %p81 = por %p79, %p80
    %p82 = scmp.ne.s32.totalorder %s74, %s76
    %p83 = scmp.eq.s32.totalorder %s19, 1
    %p84 = por %p82, %p83
    %p85 = scmp.ne.s32.totalorder %s76, %s77
    %p86 = scmp.eq.s32.totalorder %s19, 0
    %p87 = por %p85, %p86
    %p88 = scmp.ne.s32.totalorder %s76, %s77
    %p89 = scmp.eq.s32.totalorder %s20, 1
    %p90 = por %p88, %p89
    %p92 = scmp.ne.s32.totalorder %s77, %s91
    %p93 = scmp.eq.s32.totalorder %s20, 0
    %p94 = por %p92, %p93
    %s96 = sadd.s32 %s95, 1
    %p99 = scmp.eq.s32.totalorder %s14, 1
    %p100 = scmp.ne.s32.totalorder %s95, %s97
    %p101 = scmp.eq.s32.totalorder %s14, 0
    %p102 = por %p100, %p101
    %p103 = scmp.ne.s32.totalorder %s95, %s97
    %p104 = scmp.eq.s32.totalorder %s19, 1
    %p105 = por %p103, %p104
    %p106 = scmp.ne.s32.totalorder %s97, %s98
    %p107 = scmp.eq.s32.totalorder %s19, 0
    %p108 = por %p106, %p107
    %p109 = scmp.ne.s32.totalorder %s97, %s98
    %p110 = scmp.eq.s32.totalorder %s20, 1
    %p111 = por %p109, %p110
    %p113 = scmp.ne.s32.totalorder %s98, %s112
    %p114 = scmp.eq.s32.totalorder %s20, 0
    %p115 = por %p113, %p114
    %s117 = sadd.s32 %s116, 1
    %p120 = scmp.eq.s32.totalorder %s14, 1
    %p121 = scmp.ne.s32.totalorder %s116, %s118
    %p122 = scmp.eq.s32.totalorder %s14, 0
    %p123 = por %p121, %p122
    %p124 = scmp.ne.s32.totalorder %s116, %s118
    %p125 = scmp.eq.s32.totalorder %s19, 1
    %p126 = por %p124, %p125
    %p127 = scmp.ne.s32.totalorder %s118, %s119
    %p128 = scmp.eq.s32.totalorder %s19, 0
    %p129 = por %p127, %p128
    %p130 = scmp.ne.s32.totalorder %s118, %s119
    %p131 = scmp.eq.s32.totalorder %s20, 1
    %p132 = por %p130, %p131
    %p134 = scmp.ne.s32.totalorder %s119, %s133
    %p135 = scmp.eq.s32.totalorder %s20, 0
    %p136 = por %p134, %p135
    %s138 = sadd.s32 %s137, 1
    %p141 = scmp.eq.s32.totalorder %s14, 1
    %p142 = scmp.ne.s32.totalorder %s137, %s139
    %p143 = scmp.eq.s32.totalorder %s14, 0
    %p144 = por %p142, %p143
    %p145 = scmp.ne.s32.totalorder %s137, %s139
    %p146 = scmp.eq.s32.totalorder %s19, 1
    %p147 = por %p145, %p146
    %p148 = scmp.ne.s32.totalorder %s139, %s140
    %p149 = scmp.eq.s32.totalorder %s19, 0
    %p150 = por %p148, %p149
    %p151 = scmp.ne.s32.totalorder %s139, %s140
    %p152 = scmp.eq.s32.totalorder %s20, 1
    %p153 = por %p151, %p152
    %p155 = scmp.ne.s32.totalorder %s140, %s154
    %p156 = scmp.eq.s32.totalorder %s20, 0
    %p157 = por %p155, %p156
    %s159 = sadd.s32 %s158, 1
    %p162 = scmp.eq.s32.totalorder %s14, 1
    %p163 = scmp.ne.s32.totalorder %s158, %s160
    %p164 = scmp.eq.s32.totalorder %s14, 0
    %p165 = por %p163, %p164
    %p166 = scmp.ne.s32.totalorder %s158, %s160
    %p167 = scmp.eq.s32.totalorder %s19, 1
    %p168 = por %p166, %p167
    %p169 = scmp.ne.s32.totalorder %s160, %s161
    %p170 = scmp.eq.s32.totalorder %s19, 0
    %p171 = por %p169, %p170
    %p172 = scmp.ne.s32.totalorder %s160, %s161
    %p173 = scmp.eq.s32.totalorder %s20, 1
    %p174 = por %p172, %p173
    %p176 = scmp.ne.s32.totalorder %s161, %s175
    %p177 = scmp.eq.s32.totalorder %s20, 0
    %p178 = por %p176, %p177
    %s180 = sadd.s32 %s179, 1
    %p183 = scmp.eq.s32.totalorder %s14, 1
    %p184 = scmp.ne.s32.totalorder %s179, %s181
    %p185 = scmp.eq.s32.totalorder %s14, 0
    %p186 = por %p184, %p185
    %p187 = scmp.ne.s32.totalorder %s179, %s181
    %p188 = scmp.eq.s32.totalorder %s19, 1
    %p189 = por %p187, %p188
    %p190 = scmp.ne.s32.totalorder %s181, %s182
    %p191 = scmp.eq.s32.totalorder %s19, 0
    %p192 = por %p190, %p191
    %p193 = scmp.ne.s32.totalorder %s181, %s182
    %p194 = scmp.eq.s32.totalorder %s20, 1
    %p195 = por %p193, %p194
    %p197 = scmp.ne.s32.totalorder %s182, %s196
    %p198 = scmp.eq.s32.totalorder %s20, 0
    %p199 = por %p197, %p198
    %s200 = ssub.s32 %s14, %s21
    %p201 = scmp.eq.s32.totalorder %s200, 0
    %s203 = sadd.s32 %s202, 1
    %s204 = scalar_select %p201, %s202, %s203
    %p207 = pneg %p201
    %p208 = scmp.eq.s32.totalorder %s14, 1
    %p209 = por %p207, %p208
    %p210 = scmp.ne.s32.totalorder %s202, %s205
    %p211 = scmp.eq.s32.totalorder %s14, 0
    %p212 = por %p210, %p211
    %p213 = scmp.ne.s32.totalorder %s202, %s205
    %p214 = scmp.eq.s32.totalorder %s19, 1
    %p215 = por %p213, %p214
    %p216 = scmp.ne.s32.totalorder %s205, %s206
    %p217 = scmp.eq.s32.totalorder %s19, 0
    %p218 = por %p216, %p217
    %p219 = scmp.ne.s32.totalorder %s205, %s206
    %p220 = scmp.eq.s32.totalorder %s20, 1
    %p221 = por %p219, %p220
    %p223 = scmp.ne.s32.totalorder %s206, %s222
    %p224 = scmp.eq.s32.totalorder %s20, 0
    %p225 = por %p223, %p224
    %p226 = scmp.le.s32.totalorder 1, %s14
    %p227 = scmp.lt.s32.totalorder %s14, 3
    %p228 = pnand %p226, %p227
    %p229 = pneg %p228
    // Predicated region
    $region9: #{closed_call.3} parent=5 // pred_check
      _
    $region10: #{closed_call.3} parent=5 // pred_check_branch
      %231 = sbr.rel (%p228) target = $region12
    $region11: #{closed_call.3} parent=5 // pred_region
      %s232 = ssub.s32 %s14, 1
      // Predicated region
      $region13: #{closed_call.3} parent=11 // pred_check
        %p233 = pneg %p87
      $region14: #{closed_call.3} parent=11 // pred_check_branch
        %235 = sbr.rel (%p233) target = $region16
      $region15: #{closed_call.3} parent=11 // pred_region
        _
      $region16: #{closed_call.3} parent=11 // pred_fallthru
        _
      // Predicated region
      $region17: #{closed_call.3} parent=11 // pred_check
        %p236 = pneg %p108
      $region18: #{closed_call.3} parent=11 // pred_check_branch
        %238 = sbr.rel (%p236) target = $region20
      $region19: #{closed_call.3} parent=11 // pred_region
        _
      $region20: #{closed_call.3} parent=11 // pred_fallthru
        _
      // Predicated region
      $region21: #{closed_call.3} parent=11 // pred_check
        %p239 = pneg %p129
      $region22: #{closed_call.3} parent=11 // pred_check_branch
        %241 = sbr.rel (%p239) target = $region24
      $region23: #{closed_call.3} parent=11 // pred_region
        _
      $region24: #{closed_call.3} parent=11 // pred_fallthru
        _
      // Predicated region
      $region25: #{closed_call.3} parent=11 // pred_check
        %p242 = pneg %p150
      $region26: #{closed_call.3} parent=11 // pred_check_branch
        %244 = sbr.rel (%p242) target = $region28
      $region27: #{closed_call.3} parent=11 // pred_region
        _
      $region28: #{closed_call.3} parent=11 // pred_fallthru
        _
      // Predicated region
      $region29: #{closed_call.3} parent=11 // pred_check
        %p245 = pneg %p171
      $region30: #{closed_call.3} parent=11 // pred_check_branch
        %247 = sbr.rel (%p245) target = $region32
      $region31: #{closed_call.3} parent=11 // pred_region
        _
      $region32: #{closed_call.3} parent=11 // pred_fallthru
        _
      // Predicated region
      $region33: #{closed_call.3} parent=11 // pred_check
        %p248 = pneg %p192
      $region34: #{closed_call.3} parent=11 // pred_check_branch
        %250 = sbr.rel (%p248) target = $region36
      $region35: #{closed_call.3} parent=11 // pred_region
        _
      $region36: #{closed_call.3} parent=11 // pred_fallthru
        _
    $region12: #{closed_call.3} parent=5 // pred_fallthru
      _
    %p251 = scmp.lt.s32.totalorder %s14, 2
    // Predicated region
    $region37: #{closed_call.3} parent=5 // pred_check
      %p252 = pneg %p251
    $region38: #{closed_call.3} parent=5 // pred_check_branch
      %254 = sbr.rel (%p252) target = $region40
    $region39: #{closed_call.3} parent=5 // pred_region
      // Predicated region
      $region41: #{closed_call.3} parent=39 // pred_check
        %p255 = pneg %p34
      $region42: #{closed_call.3} parent=39 // pred_check_branch
        %257 = sbr.rel (%p255) target = $region44
      $region43: #{closed_call.3} parent=39 // pred_region
        %p258 = scmp.lt.s32.totalorder %s14, 1
        %s259 = scalar_select %p258, %s14, 1
        %s260 = smul.addr %s259, 2
        %s261 = smul.addr %s260, 4
        %s262 = scalar_lea.vmem %s0, %s261
      $region44: #{closed_call.3} parent=39 // pred_fallthru
        _
      // Predicated region
      $region45: #{closed_call.3} parent=39 // pred_check
        %p263 = pneg %p60
      $region46: #{closed_call.3} parent=39 // pred_check_branch
        %265 = sbr.rel (%p263) target = $region48
      $region47: #{closed_call.3} parent=39 // pred_region
        %p266 = scmp.lt.s32.totalorder %s14, 1
        %s267 = scalar_select %p266, %s14, 1
        %s268 = smul.addr %s267, 2
        %s269 = smul.addr %s268, 4
        %s270 = scalar_lea.vmem %s1, %s269
      $region48: #{closed_call.3} parent=39 // pred_fallthru
        _
    $region40: #{closed_call.3} parent=5 // pred_fallthru
      _
    %p271 = scmp.le.s32.totalorder 1, %s14
    %p272 = scmp.lt.s32.totalorder %s14, 3
    %p273 = pnand %p271, %p272
    %p274 = pneg %p273
    // Predicated region
    $region49: #{closed_call.3} parent=5 // pred_check
      _
    $region50: #{closed_call.3} parent=5 // pred_check_branch
      %276 = sbr.rel (%p273) target = $region52
    $region51: #{closed_call.3} parent=5 // pred_region
      %s277 = ssub.s32 %s14, 1
      %p278 = scmp.lt.s32.totalorder %s19, 1
      %s279 = scalar_select %p278, %s19, 1
      %s280 = smul.addr %s279, 2
      %s281 = smul.addr %s280, 4
      %s282 = scalar_lea.vmem %s0, %s281
      %p283 = pneg %p40
      %p284 = pneg %p37
      %p285 = scmp.lt.s32.totalorder %s19, 1
      %s286 = scalar_select %p285, %s19, 1
      %s287 = smul.addr %s286, 2
      %s288 = smul.addr %s287, 4
      %s289 = scalar_lea.vmem %s1, %s288
      %p290 = pneg %p66
      %p291 = pneg %p63
      %p292 = pneg %p87
      %p293 = pneg %p84
      %p294 = pneg %p108
      %p295 = pneg %p105
      %p296 = pneg %p129
      %p297 = pneg %p126
      %p298 = pneg %p150
      %p299 = pneg %p147
      %p300 = pneg %p171
      %p301 = pneg %p168
      %p302 = pneg %p192
      %p303 = pneg %p189
      %p304 = pneg %p218
      %p305 = pneg %p215
      %p306 = scmp.lt.s32.totalorder %s19, 1
      %s307 = scalar_select %p306, %s19, 1
      %s308 = smul.addr %s307, 2
      %s309 = smul.addr %s308, 4
      %s310 = scalar_lea.vmem %s8, %s309
      %p311 = scmp.lt.s32.totalorder %s19, 1
      %s312 = scalar_select %p311, %s19, 1
      %s313 = smul.addr %s312, 2
      %s314 = smul.addr %s313, 4
      %s315 = scalar_lea.vmem %s0, %s314
      %p316 = scmp.lt.s32.totalorder %s19, 1
      %s317 = scalar_select %p316, %s19, 1
      %s318 = smul.addr %s317, 2
      %s319 = smul.addr %s318, 4
      %s320 = scalar_lea.vmem %s1, %s319
      %p321 = scmp.lt.s32.totalorder %s19, 1
      %s322 = scalar_select %p321, %s19, 1
      %s323 = smul.addr %s322, 2
      %s324 = smul.addr %s323, 4
      %s325 = scalar_lea.vmem %s8, %s324
      %v327 = vld [vmem:[%s315] sm:$0x77]
      %v328 = vld [vmem:[%s2] sm:$0xff]
      %v329 = vld [vmem:[%s2 + $0x8] sm:$0xff]
      %v330 = vld [vmem:[%s2 + $0x10] sm:$0xff]
      %v331 = vld [vmem:[%s2 + $0x18] sm:$0xff]
      %v332 = vld [vmem:[%s2 + $0x20] sm:$0xff]
      %v333 = vld [vmem:[%s2 + $0x28] sm:$0xff]
      %v334 = vld [vmem:[%s2 + $0x30] sm:$0xff]
      %v335 = vld [vmem:[%s2 + $0x38] sm:$0xff]
      %v336 = vld [vmem:[%s2 + $0x40] sm:$0xff]
      %v337 = vld [vmem:[%s2 + $0x48] sm:$0xff]
      %v338 = vld [vmem:[%s2 + $0x50] sm:$0xff]
      %v339 = vld [vmem:[%s2 + $0x58] sm:$0xff]
      %v340 = vld [vmem:[%s2 + $0x60] sm:$0xff]
      %v341 = vld [vmem:[%s2 + $0x68] sm:$0xff]
      %v342 = vld [vmem:[%s2 + $0x70] sm:$0xff]
      %v343 = vld [vmem:[%s2 + $0x78] sm:$0xff]
      %v344 = vld [vmem:[%s2 + $0x80] sm:$0xff]
      %v345 = vld [vmem:[%s2 + $0x88] sm:$0xff]
      %v346 = vld [vmem:[%s2 + $0x90] sm:$0xff]
      %v347 = vld [vmem:[%s2 + $0x98] sm:$0xff]
      %v348 = vld [vmem:[%s2 + $0xa0] sm:$0xff]
      %v349 = vld [vmem:[%s2 + $0xa8] sm:$0xff]
      %v350 = vld [vmem:[%s2 + $0xb0] sm:$0xff]
      %v351 = vld [vmem:[%s2 + $0xb8] sm:$0xff]
      %v352 = vld [vmem:[%s2 + $0xc0] sm:$0xff]
      %v353 = vld [vmem:[%s2 + $0xc8] sm:$0xff]
      %v354 = vld [vmem:[%s2 + $0xd0] sm:$0xff]
      %v355 = vld [vmem:[%s2 + $0xd8] sm:$0xff]
      %v356 = vld [vmem:[%s2 + $0xe0] sm:$0xff]
      %v357 = vld [vmem:[%s2 + $0xe8] sm:$0xff]
      %v358 = vld [vmem:[%s2 + $0xf0] sm:$0xff]
      %v359 = vld [vmem:[%s2 + $0xf8] sm:$0xff]
      %v360 = vld [vmem:[%s2 + $0x100] sm:$0xff]
      %v361 = vld [vmem:[%s2 + $0x108] sm:$0xff]
      %v362 = vld [vmem:[%s2 + $0x110] sm:$0xff]
      %v363 = vld [vmem:[%s2 + $0x118] sm:$0xff]
      %v364 = vld [vmem:[%s2 + $0x120] sm:$0xff]
      %v365 = vld [vmem:[%s2 + $0x128] sm:$0xff]
      %v366 = vld [vmem:[%s2 + $0x130] sm:$0xff]
      %v367 = vld [vmem:[%s2 + $0x138] sm:$0xff]
      %v368 = vld [vmem:[%s2 + $0x140] sm:$0xff]
      %v369 = vld [vmem:[%s2 + $0x148] sm:$0xff]
      %v370 = vld [vmem:[%s2 + $0x150] sm:$0xff]
      %v371 = vld [vmem:[%s2 + $0x158] sm:$0xff]
      %v372 = vld [vmem:[%s2 + $0x160] sm:$0xff]
      %v373 = vld [vmem:[%s2 + $0x168] sm:$0xff]
      %v374 = vld [vmem:[%s2 + $0x170] sm:$0xff]
      %v375 = vld [vmem:[%s2 + $0x178] sm:$0xff]
      %v376 = vld [vmem:[%s2 + $0x180] sm:$0xff]
      %v377 = vld [vmem:[%s2 + $0x188] sm:$0xff]
      %v378 = vld [vmem:[%s2 + $0x190] sm:$0xff]
      %v379 = vld [vmem:[%s2 + $0x198] sm:$0xff]
      %v380 = vld [vmem:[%s2 + $0x1a0] sm:$0xff]
      %v381 = vld [vmem:[%s2 + $0x1a8] sm:$0xff]
      %v382 = vld [vmem:[%s2 + $0x1b0] sm:$0xff]
      %v383 = vld [vmem:[%s2 + $0x1b8] sm:$0xff]
      %v384 = vld [vmem:[%s2 + $0x1c0] sm:$0xff]
      %v385 = vld [vmem:[%s2 + $0x1c8] sm:$0xff]
      %v386 = vld [vmem:[%s2 + $0x1d0] sm:$0xff]
      %v387 = vld [vmem:[%s2 + $0x1d8] sm:$0xff]
      %v388 = vld [vmem:[%s2 + $0x1e0] sm:$0xff]
      %v389 = vld [vmem:[%s2 + $0x1e8] sm:$0xff]
      %v390 = vld [vmem:[%s2 + $0x1f0] sm:$0xff]
      %v391 = vld [vmem:[%s2 + $0x1f8] sm:$0xff]
      %v392 = vld [vmem:[%s320] sm:$0x77]
      %v394 = vcombine.high %v327, %v327
      %v397 = vcombine.high %v392, %v392
      %399 = vmatprep.subr.mxu0 %v359
      %400 = vmatpush1.msra.mxu0 %v358
      %401 = vmatprep.subr.mxu0 %v357
      %402 = vmatpush1.msra.mxu0 %v356
      %403 = vmatprep.subr.mxu0 %v355
      %404 = vmatpush1.msra.mxu0 %v354
      %405 = vmatprep.subr.mxu0 %v353
      %406 = vmatpush1.msra.mxu0 %v352
      %407 = vmatprep.subr.mxu0 %v351
      %408 = vmatpush1.msra.mxu0 %v350
      %409 = vmatprep.subr.mxu0 %v349
      %410 = vmatpush1.msra.mxu0 %v348
      %411 = vmatprep.subr.mxu0 %v347
      %412 = vmatpush1.msra.mxu0 %v346
      %413 = vmatprep.subr.mxu0 %v345
      %414 = vmatpush1.msra.mxu0 %v344
      %415 = vmatprep.subr.mxu0 %v343
      %416 = vmatpush1.msra.mxu0 %v342
      %417 = vmatprep.subr.mxu0 %v341
      %418 = vmatpush1.msra.mxu0 %v340
      %419 = vmatprep.subr.mxu0 %v339
      %420 = vmatpush1.msra.mxu0 %v338
      %421 = vmatprep.subr.mxu0 %v337
      %422 = vmatpush1.msra.mxu0 %v336
      %423 = vmatprep.subr.mxu0 %v335
      %424 = vmatpush1.msra.mxu0 %v334
      %425 = vmatprep.subr.mxu0 %v333
      %426 = vmatpush1.msra.mxu0 %v332
      %427 = vmatprep.subr.mxu0 %v331
      %428 = vmatpush1.msra.mxu0 %v330
      %429 = vmatprep.subr.mxu0 %v329
      %430 = vmatpush1.msra.mxu0 %v328
      %431 = vmatprep.subr.mxu0 %v391
      %432 = vmatpush2.msra.mxu0 %v390
      %433 = vmatprep.subr.mxu0 %v389
      %434 = vmatpush2.msra.mxu0 %v388
      %435 = vmatprep.subr.mxu0 %v387
      %436 = vmatpush2.msra.mxu0 %v386
      %437 = vmatprep.subr.mxu0 %v385
      %438 = vmatpush2.msra.mxu0 %v384
      %439 = vmatprep.subr.mxu0 %v383
      %440 = vmatpush2.msra.mxu0 %v382
      %441 = vmatprep.subr.mxu0 %v381
      %442 = vmatpush2.msra.mxu0 %v380
      %443 = vmatprep.subr.mxu0 %v379
      %444 = vmatpush2.msra.mxu0 %v378
      %445 = vmatprep.subr.mxu0 %v377
      %446 = vmatpush2.msra.mxu0 %v376
      %447 = vmatprep.subr.mxu0 %v375
      %448 = vmatpush2.msra.mxu0 %v374
      %449 = vmatprep.subr.mxu0 %v373
      %450 = vmatpush2.msra.mxu0 %v372
      %451 = vmatprep.subr.mxu0 %v371
      %452 = vmatpush2.msra.mxu0 %v370
      %453 = vmatprep.subr.mxu0 %v369
      %454 = vmatpush2.msra.mxu0 %v368
      %455 = vmatprep.subr.mxu0 %v367
      %456 = vmatpush2.msra.mxu0 %v366
      %457 = vmatprep.subr.mxu0 %v365
      %458 = vmatpush2.msra.mxu0 %v364
      %459 = vmatprep.subr.mxu0 %v363
      %460 = vmatpush2.msra.mxu0 %v362
      %461 = vmatprep.subr.mxu0 %v361
      %462 = vmatpush2.msra.mxu0 %v360
      %463 = vmatprep.mubr.f32.mxu0 %v394
      %464 = vmatmul.mubr.f32.gmra.mxu0 %v327
      %v465 = vpop.f32.mrf.mxu0
      %v466 = vadd.f32 %v392, %v465
      %v467 = vpop.f32.mrf.mxu0
      %v468 = vadd.f32 %v397, %v467
      %469 = vdwg.mxu0
      %v470 = vpack.c.bf16 %v466, %v466
      %v471 = vpack.c.bf16 %v468, %v468
      %v472 = vld [vmem:[%s5] sm:$0xff]
      %v473 = vld [vmem:[%s5 + $0x8] sm:$0xff]
      %v474 = vld [vmem:[%s5 + $0x10] sm:$0xff]
      %v475 = vld [vmem:[%s5 + $0x18] sm:$0xff]
      %v476 = vld [vmem:[%s3] sm:$0xff]
      %v477 = vld [vmem:[%s3 + $0x8] sm:$0xff]
      %v478 = vld [vmem:[%s3 + $0x10] sm:$0xff]
      %v479 = vld [vmem:[%s3 + $0x18] sm:$0xff]
      %v480 = vld [vmem:[%s3 + $0x20] sm:$0xff]
      %v481 = vld [vmem:[%s3 + $0x28] sm:$0xff]
      %v482 = vld [vmem:[%s3 + $0x30] sm:$0xff]
      %v483 = vld [vmem:[%s3 + $0x38] sm:$0xff]
      %v484 = vld [vmem:[%s3 + $0x40] sm:$0xff]
      %v485 = vld [vmem:[%s3 + $0x48] sm:$0xff]
      %v486 = vld [vmem:[%s3 + $0x50] sm:$0xff]
      %v487 = vld [vmem:[%s3 + $0x58] sm:$0xff]
      %v488 = vld [vmem:[%s3 + $0x60] sm:$0xff]
      %v489 = vld [vmem:[%s3 + $0x68] sm:$0xff]
      %v490 = vld [vmem:[%s3 + $0x70] sm:$0xff]
      %v491 = vld [vmem:[%s3 + $0x78] sm:$0xff]
      %v492 = vld [vmem:[%s3 + $0x80] sm:$0xff]
      %v493 = vld [vmem:[%s3 + $0x88] sm:$0xff]
      %v494 = vld [vmem:[%s3 + $0x90] sm:$0xff]
      %v495 = vld [vmem:[%s3 + $0x98] sm:$0xff]
      %v496 = vld [vmem:[%s3 + $0xa0] sm:$0xff]
      %v497 = vld [vmem:[%s3 + $0xa8] sm:$0xff]
      %v498 = vld [vmem:[%s3 + $0xb0] sm:$0xff]
      %v499 = vld [vmem:[%s3 + $0xb8] sm:$0xff]
      %v500 = vld [vmem:[%s3 + $0xc0] sm:$0xff]
      %v501 = vld [vmem:[%s3 + $0xc8] sm:$0xff]
      %v502 = vld [vmem:[%s3 + $0xd0] sm:$0xff]
      %v503 = vld [vmem:[%s3 + $0xd8] sm:$0xff]
      %v504 = vld [vmem:[%s3 + $0xe0] sm:$0xff]
      %v505 = vld [vmem:[%s3 + $0xe8] sm:$0xff]
      %v506 = vld [vmem:[%s3 + $0xf0] sm:$0xff]
      %v507 = vld [vmem:[%s3 + $0xf8] sm:$0xff]
      %v540 = vunpack.c.l.b16 %v476
      %v541 = vunpack.c.h.b16 %v476
      %v542 = vunpack.c.l.b16 %v477
      %v543 = vunpack.c.h.b16 %v477
      %v544 = vunpack.c.l.b16 %v478
      %v545 = vunpack.c.h.b16 %v478
      %v546 = vunpack.c.l.b16 %v479
      %v547 = vunpack.c.h.b16 %v479
      %v548 = vunpack.c.l.b16 %v480
      %v549 = vunpack.c.h.b16 %v480
      %v550 = vunpack.c.l.b16 %v481
      %v551 = vunpack.c.h.b16 %v481
      %v552 = vunpack.c.l.b16 %v482
      %v553 = vunpack.c.h.b16 %v482
      %v554 = vunpack.c.l.b16 %v483
      %v555 = vunpack.c.h.b16 %v483
      %v556 = vunpack.c.l.b16 %v484
      %v557 = vunpack.c.h.b16 %v484
      %v558 = vunpack.c.l.b16 %v485
      %v559 = vunpack.c.h.b16 %v485
      %v560 = vunpack.c.l.b16 %v486
      %v561 = vunpack.c.h.b16 %v486
      %v562 = vunpack.c.l.b16 %v487
      %v563 = vunpack.c.h.b16 %v487
      %v564 = vunpack.c.l.b16 %v488
      %v565 = vunpack.c.h.b16 %v488
      %v566 = vunpack.c.l.b16 %v489
      %v567 = vunpack.c.h.b16 %v489
      %v568 = vunpack.c.l.b16 %v490
      %v569 = vunpack.c.h.b16 %v490
      %v570 = vunpack.c.l.b16 %v491
      %v571 = vunpack.c.h.b16 %v491
      %v572 = vunpack.c.l.b16 %v492
      %v573 = vunpack.c.h.b16 %v492
      %v574 = vunpack.c.l.b16 %v493
      %v575 = vunpack.c.h.b16 %v493
      %v576 = vunpack.c.l.b16 %v494
      %v577 = vunpack.c.h.b16 %v494
      %v578 = vunpack.c.l.b16 %v495
      %v579 = vunpack.c.h.b16 %v495
      %v580 = vunpack.c.l.b16 %v496
      %v581 = vunpack.c.h.b16 %v496
      %v582 = vunpack.c.l.b16 %v497
      %v583 = vunpack.c.h.b16 %v497
      %v584 = vunpack.c.l.b16 %v498
      %v585 = vunpack.c.h.b16 %v498
      %v586 = vunpack.c.l.b16 %v499
      %v587 = vunpack.c.h.b16 %v499
      %v588 = vunpack.c.l.b16 %v500
      %v589 = vunpack.c.h.b16 %v500
      %v590 = vunpack.c.l.b16 %v501
      %v591 = vunpack.c.h.b16 %v501
      %v592 = vunpack.c.l.b16 %v502
      %v593 = vunpack.c.h.b16 %v502
      %v594 = vunpack.c.l.b16 %v503
      %v595 = vunpack.c.h.b16 %v503
      %v596 = vunpack.c.l.b16 %v504
      %v597 = vunpack.c.h.b16 %v504
      %v598 = vunpack.c.l.b16 %v505
      %v599 = vunpack.c.h.b16 %v505
      %v600 = vunpack.c.l.b16 %v506
      %v601 = vunpack.c.h.b16 %v506
      %v602 = vunpack.c.l.b16 %v507
      %v603 = vunpack.c.h.b16 %v507
      %v604 = vpack.c.b16 %v542, %v540
      %v605 = vpack.c.b16 %v543, %v541
      %v606 = vpack.c.b16 %v546, %v544
      %v607 = vpack.c.b16 %v547, %v545
      %v608 = vpack.c.b16 %v550, %v548
      %v609 = vpack.c.b16 %v551, %v549
      %v610 = vpack.c.b16 %v554, %v552
      %v611 = vpack.c.b16 %v555, %v553
      %v612 = vpack.c.b16 %v558, %v556
      %v613 = vpack.c.b16 %v559, %v557
      %v614 = vpack.c.b16 %v562, %v560
      %v615 = vpack.c.b16 %v563, %v561
      %v616 = vpack.c.b16 %v566, %v564
      %v617 = vpack.c.b16 %v567, %v565
      %v618 = vpack.c.b16 %v570, %v568
      %v619 = vpack.c.b16 %v571, %v569
      %v620 = vpack.c.b16 %v574, %v572
      %v621 = vpack.c.b16 %v575, %v573
      %v622 = vpack.c.b16 %v578, %v576
      %v623 = vpack.c.b16 %v579, %v577
      %v624 = vpack.c.b16 %v582, %v580
      %v625 = vpack.c.b16 %v583, %v581
      %v626 = vpack.c.b16 %v586, %v584
      %v627 = vpack.c.b16 %v587, %v585
      %v628 = vpack.c.b16 %v590, %v588
      %v629 = vpack.c.b16 %v591, %v589
      %v630 = vpack.c.b16 %v594, %v592
      %v631 = vpack.c.b16 %v595, %v593
      %v632 = vpack.c.b16 %v598, %v596
      %v633 = vpack.c.b16 %v599, %v597
      %v634 = vpack.c.b16 %v602, %v600
      %v635 = vpack.c.b16 %v603, %v601
      %668 = vmatprep.subr.bf16.mxu0 %v619
      %669 = vmatpush1.bf16.msra.mxu0 %v618
      %670 = vmatprep.subr.bf16.mxu0 %v617
      %671 = vmatpush1.bf16.msra.mxu0 %v616
      %672 = vmatprep.subr.bf16.mxu0 %v615
      %673 = vmatpush1.bf16.msra.mxu0 %v614
      %674 = vmatprep.subr.bf16.mxu0 %v613
      %675 = vmatpush1.bf16.msra.mxu0 %v612
      %676 = vmatprep.subr.bf16.mxu0 %v611
      %677 = vmatpush1.bf16.msra.mxu0 %v610
      %678 = vmatprep.subr.bf16.mxu0 %v609
      %679 = vmatpush1.bf16.msra.mxu0 %v608
      %680 = vmatprep.subr.bf16.mxu0 %v607
      %681 = vmatpush1.bf16.msra.mxu0 %v606
      %682 = vmatprep.subr.bf16.mxu0 %v605
      %683 = vmatpush1.bf16.msra.mxu0 %v604
      %684 = vmatprep.subr.bf16.mxu0 %v635
      %685 = vmatpush2.bf16.msra.mxu0 %v634
      %686 = vmatprep.subr.bf16.mxu0 %v633
      %687 = vmatpush2.bf16.msra.mxu0 %v632
      %688 = vmatprep.subr.bf16.mxu0 %v631
      %689 = vmatpush2.bf16.msra.mxu0 %v630
      %690 = vmatprep.subr.bf16.mxu0 %v629
      %691 = vmatpush2.bf16.msra.mxu0 %v628
      %692 = vmatprep.subr.bf16.mxu0 %v627
      %693 = vmatpush2.bf16.msra.mxu0 %v626
      %694 = vmatprep.subr.bf16.mxu0 %v625
      %695 = vmatpush2.bf16.msra.mxu0 %v624
      %696 = vmatprep.subr.bf16.mxu0 %v623
      %697 = vmatpush2.bf16.msra.mxu0 %v622
      %698 = vmatprep.subr.bf16.mxu0 %v621
      %699 = vmatpush2.bf16.msra.mxu0 %v620
      %700 = vmatprep.mubr.bf16.mxu0 %v471
      %701 = vmatmul.mubr.bf16.gmra.mxu0 %v470
      %v702 = vpop.f32.mrf.mxu0
      %v703 = vadd.f32 0.0, %v702
      %v704 = vpop.f32.mrf.mxu0
      %v705 = vadd.f32 0.0, %v704
      %v706 = vpop.f32.mrf.mxu0
      %v707 = vpop.f32.mrf.mxu0
      %708 = vdwg.mxu0
      %v709 = vpack.c.bf16 %v703, %v703
      %v710 = vpack.c.bf16 %v705, %v705
      %v711 = vld [vmem:[%s4] sm:$0xf]
      %v712 = vld [vmem:[%s4 + $0x4] sm:$0xf]
      %v715 = vunpack.c.l.b16 %v711
      %v716 = vunpack.c.l.b16 %v712
      %v717 = vpack.c.b16 %v716, %v715
      %vm718 = vcmask 23552
      %v720 = vsel %vm718, %v717, 0
      %vm722 = vcmask 1040384
      %vm723 = vcmask 1041408
      %v724 = vsel %vm722, 4294967295, 65535
      %v725 = vsel %vm723, %v724, 0
      %v727 = vand.u32 %v709, %v725
      %v730 = vand.u32 %v710, %v725
      %732 = vmatprep.subr.bf16.mxu0 0
      %733 = vmatpush1.bf16.msra.mxu0 0
      %734 = vmatprep.subr.bf16.mxu0 0
      %735 = vmatpush1.bf16.msra.mxu0 0
      %736 = vmatprep.subr.bf16.mxu0 0
      %737 = vmatpush1.bf16.msra.mxu0 0
      %738 = vmatprep.subr.bf16.mxu0 0
      %739 = vmatpush1.bf16.msra.mxu0 0
      %740 = vmatprep.subr.bf16.mxu0 0
      %741 = vmatpush1.bf16.msra.mxu0 0
      %742 = vmatprep.subr.bf16.mxu0 0
      %743 = vmatpush1.bf16.msra.mxu0 0
      %744 = vmatprep.subr.bf16.mxu0 0
      %745 = vmatpush1.bf16.msra.mxu0 0
      %746 = vmatprep.subr.bf16.mxu0 %v730
      %747 = vmatpush1.bf16.msra.mxu0 %v727
      %748 = vmatprep.subr.bf16.mxu0 0
      %749 = vmatpush2.bf16.msra.mxu0 0
      %750 = vmatprep.subr.bf16.mxu0 0
      %751 = vmatpush2.bf16.msra.mxu0 0
      %752 = vmatprep.subr.bf16.mxu0 0
      %753 = vmatpush2.bf16.msra.mxu0 0
      %754 = vmatprep.subr.bf16.mxu0 0
      %755 = vmatpush2.bf16.msra.mxu0 0
      %756 = vmatprep.subr.bf16.mxu0 0
      %757 = vmatpush2.bf16.msra.mxu0 0
      %758 = vmatprep.subr.bf16.mxu0 0
      %759 = vmatpush2.bf16.msra.mxu0 0
      %760 = vmatprep.subr.bf16.mxu0 0
      %761 = vmatpush2.bf16.msra.mxu0 0
      %762 = vmatprep.subr.bf16.mxu0 0
      %763 = vmatpush2.bf16.msra.mxu0 0
      %764 = vmatprep.mubr.bf16.mxu0 0
      %765 = vmatmul.mubr.bf16.gmra.mxu0 %v720
      %v766 = vpop.f32.mrf.mxu0
      %v767 = vadd.f32 0.0, %v766
      %v768 = vpop.f32.mrf.mxu0
      %v769 = vadd.f32 0.0, %v768
      %v770 = vpop.f32.mrf.mxu0
      %v771 = vadd.f32 0.0, %v770
      %v772 = vpop.f32.mrf.mxu0
      %v773 = vadd.f32 0.0, %v772
      %774 = vdwg.mxu0
      %v775 = vadd.f32 %v472, %v767
      %v776 = vadd.f32 %v473, %v769
      %v777 = vadd.f32 %v474, %v771
      %v778 = vadd.f32 %v475, %v773
      %s779 = scalar_lea.vmem %s3, 256
      %v780 = vld [vmem:[%s779] sm:$0xff]
      %v781 = vld [vmem:[%s779 + $0x8] sm:$0xff]
      %v782 = vld [vmem:[%s779 + $0x10] sm:$0xff]
      %v783 = vld [vmem:[%s779 + $0x18] sm:$0xff]
      %v784 = vld [vmem:[%s779 + $0x20] sm:$0xff]
      %v785 = vld [vmem:[%s779 + $0x28] sm:$0xff]
      %v786 = vld [vmem:[%s779 + $0x30] sm:$0xff]
      %v787 = vld [vmem:[%s779 + $0x38] sm:$0xff]
      %v788 = vld [vmem:[%s779 + $0x40] sm:$0xff]
      %v789 = vld [vmem:[%s779 + $0x48] sm:$0xff]
      %v790 = vld [vmem:[%s779 + $0x50] sm:$0xff]
      %v791 = vld [vmem:[%s779 + $0x58] sm:$0xff]
      %v792 = vld [vmem:[%s779 + $0x60] sm:$0xff]
      %v793 = vld [vmem:[%s779 + $0x68] sm:$0xff]
      %v794 = vld [vmem:[%s779 + $0x70] sm:$0xff]
      %v795 = vld [vmem:[%s779 + $0x78] sm:$0xff]
      %v796 = vld [vmem:[%s779 + $0x80] sm:$0xff]
      %v797 = vld [vmem:[%s779 + $0x88] sm:$0xff]
      %v798 = vld [vmem:[%s779 + $0x90] sm:$0xff]
      %v799 = vld [vmem:[%s779 + $0x98] sm:$0xff]
      %v800 = vld [vmem:[%s779 + $0xa0] sm:$0xff]
      %v801 = vld [vmem:[%s779 + $0xa8] sm:$0xff]
      %v802 = vld [vmem:[%s779 + $0xb0] sm:$0xff]
      %v803 = vld [vmem:[%s779 + $0xb8] sm:$0xff]
      %v804 = vld [vmem:[%s779 + $0xc0] sm:$0xff]
      %v805 = vld [vmem:[%s779 + $0xc8] sm:$0xff]
      %v806 = vld [vmem:[%s779 + $0xd0] sm:$0xff]
      %v807 = vld [vmem:[%s779 + $0xd8] sm:$0xff]
      %v808 = vld [vmem:[%s779 + $0xe0] sm:$0xff]
      %v809 = vld [vmem:[%s779 + $0xe8] sm:$0xff]
      %v810 = vld [vmem:[%s779 + $0xf0] sm:$0xff]
      %v811 = vld [vmem:[%s779 + $0xf8] sm:$0xff]
      %v844 = vunpack.c.l.b16 %v780
      %v845 = vunpack.c.h.b16 %v780
      %v846 = vunpack.c.l.b16 %v781
      %v847 = vunpack.c.h.b16 %v781
      %v848 = vunpack.c.l.b16 %v782
      %v849 = vunpack.c.h.b16 %v782
      %v850 = vunpack.c.l.b16 %v783
      %v851 = vunpack.c.h.b16 %v783
      %v852 = vunpack.c.l.b16 %v784
      %v853 = vunpack.c.h.b16 %v784
      %v854 = vunpack.c.l.b16 %v785
      %v855 = vunpack.c.h.b16 %v785
      %v856 = vunpack.c.l.b16 %v786
      %v857 = vunpack.c.h.b16 %v786
      %v858 = vunpack.c.l.b16 %v787
      %v859 = vunpack.c.h.b16 %v787
      %v860 = vunpack.c.l.b16 %v788
      %v861 = vunpack.c.h.b16 %v788
      %v862 = vunpack.c.l.b16 %v789
      %v863 = vunpack.c.h.b16 %v789
      %v864 = vunpack.c.l.b16 %v790
      %v865 = vunpack.c.h.b16 %v790
      %v866 = vunpack.c.l.b16 %v791
      %v867 = vunpack.c.h.b16 %v791
      %v868 = vunpack.c.l.b16 %v792
      %v869 = vunpack.c.h.b16 %v792
      %v870 = vunpack.c.l.b16 %v793
      %v871 = vunpack.c.h.b16 %v793
      %v872 = vunpack.c.l.b16 %v794
      %v873 = vunpack.c.h.b16 %v794
      %v874 = vunpack.c.l.b16 %v795
      %v875 = vunpack.c.h.b16 %v795
      %v876 = vunpack.c.l.b16 %v796
      %v877 = vunpack.c.h.b16 %v796
      %v878 = vunpack.c.l.b16 %v797
      %v879 = vunpack.c.h.b16 %v797
      %v880 = vunpack.c.l.b16 %v798
      %v881 = vunpack.c.h.b16 %v798
      %v882 = vunpack.c.l.b16 %v799
      %v883 = vunpack.c.h.b16 %v799
      %v884 = vunpack.c.l.b16 %v800
      %v885 = vunpack.c.h.b16 %v800
      %v886 = vunpack.c.l.b16 %v801
      %v887 = vunpack.c.h.b16 %v801
      %v888 = vunpack.c.l.b16 %v802
      %v889 = vunpack.c.h.b16 %v802
      %v890 = vunpack.c.l.b16 %v803
      %v891 = vunpack.c.h.b16 %v803
      %v892 = vunpack.c.l.b16 %v804
      %v893 = vunpack.c.h.b16 %v804
      %v894 = vunpack.c.l.b16 %v805
      %v895 = vunpack.c.h.b16 %v805
      %v896 = vunpack.c.l.b16 %v806
      %v897 = vunpack.c.h.b16 %v806
      %v898 = vunpack.c.l.b16 %v807
      %v899 = vunpack.c.h.b16 %v807
      %v900 = vunpack.c.l.b16 %v808
      %v901 = vunpack.c.h.b16 %v808
      %v902 = vunpack.c.l.b16 %v809
      %v903 = vunpack.c.h.b16 %v809
      %v904 = vunpack.c.l.b16 %v810
      %v905 = vunpack.c.h.b16 %v810
      %v906 = vunpack.c.l.b16 %v811
      %v907 = vunpack.c.h.b16 %v811
      %v908 = vpack.c.b16 %v846, %v844
      %v909 = vpack.c.b16 %v847, %v845
      %v910 = vpack.c.b16 %v850, %v848
      %v911 = vpack.c.b16 %v851, %v849
      %v912 = vpack.c.b16 %v854, %v852
      %v913 = vpack.c.b16 %v855, %v853
      %v914 = vpack.c.b16 %v858, %v856
      %v915 = vpack.c.b16 %v859, %v857
      %v916 = vpack.c.b16 %v862, %v860
      %v917 = vpack.c.b16 %v863, %v861
      %v918 = vpack.c.b16 %v866, %v864
      %v919 = vpack.c.b16 %v867, %v865
      %v920 = vpack.c.b16 %v870, %v868
      %v921 = vpack.c.b16 %v871, %v869
      %v922 = vpack.c.b16 %v874, %v872
      %v923 = vpack.c.b16 %v875, %v873
      %v924 = vpack.c.b16 %v878, %v876
      %v925 = vpack.c.b16 %v879, %v877
      %v926 = vpack.c.b16 %v882, %v880
      %v927 = vpack.c.b16 %v883, %v881
      %v928 = vpack.c.b16 %v886, %v884
      %v929 = vpack.c.b16 %v887, %v885
      %v930 = vpack.c.b16 %v890, %v888
      %v931 = vpack.c.b16 %v891, %v889
      %v932 = vpack.c.b16 %v894, %v892
      %v933 = vpack.c.b16 %v895, %v893
      %v934 = vpack.c.b16 %v898, %v896
      %v935 = vpack.c.b16 %v899, %v897
      %v936 = vpack.c.b16 %v902, %v900
      %v937 = vpack.c.b16 %v903, %v901
      %v938 = vpack.c.b16 %v906, %v904
      %v939 = vpack.c.b16 %v907, %v905
      %972 = vmatprep.subr.bf16.mxu0 %v923
      %973 = vmatpush1.bf16.msra.mxu0 %v922
      %974 = vmatprep.subr.bf16.mxu0 %v921
      %975 = vmatpush1.bf16.msra.mxu0 %v920
      %976 = vmatprep.subr.bf16.mxu0 %v919
      %977 = vmatpush1.bf16.msra.mxu0 %v918
      %978 = vmatprep.subr.bf16.mxu0 %v917
      %979 = vmatpush1.bf16.msra.mxu0 %v916
      %980 = vmatprep.subr.bf16.mxu0 %v915
      %981 = vmatpush1.bf16.msra.mxu0 %v914
      %982 = vmatprep.subr.bf16.mxu0 %v913
      %983 = vmatpush1.bf16.msra.mxu0 %v912
      %984 = vmatprep.subr.bf16.mxu0 %v911
      %985 = vmatpush1.bf16.msra.mxu0 %v910
      %986 = vmatprep.subr.bf16.mxu0 %v909
      %987 = vmatpush1.bf16.msra.mxu0 %v908
      %988 = vmatprep.subr.bf16.mxu0 %v939
      %989 = vmatpush2.bf16.msra.mxu0 %v938
      %990 = vmatprep.subr.bf16.mxu0 %v937
      %991 = vmatpush2.bf16.msra.mxu0 %v936
      %992 = vmatprep.subr.bf16.mxu0 %v935
      %993 = vmatpush2.bf16.msra.mxu0 %v934
      %994 = vmatprep.subr.bf16.mxu0 %v933
      %995 = vmatpush2.bf16.msra.mxu0 %v932
      %996 = vmatprep.subr.bf16.mxu0 %v931
      %997 = vmatpush2.bf16.msra.mxu0 %v930
      %998 = vmatprep.subr.bf16.mxu0 %v929
      %999 = vmatpush2.bf16.msra.mxu0 %v928
      %1000 = vmatprep.subr.bf16.mxu0 %v927
      %1001 = vmatpush2.bf16.msra.mxu0 %v926
      %1002 = vmatprep.subr.bf16.mxu0 %v925
      %1003 = vmatpush2.bf16.msra.mxu0 %v924
      %1004 = vmatprep.mubr.bf16.mxu0 %v471
      %1005 = vmatmul.mubr.bf16.gmra.mxu0 %v470
      %v1006 = vpop.f32.mrf.mxu0
      %v1007 = vadd.f32 0.0, %v1006
      %v1008 = vpop.f32.mrf.mxu0
      %v1009 = vadd.f32 0.0, %v1008
      %v1010 = vpop.f32.mrf.mxu0
      %v1011 = vpop.f32.mrf.mxu0
      %1012 = vdwg.mxu0
      %v1013 = vpack.c.bf16 %v1007, %v1007
      %v1014 = vpack.c.bf16 %v1009, %v1009
      %s1015 = scalar_lea.vmem %s4, 8
      %v1016 = vld [vmem:[%s1015] sm:$0xf]
      %v1017 = vld [vmem:[%s1015 + $0x4] sm:$0xf]
      %v1020 = vunpack.c.l.b16 %v1016
      %v1021 = vunpack.c.l.b16 %v1017
      %v1022 = vpack.c.b16 %v1021, %v1020
      %v1024 = vsel %vm718, %v1022, 0
      %v1027 = vand.u32 %v1013, %v725
      %v1030 = vand.u32 %v1014, %v725
      %1032 = vmatprep.subr.bf16.mxu0 0
      %1033 = vmatpush1.bf16.msra.mxu0 0
      %1034 = vmatprep.subr.bf16.mxu0 0
      %1035 = vmatpush1.bf16.msra.mxu0 0
      %1036 = vmatprep.subr.bf16.mxu0 0
      %1037 = vmatpush1.bf16.msra.mxu0 0
      %1038 = vmatprep.subr.bf16.mxu0 0
      %1039 = vmatpush1.bf16.msra.mxu0 0
      %1040 = vmatprep.subr.bf16.mxu0 0
      %1041 = vmatpush1.bf16.msra.mxu0 0
      %1042 = vmatprep.subr.bf16.mxu0 0
      %1043 = vmatpush1.bf16.msra.mxu0 0
      %1044 = vmatprep.subr.bf16.mxu0 0
      %1045 = vmatpush1.bf16.msra.mxu0 0
      %1046 = vmatprep.subr.bf16.mxu0 %v1030
      %1047 = vmatpush1.bf16.msra.mxu0 %v1027
      %1048 = vmatprep.subr.bf16.mxu0 0
      %1049 = vmatpush2.bf16.msra.mxu0 0
      %1050 = vmatprep.subr.bf16.mxu0 0
      %1051 = vmatpush2.bf16.msra.mxu0 0
      %1052 = vmatprep.subr.bf16.mxu0 0
      %1053 = vmatpush2.bf16.msra.mxu0 0
      %1054 = vmatprep.subr.bf16.mxu0 0
      %1055 = vmatpush2.bf16.msra.mxu0 0
      %1056 = vmatprep.subr.bf16.mxu0 0
      %1057 = vmatpush2.bf16.msra.mxu0 0
      %1058 = vmatprep.subr.bf16.mxu0 0
      %1059 = vmatpush2.bf16.msra.mxu0 0
      %1060 = vmatprep.subr.bf16.mxu0 0
      %1061 = vmatpush2.bf16.msra.mxu0 0
      %1062 = vmatprep.subr.bf16.mxu0 0
      %1063 = vmatpush2.bf16.msra.mxu0 0
      %1064 = vmatprep.mubr.bf16.mxu0 0
      %1065 = vmatmul.mubr.bf16.gmra.mxu0 %v1024
      %v1066 = vpop.f32.mrf.mxu0
      %v1067 = vadd.f32 0.0, %v1066
      %v1068 = vpop.f32.mrf.mxu0
      %v1069 = vadd.f32 0.0, %v1068
      %v1070 = vpop.f32.mrf.mxu0
      %v1071 = vadd.f32 0.0, %v1070
      %v1072 = vpop.f32.mrf.mxu0
      %v1073 = vadd.f32 0.0, %v1072
      %1074 = vdwg.mxu0
      %v1075 = vadd.f32 %v775, %v1067
      %v1076 = vadd.f32 %v776, %v1069
      %v1077 = vadd.f32 %v777, %v1071
      %v1078 = vadd.f32 %v778, %v1073
      %s1079 = scalar_lea.vmem %s3, 512
      %v1080 = vld [vmem:[%s1079] sm:$0xff]
      %v1081 = vld [vmem:[%s1079 + $0x8] sm:$0xff]
      %v1082 = vld [vmem:[%s1079 + $0x10] sm:$0xff]
      %v1083 = vld [vmem:[%s1079 + $0x18] sm:$0xff]
      %v1084 = vld [vmem:[%s1079 + $0x20] sm:$0xff]
      %v1085 = vld [vmem:[%s1079 + $0x28] sm:$0xff]
      %v1086 = vld [vmem:[%s1079 + $0x30] sm:$0xff]
      %v1087 = vld [vmem:[%s1079 + $0x38] sm:$0xff]
      %v1088 = vld [vmem:[%s1079 + $0x40] sm:$0xff]
      %v1089 = vld [vmem:[%s1079 + $0x48] sm:$0xff]
      %v1090 = vld [vmem:[%s1079 + $0x50] sm:$0xff]
      %v1091 = vld [vmem:[%s1079 + $0x58] sm:$0xff]
      %v1092 = vld [vmem:[%s1079 + $0x60] sm:$0xff]
      %v1093 = vld [vmem:[%s1079 + $0x68] sm:$0xff]
      %v1094 = vld [vmem:[%s1079 + $0x70] sm:$0xff]
      %v1095 = vld [vmem:[%s1079 + $0x78] sm:$0xff]
      %v1096 = vld [vmem:[%s1079 + $0x80] sm:$0xff]
      %v1097 = vld [vmem:[%s1079 + $0x88] sm:$0xff]
      %v1098 = vld [vmem:[%s1079 + $0x90] sm:$0xff]
      %v1099 = vld [vmem:[%s1079 + $0x98] sm:$0xff]
      %v1100 = vld [vmem:[%s1079 + $0xa0] sm:$0xff]
      %v1101 = vld [vmem:[%s1079 + $0xa8] sm:$0xff]
      %v1102 = vld [vmem:[%s1079 + $0xb0] sm:$0xff]
      %v1103 = vld [vmem:[%s1079 + $0xb8] sm:$0xff]
      %v1104 = vld [vmem:[%s1079 + $0xc0] sm:$0xff]
      %v1105 = vld [vmem:[%s1079 + $0xc8] sm:$0xff]
      %v1106 = vld [vmem:[%s1079 + $0xd0] sm:$0xff]
      %v1107 = vld [vmem:[%s1079 + $0xd8] sm:$0xff]
      %v1108 = vld [vmem:[%s1079 + $0xe0] sm:$0xff]
      %v1109 = vld [vmem:[%s1079 + $0xe8] sm:$0xff]
      %v1110 = vld [vmem:[%s1079 + $0xf0] sm:$0xff]
      %v1111 = vld [vmem:[%s1079 + $0xf8] sm:$0xff]
      %v1144 = vunpack.c.l.b16 %v1080
      %v1145 = vunpack.c.h.b16 %v1080
      %v1146 = vunpack.c.l.b16 %v1081
      %v1147 = vunpack.c.h.b16 %v1081
      %v1148 = vunpack.c.l.b16 %v1082
      %v1149 = vunpack.c.h.b16 %v1082
      %v1150 = vunpack.c.l.b16 %v1083
      %v1151 = vunpack.c.h.b16 %v1083
      %v1152 = vunpack.c.l.b16 %v1084
      %v1153 = vunpack.c.h.b16 %v1084
      %v1154 = vunpack.c.l.b16 %v1085
      %v1155 = vunpack.c.h.b16 %v1085
      %v1156 = vunpack.c.l.b16 %v1086
      %v1157 = vunpack.c.h.b16 %v1086
      %v1158 = vunpack.c.l.b16 %v1087
      %v1159 = vunpack.c.h.b16 %v1087
      %v1160 = vunpack.c.l.b16 %v1088
      %v1161 = vunpack.c.h.b16 %v1088
      %v1162 = vunpack.c.l.b16 %v1089
      %v1163 = vunpack.c.h.b16 %v1089
      %v1164 = vunpack.c.l.b16 %v1090
      %v1165 = vunpack.c.h.b16 %v1090
      %v1166 = vunpack.c.l.b16 %v1091
      %v1167 = vunpack.c.h.b16 %v1091
      %v1168 = vunpack.c.l.b16 %v1092
      %v1169 = vunpack.c.h.b16 %v1092
      %v1170 = vunpack.c.l.b16 %v1093
      %v1171 = vunpack.c.h.b16 %v1093
      %v1172 = vunpack.c.l.b16 %v1094
      %v1173 = vunpack.c.h.b16 %v1094
      %v1174 = vunpack.c.l.b16 %v1095
      %v1175 = vunpack.c.h.b16 %v1095
      %v1176 = vunpack.c.l.b16 %v1096
      %v1177 = vunpack.c.h.b16 %v1096
      %v1178 = vunpack.c.l.b16 %v1097
      %v1179 = vunpack.c.h.b16 %v1097
      %v1180 = vunpack.c.l.b16 %v1098
      %v1181 = vunpack.c.h.b16 %v1098
      %v1182 = vunpack.c.l.b16 %v1099
      %v1183 = vunpack.c.h.b16 %v1099
      %v1184 = vunpack.c.l.b16 %v1100
      %v1185 = vunpack.c.h.b16 %v1100
      %v1186 = vunpack.c.l.b16 %v1101
      %v1187 = vunpack.c.h.b16 %v1101
      %v1188 = vunpack.c.l.b16 %v1102
      %v1189 = vunpack.c.h.b16 %v1102
      %v1190 = vunpack.c.l.b16 %v1103
      %v1191 = vunpack.c.h.b16 %v1103
      %v1192 = vunpack.c.l.b16 %v1104
      %v1193 = vunpack.c.h.b16 %v1104
      %v1194 = vunpack.c.l.b16 %v1105
      %v1195 = vunpack.c.h.b16 %v1105
      %v1196 = vunpack.c.l.b16 %v1106
      %v1197 = vunpack.c.h.b16 %v1106
      %v1198 = vunpack.c.l.b16 %v1107
      %v1199 = vunpack.c.h.b16 %v1107
      %v1200 = vunpack.c.l.b16 %v1108
      %v1201 = vunpack.c.h.b16 %v1108
      %v1202 = vunpack.c.l.b16 %v1109
      %v1203 = vunpack.c.h.b16 %v1109
      %v1204 = vunpack.c.l.b16 %v1110
      %v1205 = vunpack.c.h.b16 %v1110
      %v1206 = vunpack.c.l.b16 %v1111
      %v1207 = vunpack.c.h.b16 %v1111
      %v1208 = vpack.c.b16 %v1146, %v1144
      %v1209 = vpack.c.b16 %v1147, %v1145
      %v1210 = vpack.c.b16 %v1150, %v1148
      %v1211 = vpack.c.b16 %v1151, %v1149
      %v1212 = vpack.c.b16 %v1154, %v1152
      %v1213 = vpack.c.b16 %v1155, %v1153
      %v1214 = vpack.c.b16 %v1158, %v1156
      %v1215 = vpack.c.b16 %v1159, %v1157
      %v1216 = vpack.c.b16 %v1162, %v1160
      %v1217 = vpack.c.b16 %v1163, %v1161
      %v1218 = vpack.c.b16 %v1166, %v1164
      %v1219 = vpack.c.b16 %v1167, %v1165
      %v1220 = vpack.c.b16 %v1170, %v1168
      %v1221 = vpack.c.b16 %v1171, %v1169
      %v1222 = vpack.c.b16 %v1174, %v1172
      %v1223 = vpack.c.b16 %v1175, %v1173
      %v1224 = vpack.c.b16 %v1178, %v1176
      %v1225 = vpack.c.b16 %v1179, %v1177
      %v1226 = vpack.c.b16 %v1182, %v1180
      %v1227 = vpack.c.b16 %v1183, %v1181
      %v1228 = vpack.c.b16 %v1186, %v1184
      %v1229 = vpack.c.b16 %v1187, %v1185
      %v1230 = vpack.c.b16 %v1190, %v1188
      %v1231 = vpack.c.b16 %v1191, %v1189
      %v1232 = vpack.c.b16 %v1194, %v1192
      %v1233 = vpack.c.b16 %v1195, %v1193
      %v1234 = vpack.c.b16 %v1198, %v1196
      %v1235 = vpack.c.b16 %v1199, %v1197
      %v1236 = vpack.c.b16 %v1202, %v1200
      %v1237 = vpack.c.b16 %v1203, %v1201
      %v1238 = vpack.c.b16 %v1206, %v1204
      %v1239 = vpack.c.b16 %v1207, %v1205
      %1272 = vmatprep.subr.bf16.mxu0 %v1223
      %1273 = vmatpush1.bf16.msra.mxu0 %v1222
      %1274 = vmatprep.subr.bf16.mxu0 %v1221
      %1275 = vmatpush1.bf16.msra.mxu0 %v1220
      %1276 = vmatprep.subr.bf16.mxu0 %v1219
      %1277 = vmatpush1.bf16.msra.mxu0 %v1218
      %1278 = vmatprep.subr.bf16.mxu0 %v1217
      %1279 = vmatpush1.bf16.msra.mxu0 %v1216
      %1280 = vmatprep.subr.bf16.mxu0 %v1215
      %1281 = vmatpush1.bf16.msra.mxu0 %v1214
      %1282 = vmatprep.subr.bf16.mxu0 %v1213
      %1283 = vmatpush1.bf16.msra.mxu0 %v1212
      %1284 = vmatprep.subr.bf16.mxu0 %v1211
      %1285 = vmatpush1.bf16.msra.mxu0 %v1210
      %1286 = vmatprep.subr.bf16.mxu0 %v1209
      %1287 = vmatpush1.bf16.msra.mxu0 %v1208
      %1288 = vmatprep.subr.bf16.mxu0 %v1239
      %1289 = vmatpush2.bf16.msra.mxu0 %v1238
      %1290 = vmatprep.subr.bf16.mxu0 %v1237
      %1291 = vmatpush2.bf16.msra.mxu0 %v1236
      %1292 = vmatprep.subr.bf16.mxu0 %v1235
      %1293 = vmatpush2.bf16.msra.mxu0 %v1234
      %1294 = vmatprep.subr.bf16.mxu0 %v1233
      %1295 = vmatpush2.bf16.msra.mxu0 %v1232
      %1296 = vmatprep.subr.bf16.mxu0 %v1231
      %1297 = vmatpush2.bf16.msra.mxu0 %v1230
      %1298 = vmatprep.subr.bf16.mxu0 %v1229
      %1299 = vmatpush2.bf16.msra.mxu0 %v1228
      %1300 = vmatprep.subr.bf16.mxu0 %v1227
      %1301 = vmatpush2.bf16.msra.mxu0 %v1226
      %1302 = vmatprep.subr.bf16.mxu0 %v1225
      %1303 = vmatpush2.bf16.msra.mxu0 %v1224
      %1304 = vmatprep.mubr.bf16.mxu0 %v471
      %1305 = vmatmul.mubr.bf16.gmra.mxu0 %v470
      %v1306 = vpop.f32.mrf.mxu0
      %v1307 = vadd.f32 0.0, %v1306
      %v1308 = vpop.f32.mrf.mxu0
      %v1309 = vadd.f32 0.0, %v1308
      %v1310 = vpop.f32.mrf.mxu0
      %v1311 = vpop.f32.mrf.mxu0
      %1312 = vdwg.mxu0
      %v1313 = vpack.c.bf16 %v1307, %v1307
      %v1314 = vpack.c.bf16 %v1309, %v1309
      %s1315 = scalar_lea.vmem %s4, 16
      %v1316 = vld [vmem:[%s1315] sm:$0xf]
      %v1317 = vld [vmem:[%s1315 + $0x4] sm:$0xf]
      %v1320 = vunpack.c.l.b16 %v1316
      %v1321 = vunpack.c.l.b16 %v1317
      %v1322 = vpack.c.b16 %v1321, %v1320
      %v1324 = vsel %vm718, %v1322, 0
      %v1327 = vand.u32 %v1313, %v725
      %v1330 = vand.u32 %v1314, %v725
      %1332 = vmatprep.subr.bf16.mxu0 0
      %1333 = vmatpush1.bf16.msra.mxu0 0
      %1334 = vmatprep.subr.bf16.mxu0 0
      %1335 = vmatpush1.bf16.msra.mxu0 0
      %1336 = vmatprep.subr.bf16.mxu0 0
      %1337 = vmatpush1.bf16.msra.mxu0 0
      %1338 = vmatprep.subr.bf16.mxu0 0
      %1339 = vmatpush1.bf16.msra.mxu0 0
      %1340 = vmatprep.subr.bf16.mxu0 0
      %1341 = vmatpush1.bf16.msra.mxu0 0
      %1342 = vmatprep.subr.bf16.mxu0 0
      %1343 = vmatpush1.bf16.msra.mxu0 0
      %1344 = vmatprep.subr.bf16.mxu0 0
      %1345 = vmatpush1.bf16.msra.mxu0 0
      %1346 = vmatprep.subr.bf16.mxu0 %v1330
      %1347 = vmatpush1.bf16.msra.mxu0 %v1327
      %1348 = vmatprep.subr.bf16.mxu0 0
      %1349 = vmatpush2.bf16.msra.mxu0 0
      %1350 = vmatprep.subr.bf16.mxu0 0
      %1351 = vmatpush2.bf16.msra.mxu0 0
      %1352 = vmatprep.subr.bf16.mxu0 0
      %1353 = vmatpush2.bf16.msra.mxu0 0
      %1354 = vmatprep.subr.bf16.mxu0 0
      %1355 = vmatpush2.bf16.msra.mxu0 0
      %1356 = vmatprep.subr.bf16.mxu0 0
      %1357 = vmatpush2.bf16.msra.mxu0 0
      %1358 = vmatprep.subr.bf16.mxu0 0
      %1359 = vmatpush2.bf16.msra.mxu0 0
      %1360 = vmatprep.subr.bf16.mxu0 0
      %1361 = vmatpush2.bf16.msra.mxu0 0
      %1362 = vmatprep.subr.bf16.mxu0 0
      %1363 = vmatpush2.bf16.msra.mxu0 0
      %1364 = vmatprep.mubr.bf16.mxu0 0
      %1365 = vmatmul.mubr.bf16.gmra.mxu0 %v1324
      %v1366 = vpop.f32.mrf.mxu0
      %v1367 = vadd.f32 0.0, %v1366
      %v1368 = vpop.f32.mrf.mxu0
      %v1369 = vadd.f32 0.0, %v1368
      %v1370 = vpop.f32.mrf.mxu0
      %v1371 = vadd.f32 0.0, %v1370
      %v1372 = vpop.f32.mrf.mxu0
      %v1373 = vadd.f32 0.0, %v1372
      %1374 = vdwg.mxu0
      %v1375 = vadd.f32 %v1075, %v1367
      %v1376 = vadd.f32 %v1076, %v1369
      %v1377 = vadd.f32 %v1077, %v1371
      %v1378 = vadd.f32 %v1078, %v1373
      %s1379 = scalar_lea.vmem %s3, 768
      %v1380 = vld [vmem:[%s1379] sm:$0xff]
      %v1381 = vld [vmem:[%s1379 + $0x8] sm:$0xff]
      %v1382 = vld [vmem:[%s1379 + $0x10] sm:$0xff]
      %v1383 = vld [vmem:[%s1379 + $0x18] sm:$0xff]
      %v1384 = vld [vmem:[%s1379 + $0x20] sm:$0xff]
      %v1385 = vld [vmem:[%s1379 + $0x28] sm:$0xff]
      %v1386 = vld [vmem:[%s1379 + $0x30] sm:$0xff]
      %v1387 = vld [vmem:[%s1379 + $0x38] sm:$0xff]
      %v1388 = vld [vmem:[%s1379 + $0x40] sm:$0xff]
      %v1389 = vld [vmem:[%s1379 + $0x48] sm:$0xff]
      %v1390 = vld [vmem:[%s1379 + $0x50] sm:$0xff]
      %v1391 = vld [vmem:[%s1379 + $0x58] sm:$0xff]
      %v1392 = vld [vmem:[%s1379 + $0x60] sm:$0xff]
      %v1393 = vld [vmem:[%s1379 + $0x68] sm:$0xff]
      %v1394 = vld [vmem:[%s1379 + $0x70] sm:$0xff]
      %v1395 = vld [vmem:[%s1379 + $0x78] sm:$0xff]
      %v1396 = vld [vmem:[%s1379 + $0x80] sm:$0xff]
      %v1397 = vld [vmem:[%s1379 + $0x88] sm:$0xff]
      %v1398 = vld [vmem:[%s1379 + $0x90] sm:$0xff]
      %v1399 = vld [vmem:[%s1379 + $0x98] sm:$0xff]
      %v1400 = vld [vmem:[%s1379 + $0xa0] sm:$0xff]
      %v1401 = vld [vmem:[%s1379 + $0xa8] sm:$0xff]
      %v1402 = vld [vmem:[%s1379 + $0xb0] sm:$0xff]
      %v1403 = vld [vmem:[%s1379 + $0xb8] sm:$0xff]
      %v1404 = vld [vmem:[%s1379 + $0xc0] sm:$0xff]
      %v1405 = vld [vmem:[%s1379 + $0xc8] sm:$0xff]
      %v1406 = vld [vmem:[%s1379 + $0xd0] sm:$0xff]
      %v1407 = vld [vmem:[%s1379 + $0xd8] sm:$0xff]
      %v1408 = vld [vmem:[%s1379 + $0xe0] sm:$0xff]
      %v1409 = vld [vmem:[%s1379 + $0xe8] sm:$0xff]
      %v1410 = vld [vmem:[%s1379 + $0xf0] sm:$0xff]
      %v1411 = vld [vmem:[%s1379 + $0xf8] sm:$0xff]
      %v1444 = vunpack.c.l.b16 %v1380
      %v1445 = vunpack.c.h.b16 %v1380
      %v1446 = vunpack.c.l.b16 %v1381
      %v1447 = vunpack.c.h.b16 %v1381
      %v1448 = vunpack.c.l.b16 %v1382
      %v1449 = vunpack.c.h.b16 %v1382
      %v1450 = vunpack.c.l.b16 %v1383
      %v1451 = vunpack.c.h.b16 %v1383
      %v1452 = vunpack.c.l.b16 %v1384
      %v1453 = vunpack.c.h.b16 %v1384
      %v1454 = vunpack.c.l.b16 %v1385
      %v1455 = vunpack.c.h.b16 %v1385
      %v1456 = vunpack.c.l.b16 %v1386
      %v1457 = vunpack.c.h.b16 %v1386
      %v1458 = vunpack.c.l.b16 %v1387
      %v1459 = vunpack.c.h.b16 %v1387
      %v1460 = vunpack.c.l.b16 %v1388
      %v1461 = vunpack.c.h.b16 %v1388
      %v1462 = vunpack.c.l.b16 %v1389
      %v1463 = vunpack.c.h.b16 %v1389
      %v1464 = vunpack.c.l.b16 %v1390
      %v1465 = vunpack.c.h.b16 %v1390
      %v1466 = vunpack.c.l.b16 %v1391
      %v1467 = vunpack.c.h.b16 %v1391
      %v1468 = vunpack.c.l.b16 %v1392
      %v1469 = vunpack.c.h.b16 %v1392
      %v1470 = vunpack.c.l.b16 %v1393
      %v1471 = vunpack.c.h.b16 %v1393
      %v1472 = vunpack.c.l.b16 %v1394
      %v1473 = vunpack.c.h.b16 %v1394
      %v1474 = vunpack.c.l.b16 %v1395
      %v1475 = vunpack.c.h.b16 %v1395
      %v1476 = vunpack.c.l.b16 %v1396
      %v1477 = vunpack.c.h.b16 %v1396
      %v1478 = vunpack.c.l.b16 %v1397
      %v1479 = vunpack.c.h.b16 %v1397
      %v1480 = vunpack.c.l.b16 %v1398
      %v1481 = vunpack.c.h.b16 %v1398
      %v1482 = vunpack.c.l.b16 %v1399
      %v1483 = vunpack.c.h.b16 %v1399
      %v1484 = vunpack.c.l.b16 %v1400
      %v1485 = vunpack.c.h.b16 %v1400
      %v1486 = vunpack.c.l.b16 %v1401
      %v1487 = vunpack.c.h.b16 %v1401
      %v1488 = vunpack.c.l.b16 %v1402
      %v1489 = vunpack.c.h.b16 %v1402
      %v1490 = vunpack.c.l.b16 %v1403
      %v1491 = vunpack.c.h.b16 %v1403
      %v1492 = vunpack.c.l.b16 %v1404
      %v1493 = vunpack.c.h.b16 %v1404
      %v1494 = vunpack.c.l.b16 %v1405
      %v1495 = vunpack.c.h.b16 %v1405
      %v1496 = vunpack.c.l.b16 %v1406
      %v1497 = vunpack.c.h.b16 %v1406
      %v1498 = vunpack.c.l.b16 %v1407
      %v1499 = vunpack.c.h.b16 %v1407
      %v1500 = vunpack.c.l.b16 %v1408
      %v1501 = vunpack.c.h.b16 %v1408
      %v1502 = vunpack.c.l.b16 %v1409
      %v1503 = vunpack.c.h.b16 %v1409
      %v1504 = vunpack.c.l.b16 %v1410
      %v1505 = vunpack.c.h.b16 %v1410
      %v1506 = vunpack.c.l.b16 %v1411
      %v1507 = vunpack.c.h.b16 %v1411
      %v1508 = vpack.c.b16 %v1446, %v1444
      %v1509 = vpack.c.b16 %v1447, %v1445
      %v1510 = vpack.c.b16 %v1450, %v1448
      %v1511 = vpack.c.b16 %v1451, %v1449
      %v1512 = vpack.c.b16 %v1454, %v1452
      %v1513 = vpack.c.b16 %v1455, %v1453
      %v1514 = vpack.c.b16 %v1458, %v1456
      %v1515 = vpack.c.b16 %v1459, %v1457
      %v1516 = vpack.c.b16 %v1462, %v1460
      %v1517 = vpack.c.b16 %v1463, %v1461
      %v1518 = vpack.c.b16 %v1466, %v1464
      %v1519 = vpack.c.b16 %v1467, %v1465
      %v1520 = vpack.c.b16 %v1470, %v1468
      %v1521 = vpack.c.b16 %v1471, %v1469
      %v1522 = vpack.c.b16 %v1474, %v1472
      %v1523 = vpack.c.b16 %v1475, %v1473
      %v1524 = vpack.c.b16 %v1478, %v1476
      %v1525 = vpack.c.b16 %v1479, %v1477
      %v1526 = vpack.c.b16 %v1482, %v1480
      %v1527 = vpack.c.b16 %v1483, %v1481
      %v1528 = vpack.c.b16 %v1486, %v1484
      %v1529 = vpack.c.b16 %v1487, %v1485
      %v1530 = vpack.c.b16 %v1490, %v1488
      %v1531 = vpack.c.b16 %v1491, %v1489
      %v1532 = vpack.c.b16 %v1494, %v1492
      %v1533 = vpack.c.b16 %v1495, %v1493
      %v1534 = vpack.c.b16 %v1498, %v1496
      %v1535 = vpack.c.b16 %v1499, %v1497
      %v1536 = vpack.c.b16 %v1502, %v1500
      %v1537 = vpack.c.b16 %v1503, %v1501
      %v1538 = vpack.c.b16 %v1506, %v1504
      %v1539 = vpack.c.b16 %v1507, %v1505
      %1572 = vmatprep.subr.bf16.mxu0 %v1523
      %1573 = vmatpush1.bf16.msra.mxu0 %v1522
      %1574 = vmatprep.subr.bf16.mxu0 %v1521
      %1575 = vmatpush1.bf16.msra.mxu0 %v1520
      %1576 = vmatprep.subr.bf16.mxu0 %v1519
      %1577 = vmatpush1.bf16.msra.mxu0 %v1518
      %1578 = vmatprep.subr.bf16.mxu0 %v1517
      %1579 = vmatpush1.bf16.msra.mxu0 %v1516
      %1580 = vmatprep.subr.bf16.mxu0 %v1515
      %1581 = vmatpush1.bf16.msra.mxu0 %v1514
      %1582 = vmatprep.subr.bf16.mxu0 %v1513
      %1583 = vmatpush1.bf16.msra.mxu0 %v1512
      %1584 = vmatprep.subr.bf16.mxu0 %v1511
      %1585 = vmatpush1.bf16.msra.mxu0 %v1510
      %1586 = vmatprep.subr.bf16.mxu0 %v1509
      %1587 = vmatpush1.bf16.msra.mxu0 %v1508
      %1588 = vmatprep.subr.bf16.mxu0 %v1539
      %1589 = vmatpush2.bf16.msra.mxu0 %v1538
      %1590 = vmatprep.subr.bf16.mxu0 %v1537
      %1591 = vmatpush2.bf16.msra.mxu0 %v1536
      %1592 = vmatprep.subr.bf16.mxu0 %v1535
      %1593 = vmatpush2.bf16.msra.mxu0 %v1534
      %1594 = vmatprep.subr.bf16.mxu0 %v1533
      %1595 = vmatpush2.bf16.msra.mxu0 %v1532
      %1596 = vmatprep.subr.bf16.mxu0 %v1531
      %1597 = vmatpush2.bf16.msra.mxu0 %v1530
      %1598 = vmatprep.subr.bf16.mxu0 %v1529
      %1599 = vmatpush2.bf16.msra.mxu0 %v1528
      %1600 = vmatprep.subr.bf16.mxu0 %v1527
      %1601 = vmatpush2.bf16.msra.mxu0 %v1526
      %1602 = vmatprep.subr.bf16.mxu0 %v1525
      %1603 = vmatpush2.bf16.msra.mxu0 %v1524
      %1604 = vmatprep.mubr.bf16.mxu0 %v471
      %1605 = vmatmul.mubr.bf16.gmra.mxu0 %v470
      %v1606 = vpop.f32.mrf.mxu0
      %v1607 = vadd.f32 0.0, %v1606
      %v1608 = vpop.f32.mrf.mxu0
      %v1609 = vadd.f32 0.0, %v1608
      %v1610 = vpop.f32.mrf.mxu0
      %v1611 = vpop.f32.mrf.mxu0
      %1612 = vdwg.mxu0
      %v1613 = vpack.c.bf16 %v1607, %v1607
      %v1614 = vpack.c.bf16 %v1609, %v1609
      %s1615 = scalar_lea.vmem %s4, 24
      %v1616 = vld [vmem:[%s1615] sm:$0xf]
      %v1617 = vld [vmem:[%s1615 + $0x4] sm:$0xf]
      %v1620 = vunpack.c.l.b16 %v1616
      %v1621 = vunpack.c.l.b16 %v1617
      %v1622 = vpack.c.b16 %v1621, %v1620
      %v1624 = vsel %vm718, %v1622, 0
      %v1627 = vand.u32 %v1613, %v725
      %v1630 = vand.u32 %v1614, %v725
      %1632 = vmatprep.subr.bf16.mxu0 0
      %1633 = vmatpush1.bf16.msra.mxu0 0
      %1634 = vmatprep.subr.bf16.mxu0 0
      %1635 = vmatpush1.bf16.msra.mxu0 0
      %1636 = vmatprep.subr.bf16.mxu0 0
      %1637 = vmatpush1.bf16.msra.mxu0 0
      %1638 = vmatprep.subr.bf16.mxu0 0
      %1639 = vmatpush1.bf16.msra.mxu0 0
      %1640 = vmatprep.subr.bf16.mxu0 0
      %1641 = vmatpush1.bf16.msra.mxu0 0
      %1642 = vmatprep.subr.bf16.mxu0 0
      %1643 = vmatpush1.bf16.msra.mxu0 0
      %1644 = vmatprep.subr.bf16.mxu0 0
      %1645 = vmatpush1.bf16.msra.mxu0 0
      %1646 = vmatprep.subr.bf16.mxu0 %v1630
      %1647 = vmatpush1.bf16.msra.mxu0 %v1627
      %1648 = vmatprep.subr.bf16.mxu0 0
      %1649 = vmatpush2.bf16.msra.mxu0 0
      %1650 = vmatprep.subr.bf16.mxu0 0
      %1651 = vmatpush2.bf16.msra.mxu0 0
      %1652 = vmatprep.subr.bf16.mxu0 0
      %1653 = vmatpush2.bf16.msra.mxu0 0
      %1654 = vmatprep.subr.bf16.mxu0 0
      %1655 = vmatpush2.bf16.msra.mxu0 0
      %1656 = vmatprep.subr.bf16.mxu0 0
      %1657 = vmatpush2.bf16.msra.mxu0 0
      %1658 = vmatprep.subr.bf16.mxu0 0
      %1659 = vmatpush2.bf16.msra.mxu0 0
      %1660 = vmatprep.subr.bf16.mxu0 0
      %1661 = vmatpush2.bf16.msra.mxu0 0
      %1662 = vmatprep.subr.bf16.mxu0 0
      %1663 = vmatpush2.bf16.msra.mxu0 0
      %1664 = vmatprep.mubr.bf16.mxu0 0
      %1665 = vmatmul.mubr.bf16.gmra.mxu0 %v1624
      %v1666 = vpop.f32.mrf.mxu0
      %v1667 = vadd.f32 0.0, %v1666
      %v1668 = vpop.f32.mrf.mxu0
      %v1669 = vadd.f32 0.0, %v1668
      %v1670 = vpop.f32.mrf.mxu0
      %v1671 = vadd.f32 0.0, %v1670
      %v1672 = vpop.f32.mrf.mxu0
      %v1673 = vadd.f32 0.0, %v1672
      %1674 = vdwg.mxu0
      %v1675 = vadd.f32 %v1375, %v1667
      %v1676 = vadd.f32 %v1376, %v1669
      %v1677 = vadd.f32 %v1377, %v1671
      %v1678 = vadd.f32 %v1378, %v1673
      %s1679 = scalar_lea.vmem %s3, 1024
      %v1680 = vld [vmem:[%s1679] sm:$0xff]
      %v1681 = vld [vmem:[%s1679 + $0x8] sm:$0xff]
      %v1682 = vld [vmem:[%s1679 + $0x10] sm:$0xff]
      %v1683 = vld [vmem:[%s1679 + $0x18] sm:$0xff]
      %v1684 = vld [vmem:[%s1679 + $0x20] sm:$0xff]
      %v1685 = vld [vmem:[%s1679 + $0x28] sm:$0xff]
      %v1686 = vld [vmem:[%s1679 + $0x30] sm:$0xff]
      %v1687 = vld [vmem:[%s1679 + $0x38] sm:$0xff]
      %v1688 = vld [vmem:[%s1679 + $0x40] sm:$0xff]
      %v1689 = vld [vmem:[%s1679 + $0x48] sm:$0xff]
      %v1690 = vld [vmem:[%s1679 + $0x50] sm:$0xff]
      %v1691 = vld [vmem:[%s1679 + $0x58] sm:$0xff]
      %v1692 = vld [vmem:[%s1679 + $0x60] sm:$0xff]
      %v1693 = vld [vmem:[%s1679 + $0x68] sm:$0xff]
      %v1694 = vld [vmem:[%s1679 + $0x70] sm:$0xff]
      %v1695 = vld [vmem:[%s1679 + $0x78] sm:$0xff]
      %v1696 = vld [vmem:[%s1679 + $0x80] sm:$0xff]
      %v1697 = vld [vmem:[%s1679 + $0x88] sm:$0xff]
      %v1698 = vld [vmem:[%s1679 + $0x90] sm:$0xff]
      %v1699 = vld [vmem:[%s1679 + $0x98] sm:$0xff]
      %v1700 = vld [vmem:[%s1679 + $0xa0] sm:$0xff]
      %v1701 = vld [vmem:[%s1679 + $0xa8] sm:$0xff]
      %v1702 = vld [vmem:[%s1679 + $0xb0] sm:$0xff]
      %v1703 = vld [vmem:[%s1679 + $0xb8] sm:$0xff]
      %v1704 = vld [vmem:[%s1679 + $0xc0] sm:$0xff]
      %v1705 = vld [vmem:[%s1679 + $0xc8] sm:$0xff]
      %v1706 = vld [vmem:[%s1679 + $0xd0] sm:$0xff]
      %v1707 = vld [vmem:[%s1679 + $0xd8] sm:$0xff]
      %v1708 = vld [vmem:[%s1679 + $0xe0] sm:$0xff]
      %v1709 = vld [vmem:[%s1679 + $0xe8] sm:$0xff]
      %v1710 = vld [vmem:[%s1679 + $0xf0] sm:$0xff]
      %v1711 = vld [vmem:[%s1679 + $0xf8] sm:$0xff]
      %v1744 = vunpack.c.l.b16 %v1680
      %v1745 = vunpack.c.h.b16 %v1680
      %v1746 = vunpack.c.l.b16 %v1681
      %v1747 = vunpack.c.h.b16 %v1681
      %v1748 = vunpack.c.l.b16 %v1682
      %v1749 = vunpack.c.h.b16 %v1682
      %v1750 = vunpack.c.l.b16 %v1683
      %v1751 = vunpack.c.h.b16 %v1683
      %v1752 = vunpack.c.l.b16 %v1684
      %v1753 = vunpack.c.h.b16 %v1684
      %v1754 = vunpack.c.l.b16 %v1685
      %v1755 = vunpack.c.h.b16 %v1685
      %v1756 = vunpack.c.l.b16 %v1686
      %v1757 = vunpack.c.h.b16 %v1686
      %v1758 = vunpack.c.l.b16 %v1687
      %v1759 = vunpack.c.h.b16 %v1687
      %v1760 = vunpack.c.l.b16 %v1688
      %v1761 = vunpack.c.h.b16 %v1688
      %v1762 = vunpack.c.l.b16 %v1689
      %v1763 = vunpack.c.h.b16 %v1689
      %v1764 = vunpack.c.l.b16 %v1690
      %v1765 = vunpack.c.h.b16 %v1690
      %v1766 = vunpack.c.l.b16 %v1691
      %v1767 = vunpack.c.h.b16 %v1691
      %v1768 = vunpack.c.l.b16 %v1692
      %v1769 = vunpack.c.h.b16 %v1692
      %v1770 = vunpack.c.l.b16 %v1693
      %v1771 = vunpack.c.h.b16 %v1693
      %v1772 = vunpack.c.l.b16 %v1694
      %v1773 = vunpack.c.h.b16 %v1694
      %v1774 = vunpack.c.l.b16 %v1695
      %v1775 = vunpack.c.h.b16 %v1695
      %v1776 = vunpack.c.l.b16 %v1696
      %v1777 = vunpack.c.h.b16 %v1696
      %v1778 = vunpack.c.l.b16 %v1697
      %v1779 = vunpack.c.h.b16 %v1697
      %v1780 = vunpack.c.l.b16 %v1698
      %v1781 = vunpack.c.h.b16 %v1698
      %v1782 = vunpack.c.l.b16 %v1699
      %v1783 = vunpack.c.h.b16 %v1699
      %v1784 = vunpack.c.l.b16 %v1700
      %v1785 = vunpack.c.h.b16 %v1700
      %v1786 = vunpack.c.l.b16 %v1701
      %v1787 = vunpack.c.h.b16 %v1701
      %v1788 = vunpack.c.l.b16 %v1702
      %v1789 = vunpack.c.h.b16 %v1702
      %v1790 = vunpack.c.l.b16 %v1703
      %v1791 = vunpack.c.h.b16 %v1703
      %v1792 = vunpack.c.l.b16 %v1704
      %v1793 = vunpack.c.h.b16 %v1704
      %v1794 = vunpack.c.l.b16 %v1705
      %v1795 = vunpack.c.h.b16 %v1705
      %v1796 = vunpack.c.l.b16 %v1706
      %v1797 = vunpack.c.h.b16 %v1706
      %v1798 = vunpack.c.l.b16 %v1707
      %v1799 = vunpack.c.h.b16 %v1707
      %v1800 = vunpack.c.l.b16 %v1708
      %v1801 = vunpack.c.h.b16 %v1708
      %v1802 = vunpack.c.l.b16 %v1709
      %v1803 = vunpack.c.h.b16 %v1709
      %v1804 = vunpack.c.l.b16 %v1710
      %v1805 = vunpack.c.h.b16 %v1710
      %v1806 = vunpack.c.l.b16 %v1711
      %v1807 = vunpack.c.h.b16 %v1711
      %v1808 = vpack.c.b16 %v1746, %v1744
      %v1809 = vpack.c.b16 %v1747, %v1745
      %v1810 = vpack.c.b16 %v1750, %v1748
      %v1811 = vpack.c.b16 %v1751, %v1749
      %v1812 = vpack.c.b16 %v1754, %v1752
      %v1813 = vpack.c.b16 %v1755, %v1753
      %v1814 = vpack.c.b16 %v1758, %v1756
      %v1815 = vpack.c.b16 %v1759, %v1757
      %v1816 = vpack.c.b16 %v1762, %v1760
      %v1817 = vpack.c.b16 %v1763, %v1761
      %v1818 = vpack.c.b16 %v1766, %v1764
      %v1819 = vpack.c.b16 %v1767, %v1765
      %v1820 = vpack.c.b16 %v1770, %v1768
      %v1821 = vpack.c.b16 %v1771, %v1769
      %v1822 = vpack.c.b16 %v1774, %v1772
      %v1823 = vpack.c.b16 %v1775, %v1773
      %v1824 = vpack.c.b16 %v1778, %v1776
      %v1825 = vpack.c.b16 %v1779, %v1777
      %v1826 = vpack.c.b16 %v1782, %v1780
      %v1827 = vpack.c.b16 %v1783, %v1781
      %v1828 = vpack.c.b16 %v1786, %v1784
      %v1829 = vpack.c.b16 %v1787, %v1785
      %v1830 = vpack.c.b16 %v1790, %v1788
      %v1831 = vpack.c.b16 %v1791, %v1789
      %v1832 = vpack.c.b16 %v1794, %v1792
      %v1833 = vpack.c.b16 %v1795, %v1793
      %v1834 = vpack.c.b16 %v1798, %v1796
      %v1835 = vpack.c.b16 %v1799, %v1797
      %v1836 = vpack.c.b16 %v1802, %v1800
      %v1837 = vpack.c.b16 %v1803, %v1801
      %v1838 = vpack.c.b16 %v1806, %v1804
      %v1839 = vpack.c.b16 %v1807, %v1805
      %1872 = vmatprep.subr.bf16.mxu0 %v1823
      %1873 = vmatpush1.bf16.msra.mxu0 %v1822
      %1874 = vmatprep.subr.bf16.mxu0 %v1821
      %1875 = vmatpush1.bf16.msra.mxu0 %v1820
      %1876 = vmatprep.subr.bf16.mxu0 %v1819
      %1877 = vmatpush1.bf16.msra.mxu0 %v1818
      %1878 = vmatprep.subr.bf16.mxu0 %v1817
      %1879 = vmatpush1.bf16.msra.mxu0 %v1816
      %1880 = vmatprep.subr.bf16.mxu0 %v1815
      %1881 = vmatpush1.bf16.msra.mxu0 %v1814
      %1882 = vmatprep.subr.bf16.mxu0 %v1813
      %1883 = vmatpush1.bf16.msra.mxu0 %v1812
      %1884 = vmatprep.subr.bf16.mxu0 %v1811
      %1885 = vmatpush1.bf16.msra.mxu0 %v1810
      %1886 = vmatprep.subr.bf16.mxu0 %v1809
      %1887 = vmatpush1.bf16.msra.mxu0 %v1808
      %1888 = vmatprep.subr.bf16.mxu0 %v1839
      %1889 = vmatpush2.bf16.msra.mxu0 %v1838
      %1890 = vmatprep.subr.bf16.mxu0 %v1837
      %1891 = vmatpush2.bf16.msra.mxu0 %v1836
      %1892 = vmatprep.subr.bf16.mxu0 %v1835
      %1893 = vmatpush2.bf16.msra.mxu0 %v1834
      %1894 = vmatprep.subr.bf16.mxu0 %v1833
      %1895 = vmatpush2.bf16.msra.mxu0 %v1832
      %1896 = vmatprep.subr.bf16.mxu0 %v1831
      %1897 = vmatpush2.bf16.msra.mxu0 %v1830
      %1898 = vmatprep.subr.bf16.mxu0 %v1829
      %1899 = vmatpush2.bf16.msra.mxu0 %v1828
      %1900 = vmatprep.subr.bf16.mxu0 %v1827
      %1901 = vmatpush2.bf16.msra.mxu0 %v1826
      %1902 = vmatprep.subr.bf16.mxu0 %v1825
      %1903 = vmatpush2.bf16.msra.mxu0 %v1824
      %1904 = vmatprep.mubr.bf16.mxu0 %v471
      %1905 = vmatmul.mubr.bf16.gmra.mxu0 %v470
      %v1906 = vpop.f32.mrf.mxu0
      %v1907 = vadd.f32 0.0, %v1906
      %v1908 = vpop.f32.mrf.mxu0
      %v1909 = vadd.f32 0.0, %v1908
      %v1910 = vpop.f32.mrf.mxu0
      %v1911 = vpop.f32.mrf.mxu0
      %1912 = vdwg.mxu0
      %v1913 = vpack.c.bf16 %v1907, %v1907
      %v1914 = vpack.c.bf16 %v1909, %v1909
      %s1915 = scalar_lea.vmem %s4, 32
      %v1916 = vld [vmem:[%s1915] sm:$0xf]
      %v1917 = vld [vmem:[%s1915 + $0x4] sm:$0xf]
      %v1920 = vunpack.c.l.b16 %v1916
      %v1921 = vunpack.c.l.b16 %v1917
      %v1922 = vpack.c.b16 %v1921, %v1920
      %v1924 = vsel %vm718, %v1922, 0
      %v1927 = vand.u32 %v1913, %v725
      %v1930 = vand.u32 %v1914, %v725
      %1932 = vmatprep.subr.bf16.mxu0 0
      %1933 = vmatpush1.bf16.msra.mxu0 0
      %1934 = vmatprep.subr.bf16.mxu0 0
      %1935 = vmatpush1.bf16.msra.mxu0 0
      %1936 = vmatprep.subr.bf16.mxu0 0
      %1937 = vmatpush1.bf16.msra.mxu0 0
      %1938 = vmatprep.subr.bf16.mxu0 0
      %1939 = vmatpush1.bf16.msra.mxu0 0
      %1940 = vmatprep.subr.bf16.mxu0 0
      %1941 = vmatpush1.bf16.msra.mxu0 0
      %1942 = vmatprep.subr.bf16.mxu0 0
      %1943 = vmatpush1.bf16.msra.mxu0 0
      %1944 = vmatprep.subr.bf16.mxu0 0
      %1945 = vmatpush1.bf16.msra.mxu0 0
      %1946 = vmatprep.subr.bf16.mxu0 %v1930
      %1947 = vmatpush1.bf16.msra.mxu0 %v1927
      %1948 = vmatprep.subr.bf16.mxu0 0
      %1949 = vmatpush2.bf16.msra.mxu0 0
      %1950 = vmatprep.subr.bf16.mxu0 0
      %1951 = vmatpush2.bf16.msra.mxu0 0
      %1952 = vmatprep.subr.bf16.mxu0 0
      %1953 = vmatpush2.bf16.msra.mxu0 0
      %1954 = vmatprep.subr.bf16.mxu0 0
      %1955 = vmatpush2.bf16.msra.mxu0 0
      %1956 = vmatprep.subr.bf16.mxu0 0
      %1957 = vmatpush2.bf16.msra.mxu0 0
      %1958 = vmatprep.subr.bf16.mxu0 0
      %1959 = vmatpush2.bf16.msra.mxu0 0
      %1960 = vmatprep.subr.bf16.mxu0 0
      %1961 = vmatpush2.bf16.msra.mxu0 0
      %1962 = vmatprep.subr.bf16.mxu0 0
      %1963 = vmatpush2.bf16.msra.mxu0 0
      %1964 = vmatprep.mubr.bf16.mxu0 0
      %1965 = vmatmul.mubr.bf16.gmra.mxu0 %v1924
      %v1966 = vpop.f32.mrf.mxu0
      %v1967 = vadd.f32 0.0, %v1966
      %v1968 = vpop.f32.mrf.mxu0
      %v1969 = vadd.f32 0.0, %v1968
      %v1970 = vpop.f32.mrf.mxu0
      %v1971 = vadd.f32 0.0, %v1970
      %v1972 = vpop.f32.mrf.mxu0
      %v1973 = vadd.f32 0.0, %v1972
      %1974 = vdwg.mxu0
      %v1975 = vadd.f32 %v1675, %v1967
      %v1976 = vadd.f32 %v1676, %v1969
      %v1977 = vadd.f32 %v1677, %v1971
      %v1978 = vadd.f32 %v1678, %v1973
      %s1979 = scalar_lea.vmem %s3, 1280
      %v1980 = vld [vmem:[%s1979] sm:$0xff]
      %v1981 = vld [vmem:[%s1979 + $0x8] sm:$0xff]
      %v1982 = vld [vmem:[%s1979 + $0x10] sm:$0xff]
      %v1983 = vld [vmem:[%s1979 + $0x18] sm:$0xff]
      %v1984 = vld [vmem:[%s1979 + $0x20] sm:$0xff]
      %v1985 = vld [vmem:[%s1979 + $0x28] sm:$0xff]
      %v1986 = vld [vmem:[%s1979 + $0x30] sm:$0xff]
      %v1987 = vld [vmem:[%s1979 + $0x38] sm:$0xff]
      %v1988 = vld [vmem:[%s1979 + $0x40] sm:$0xff]
      %v1989 = vld [vmem:[%s1979 + $0x48] sm:$0xff]
      %v1990 = vld [vmem:[%s1979 + $0x50] sm:$0xff]
      %v1991 = vld [vmem:[%s1979 + $0x58] sm:$0xff]
      %v1992 = vld [vmem:[%s1979 + $0x60] sm:$0xff]
      %v1993 = vld [vmem:[%s1979 + $0x68] sm:$0xff]
      %v1994 = vld [vmem:[%s1979 + $0x70] sm:$0xff]
      %v1995 = vld [vmem:[%s1979 + $0x78] sm:$0xff]
      %v1996 = vld [vmem:[%s1979 + $0x80] sm:$0xff]
      %v1997 = vld [vmem:[%s1979 + $0x88] sm:$0xff]
      %v1998 = vld [vmem:[%s1979 + $0x90] sm:$0xff]
      %v1999 = vld [vmem:[%s1979 + $0x98] sm:$0xff]
      %v2000 = vld [vmem:[%s1979 + $0xa0] sm:$0xff]
      %v2001 = vld [vmem:[%s1979 + $0xa8] sm:$0xff]
      %v2002 = vld [vmem:[%s1979 + $0xb0] sm:$0xff]
      %v2003 = vld [vmem:[%s1979 + $0xb8] sm:$0xff]
      %v2004 = vld [vmem:[%s1979 + $0xc0] sm:$0xff]
      %v2005 = vld [vmem:[%s1979 + $0xc8] sm:$0xff]
      %v2006 = vld [vmem:[%s1979 + $0xd0] sm:$0xff]
      %v2007 = vld [vmem:[%s1979 + $0xd8] sm:$0xff]
      %v2008 = vld [vmem:[%s1979 + $0xe0] sm:$0xff]
      %v2009 = vld [vmem:[%s1979 + $0xe8] sm:$0xff]
      %v2010 = vld [vmem:[%s1979 + $0xf0] sm:$0xff]
      %v2011 = vld [vmem:[%s1979 + $0xf8] sm:$0xff]
      %v2044 = vunpack.c.l.b16 %v1980
      %v2045 = vunpack.c.h.b16 %v1980
      %v2046 = vunpack.c.l.b16 %v1981
      %v2047 = vunpack.c.h.b16 %v1981
      %v2048 = vunpack.c.l.b16 %v1982
      %v2049 = vunpack.c.h.b16 %v1982
      %v2050 = vunpack.c.l.b16 %v1983
      %v2051 = vunpack.c.h.b16 %v1983
      %v2052 = vunpack.c.l.b16 %v1984
      %v2053 = vunpack.c.h.b16 %v1984
      %v2054 = vunpack.c.l.b16 %v1985
      %v2055 = vunpack.c.h.b16 %v1985
      %v2056 = vunpack.c.l.b16 %v1986
      %v2057 = vunpack.c.h.b16 %v1986
      %v2058 = vunpack.c.l.b16 %v1987
      %v2059 = vunpack.c.h.b16 %v1987
      %v2060 = vunpack.c.l.b16 %v1988
      %v2061 = vunpack.c.h.b16 %v1988
      %v2062 = vunpack.c.l.b16 %v1989
      %v2063 = vunpack.c.h.b16 %v1989
      %v2064 = vunpack.c.l.b16 %v1990
      %v2065 = vunpack.c.h.b16 %v1990
      %v2066 = vunpack.c.l.b16 %v1991
      %v2067 = vunpack.c.h.b16 %v1991
      %v2068 = vunpack.c.l.b16 %v1992
      %v2069 = vunpack.c.h.b16 %v1992
      %v2070 = vunpack.c.l.b16 %v1993
      %v2071 = vunpack.c.h.b16 %v1993
      %v2072 = vunpack.c.l.b16 %v1994
      %v2073 = vunpack.c.h.b16 %v1994
      %v2074 = vunpack.c.l.b16 %v1995
      %v2075 = vunpack.c.h.b16 %v1995
      %v2076 = vunpack.c.l.b16 %v1996
      %v2077 = vunpack.c.h.b16 %v1996
      %v2078 = vunpack.c.l.b16 %v1997
      %v2079 = vunpack.c.h.b16 %v1997
      %v2080 = vunpack.c.l.b16 %v1998
      %v2081 = vunpack.c.h.b16 %v1998
      %v2082 = vunpack.c.l.b16 %v1999
      %v2083 = vunpack.c.h.b16 %v1999
      %v2084 = vunpack.c.l.b16 %v2000
      %v2085 = vunpack.c.h.b16 %v2000
      %v2086 = vunpack.c.l.b16 %v2001
      %v2087 = vunpack.c.h.b16 %v2001
      %v2088 = vunpack.c.l.b16 %v2002
      %v2089 = vunpack.c.h.b16 %v2002
      %v2090 = vunpack.c.l.b16 %v2003
      %v2091 = vunpack.c.h.b16 %v2003
      %v2092 = vunpack.c.l.b16 %v2004
      %v2093 = vunpack.c.h.b16 %v2004
      %v2094 = vunpack.c.l.b16 %v2005
      %v2095 = vunpack.c.h.b16 %v2005
      %v2096 = vunpack.c.l.b16 %v2006
      %v2097 = vunpack.c.h.b16 %v2006
      %v2098 = vunpack.c.l.b16 %v2007
      %v2099 = vunpack.c.h.b16 %v2007
      %v2100 = vunpack.c.l.b16 %v2008
      %v2101 = vunpack.c.h.b16 %v2008
      %v2102 = vunpack.c.l.b16 %v2009
      %v2103 = vunpack.c.h.b16 %v2009
      %v2104 = vunpack.c.l.b16 %v2010
      %v2105 = vunpack.c.h.b16 %v2010
      %v2106 = vunpack.c.l.b16 %v2011
      %v2107 = vunpack.c.h.b16 %v2011
      %v2108 = vpack.c.b16 %v2046, %v2044
      %v2109 = vpack.c.b16 %v2047, %v2045
      %v2110 = vpack.c.b16 %v2050, %v2048
      %v2111 = vpack.c.b16 %v2051, %v2049
      %v2112 = vpack.c.b16 %v2054, %v2052
      %v2113 = vpack.c.b16 %v2055, %v2053
      %v2114 = vpack.c.b16 %v2058, %v2056
      %v2115 = vpack.c.b16 %v2059, %v2057
      %v2116 = vpack.c.b16 %v2062, %v2060
      %v2117 = vpack.c.b16 %v2063, %v2061
      %v2118 = vpack.c.b16 %v2066, %v2064
      %v2119 = vpack.c.b16 %v2067, %v2065
      %v2120 = vpack.c.b16 %v2070, %v2068
      %v2121 = vpack.c.b16 %v2071, %v2069
      %v2122 = vpack.c.b16 %v2074, %v2072
      %v2123 = vpack.c.b16 %v2075, %v2073
      %v2124 = vpack.c.b16 %v2078, %v2076
      %v2125 = vpack.c.b16 %v2079, %v2077
      %v2126 = vpack.c.b16 %v2082, %v2080
      %v2127 = vpack.c.b16 %v2083, %v2081
      %v2128 = vpack.c.b16 %v2086, %v2084
      %v2129 = vpack.c.b16 %v2087, %v2085
      %v2130 = vpack.c.b16 %v2090, %v2088
      %v2131 = vpack.c.b16 %v2091, %v2089
      %v2132 = vpack.c.b16 %v2094, %v2092
      %v2133 = vpack.c.b16 %v2095, %v2093
      %v2134 = vpack.c.b16 %v2098, %v2096
      %v2135 = vpack.c.b16 %v2099, %v2097
      %v2136 = vpack.c.b16 %v2102, %v2100
      %v2137 = vpack.c.b16 %v2103, %v2101
      %v2138 = vpack.c.b16 %v2106, %v2104
      %v2139 = vpack.c.b16 %v2107, %v2105
      %2172 = vmatprep.subr.bf16.mxu0 %v2123
      %2173 = vmatpush1.bf16.msra.mxu0 %v2122
      %2174 = vmatprep.subr.bf16.mxu0 %v2121
      %2175 = vmatpush1.bf16.msra.mxu0 %v2120
      %2176 = vmatprep.subr.bf16.mxu0 %v2119
      %2177 = vmatpush1.bf16.msra.mxu0 %v2118
      %2178 = vmatprep.subr.bf16.mxu0 %v2117
      %2179 = vmatpush1.bf16.msra.mxu0 %v2116
      %2180 = vmatprep.subr.bf16.mxu0 %v2115
      %2181 = vmatpush1.bf16.msra.mxu0 %v2114
      %2182 = vmatprep.subr.bf16.mxu0 %v2113
      %2183 = vmatpush1.bf16.msra.mxu0 %v2112
      %2184 = vmatprep.subr.bf16.mxu0 %v2111
      %2185 = vmatpush1.bf16.msra.mxu0 %v2110
      %2186 = vmatprep.subr.bf16.mxu0 %v2109
      %2187 = vmatpush1.bf16.msra.mxu0 %v2108
      %2188 = vmatprep.subr.bf16.mxu0 %v2139
      %2189 = vmatpush2.bf16.msra.mxu0 %v2138
      %2190 = vmatprep.subr.bf16.mxu0 %v2137
      %2191 = vmatpush2.bf16.msra.mxu0 %v2136
      %2192 = vmatprep.subr.bf16.mxu0 %v2135
      %2193 = vmatpush2.bf16.msra.mxu0 %v2134
      %2194 = vmatprep.subr.bf16.mxu0 %v2133
      %2195 = vmatpush2.bf16.msra.mxu0 %v2132
      %2196 = vmatprep.subr.bf16.mxu0 %v2131
      %2197 = vmatpush2.bf16.msra.mxu0 %v2130
      %2198 = vmatprep.subr.bf16.mxu0 %v2129
      %2199 = vmatpush2.bf16.msra.mxu0 %v2128
      %2200 = vmatprep.subr.bf16.mxu0 %v2127
      %2201 = vmatpush2.bf16.msra.mxu0 %v2126
      %2202 = vmatprep.subr.bf16.mxu0 %v2125
      %2203 = vmatpush2.bf16.msra.mxu0 %v2124
      %2204 = vmatprep.mubr.bf16.mxu0 %v471
      %2205 = vmatmul.mubr.bf16.gmra.mxu0 %v470
      %v2206 = vpop.f32.mrf.mxu0
      %v2207 = vadd.f32 0.0, %v2206
      %v2208 = vpop.f32.mrf.mxu0
      %v2209 = vadd.f32 0.0, %v2208
      %v2210 = vpop.f32.mrf.mxu0
      %v2211 = vpop.f32.mrf.mxu0
      %2212 = vdwg.mxu0
      %v2213 = vpack.c.bf16 %v2207, %v2207
      %v2214 = vpack.c.bf16 %v2209, %v2209
      %s2215 = scalar_lea.vmem %s4, 40
      %v2216 = vld [vmem:[%s2215] sm:$0xf]
      %v2217 = vld [vmem:[%s2215 + $0x4] sm:$0xf]
      %v2220 = vunpack.c.l.b16 %v2216
      %v2221 = vunpack.c.l.b16 %v2217
      %v2222 = vpack.c.b16 %v2221, %v2220
      %v2224 = vsel %vm718, %v2222, 0
      %v2227 = vand.u32 %v2213, %v725
      %v2230 = vand.u32 %v2214, %v725
      %2232 = vmatprep.subr.bf16.mxu0 0
      %2233 = vmatpush1.bf16.msra.mxu0 0
      %2234 = vmatprep.subr.bf16.mxu0 0
      %2235 = vmatpush1.bf16.msra.mxu0 0
      %2236 = vmatprep.subr.bf16.mxu0 0
      %2237 = vmatpush1.bf16.msra.mxu0 0
      %2238 = vmatprep.subr.bf16.mxu0 0
      %2239 = vmatpush1.bf16.msra.mxu0 0
      %2240 = vmatprep.subr.bf16.mxu0 0
      %2241 = vmatpush1.bf16.msra.mxu0 0
      %2242 = vmatprep.subr.bf16.mxu0 0
      %2243 = vmatpush1.bf16.msra.mxu0 0
      %2244 = vmatprep.subr.bf16.mxu0 0
      %2245 = vmatpush1.bf16.msra.mxu0 0
      %2246 = vmatprep.subr.bf16.mxu0 %v2230
      %2247 = vmatpush1.bf16.msra.mxu0 %v2227
      %2248 = vmatprep.subr.bf16.mxu0 0
      %2249 = vmatpush2.bf16.msra.mxu0 0
      %2250 = vmatprep.subr.bf16.mxu0 0
      %2251 = vmatpush2.bf16.msra.mxu0 0
      %2252 = vmatprep.subr.bf16.mxu0 0
      %2253 = vmatpush2.bf16.msra.mxu0 0
      %2254 = vmatprep.subr.bf16.mxu0 0
      %2255 = vmatpush2.bf16.msra.mxu0 0
      %2256 = vmatprep.subr.bf16.mxu0 0
      %2257 = vmatpush2.bf16.msra.mxu0 0
      %2258 = vmatprep.subr.bf16.mxu0 0
      %2259 = vmatpush2.bf16.msra.mxu0 0
      %2260 = vmatprep.subr.bf16.mxu0 0
      %2261 = vmatpush2.bf16.msra.mxu0 0
      %2262 = vmatprep.subr.bf16.mxu0 0
      %2263 = vmatpush2.bf16.msra.mxu0 0
      %2264 = vmatprep.mubr.bf16.mxu0 0
      %2265 = vmatmul.mubr.bf16.gmra.mxu0 %v2224
      %v2266 = vpop.f32.mrf.mxu0
      %v2267 = vadd.f32 0.0, %v2266
      %v2268 = vpop.f32.mrf.mxu0
      %v2269 = vadd.f32 0.0, %v2268
      %v2270 = vpop.f32.mrf.mxu0
      %v2271 = vadd.f32 0.0, %v2270
      %v2272 = vpop.f32.mrf.mxu0
      %v2273 = vadd.f32 0.0, %v2272
      %2274 = vdwg.mxu0
      %v2275 = vadd.f32 %v1975, %v2267
      %v2276 = vadd.f32 %v1976, %v2269
      %v2277 = vadd.f32 %v1977, %v2271
      %v2278 = vadd.f32 %v1978, %v2273
      %s2279 = scalar_lea.vmem %s3, 1536
      %v2280 = vld [vmem:[%s2279] sm:$0xff]
      %v2281 = vld [vmem:[%s2279 + $0x8] sm:$0xff]
      %v2282 = vld [vmem:[%s2279 + $0x10] sm:$0xff]
      %v2283 = vld [vmem:[%s2279 + $0x18] sm:$0xff]
      %v2284 = vld [vmem:[%s2279 + $0x20] sm:$0xff]
      %v2285 = vld [vmem:[%s2279 + $0x28] sm:$0xff]
      %v2286 = vld [vmem:[%s2279 + $0x30] sm:$0xff]
      %v2287 = vld [vmem:[%s2279 + $0x38] sm:$0xff]
      %v2288 = vld [vmem:[%s2279 + $0x40] sm:$0xff]
      %v2289 = vld [vmem:[%s2279 + $0x48] sm:$0xff]
      %v2290 = vld [vmem:[%s2279 + $0x50] sm:$0xff]
      %v2291 = vld [vmem:[%s2279 + $0x58] sm:$0xff]
      %v2292 = vld [vmem:[%s2279 + $0x60] sm:$0xff]
      %v2293 = vld [vmem:[%s2279 + $0x68] sm:$0xff]
      %v2294 = vld [vmem:[%s2279 + $0x70] sm:$0xff]
      %v2295 = vld [vmem:[%s2279 + $0x78] sm:$0xff]
      %v2296 = vld [vmem:[%s2279 + $0x80] sm:$0xff]
      %v2297 = vld [vmem:[%s2279 + $0x88] sm:$0xff]
      %v2298 = vld [vmem:[%s2279 + $0x90] sm:$0xff]
      %v2299 = vld [vmem:[%s2279 + $0x98] sm:$0xff]
      %v2300 = vld [vmem:[%s2279 + $0xa0] sm:$0xff]
      %v2301 = vld [vmem:[%s2279 + $0xa8] sm:$0xff]
      %v2302 = vld [vmem:[%s2279 + $0xb0] sm:$0xff]
      %v2303 = vld [vmem:[%s2279 + $0xb8] sm:$0xff]
      %v2304 = vld [vmem:[%s2279 + $0xc0] sm:$0xff]
      %v2305 = vld [vmem:[%s2279 + $0xc8] sm:$0xff]
      %v2306 = vld [vmem:[%s2279 + $0xd0] sm:$0xff]
      %v2307 = vld [vmem:[%s2279 + $0xd8] sm:$0xff]
      %v2308 = vld [vmem:[%s2279 + $0xe0] sm:$0xff]
      %v2309 = vld [vmem:[%s2279 + $0xe8] sm:$0xff]
      %v2310 = vld [vmem:[%s2279 + $0xf0] sm:$0xff]
      %v2311 = vld [vmem:[%s2279 + $0xf8] sm:$0xff]
      %v2344 = vunpack.c.l.b16 %v2280
      %v2345 = vunpack.c.h.b16 %v2280
      %v2346 = vunpack.c.l.b16 %v2281
      %v2347 = vunpack.c.h.b16 %v2281
      %v2348 = vunpack.c.l.b16 %v2282
      %v2349 = vunpack.c.h.b16 %v2282
      %v2350 = vunpack.c.l.b16 %v2283
      %v2351 = vunpack.c.h.b16 %v2283
      %v2352 = vunpack.c.l.b16 %v2284
      %v2353 = vunpack.c.h.b16 %v2284
      %v2354 = vunpack.c.l.b16 %v2285
      %v2355 = vunpack.c.h.b16 %v2285
      %v2356 = vunpack.c.l.b16 %v2286
      %v2357 = vunpack.c.h.b16 %v2286
      %v2358 = vunpack.c.l.b16 %v2287
      %v2359 = vunpack.c.h.b16 %v2287
      %v2360 = vunpack.c.l.b16 %v2288
      %v2361 = vunpack.c.h.b16 %v2288
      %v2362 = vunpack.c.l.b16 %v2289
      %v2363 = vunpack.c.h.b16 %v2289
      %v2364 = vunpack.c.l.b16 %v2290
      %v2365 = vunpack.c.h.b16 %v2290
      %v2366 = vunpack.c.l.b16 %v2291
      %v2367 = vunpack.c.h.b16 %v2291
      %v2368 = vunpack.c.l.b16 %v2292
      %v2369 = vunpack.c.h.b16 %v2292
      %v2370 = vunpack.c.l.b16 %v2293
      %v2371 = vunpack.c.h.b16 %v2293
      %v2372 = vunpack.c.l.b16 %v2294
      %v2373 = vunpack.c.h.b16 %v2294
      %v2374 = vunpack.c.l.b16 %v2295
      %v2375 = vunpack.c.h.b16 %v2295
      %v2376 = vunpack.c.l.b16 %v2296
      %v2377 = vunpack.c.h.b16 %v2296
      %v2378 = vunpack.c.l.b16 %v2297
      %v2379 = vunpack.c.h.b16 %v2297
      %v2380 = vunpack.c.l.b16 %v2298
      %v2381 = vunpack.c.h.b16 %v2298
      %v2382 = vunpack.c.l.b16 %v2299
      %v2383 = vunpack.c.h.b16 %v2299
      %v2384 = vunpack.c.l.b16 %v2300
      %v2385 = vunpack.c.h.b16 %v2300
      %v2386 = vunpack.c.l.b16 %v2301
      %v2387 = vunpack.c.h.b16 %v2301
      %v2388 = vunpack.c.l.b16 %v2302
      %v2389 = vunpack.c.h.b16 %v2302
      %v2390 = vunpack.c.l.b16 %v2303
      %v2391 = vunpack.c.h.b16 %v2303
      %v2392 = vunpack.c.l.b16 %v2304
      %v2393 = vunpack.c.h.b16 %v2304
      %v2394 = vunpack.c.l.b16 %v2305
      %v2395 = vunpack.c.h.b16 %v2305
      %v2396 = vunpack.c.l.b16 %v2306
      %v2397 = vunpack.c.h.b16 %v2306
      %v2398 = vunpack.c.l.b16 %v2307
      %v2399 = vunpack.c.h.b16 %v2307
      %v2400 = vunpack.c.l.b16 %v2308
      %v2401 = vunpack.c.h.b16 %v2308
      %v2402 = vunpack.c.l.b16 %v2309
      %v2403 = vunpack.c.h.b16 %v2309
      %v2404 = vunpack.c.l.b16 %v2310
      %v2405 = vunpack.c.h.b16 %v2310
      %v2406 = vunpack.c.l.b16 %v2311
      %v2407 = vunpack.c.h.b16 %v2311
      %v2408 = vpack.c.b16 %v2346, %v2344
      %v2409 = vpack.c.b16 %v2347, %v2345
      %v2410 = vpack.c.b16 %v2350, %v2348
      %v2411 = vpack.c.b16 %v2351, %v2349
      %v2412 = vpack.c.b16 %v2354, %v2352
      %v2413 = vpack.c.b16 %v2355, %v2353
      %v2414 = vpack.c.b16 %v2358, %v2356
      %v2415 = vpack.c.b16 %v2359, %v2357
      %v2416 = vpack.c.b16 %v2362, %v2360
      %v2417 = vpack.c.b16 %v2363, %v2361
      %v2418 = vpack.c.b16 %v2366, %v2364
      %v2419 = vpack.c.b16 %v2367, %v2365
      %v2420 = vpack.c.b16 %v2370, %v2368
      %v2421 = vpack.c.b16 %v2371, %v2369
      %v2422 = vpack.c.b16 %v2374, %v2372
      %v2423 = vpack.c.b16 %v2375, %v2373
      %v2424 = vpack.c.b16 %v2378, %v2376
      %v2425 = vpack.c.b16 %v2379, %v2377
      %v2426 = vpack.c.b16 %v2382, %v2380
      %v2427 = vpack.c.b16 %v2383, %v2381
      %v2428 = vpack.c.b16 %v2386, %v2384
      %v2429 = vpack.c.b16 %v2387, %v2385
      %v2430 = vpack.c.b16 %v2390, %v2388
      %v2431 = vpack.c.b16 %v2391, %v2389
      %v2432 = vpack.c.b16 %v2394, %v2392
      %v2433 = vpack.c.b16 %v2395, %v2393
      %v2434 = vpack.c.b16 %v2398, %v2396
      %v2435 = vpack.c.b16 %v2399, %v2397
      %v2436 = vpack.c.b16 %v2402, %v2400
      %v2437 = vpack.c.b16 %v2403, %v2401
      %v2438 = vpack.c.b16 %v2406, %v2404
      %v2439 = vpack.c.b16 %v2407, %v2405
      %2472 = vmatprep.subr.bf16.mxu0 %v2423
      %2473 = vmatpush1.bf16.msra.mxu0 %v2422
      %2474 = vmatprep.subr.bf16.mxu0 %v2421
      %2475 = vmatpush1.bf16.msra.mxu0 %v2420
      %2476 = vmatprep.subr.bf16.mxu0 %v2419
      %2477 = vmatpush1.bf16.msra.mxu0 %v2418
      %2478 = vmatprep.subr.bf16.mxu0 %v2417
      %2479 = vmatpush1.bf16.msra.mxu0 %v2416
      %2480 = vmatprep.subr.bf16.mxu0 %v2415
      %2481 = vmatpush1.bf16.msra.mxu0 %v2414
      %2482 = vmatprep.subr.bf16.mxu0 %v2413
      %2483 = vmatpush1.bf16.msra.mxu0 %v2412
      %2484 = vmatprep.subr.bf16.mxu0 %v2411
      %2485 = vmatpush1.bf16.msra.mxu0 %v2410
      %2486 = vmatprep.subr.bf16.mxu0 %v2409
      %2487 = vmatpush1.bf16.msra.mxu0 %v2408
      %2488 = vmatprep.subr.bf16.mxu0 %v2439
      %2489 = vmatpush2.bf16.msra.mxu0 %v2438
      %2490 = vmatprep.subr.bf16.mxu0 %v2437
      %2491 = vmatpush2.bf16.msra.mxu0 %v2436
      %2492 = vmatprep.subr.bf16.mxu0 %v2435
      %2493 = vmatpush2.bf16.msra.mxu0 %v2434
      %2494 = vmatprep.subr.bf16.mxu0 %v2433
      %2495 = vmatpush2.bf16.msra.mxu0 %v2432
      %2496 = vmatprep.subr.bf16.mxu0 %v2431
      %2497 = vmatpush2.bf16.msra.mxu0 %v2430
      %2498 = vmatprep.subr.bf16.mxu0 %v2429
      %2499 = vmatpush2.bf16.msra.mxu0 %v2428
      %2500 = vmatprep.subr.bf16.mxu0 %v2427
      %2501 = vmatpush2.bf16.msra.mxu0 %v2426
      %2502 = vmatprep.subr.bf16.mxu0 %v2425
      %2503 = vmatpush2.bf16.msra.mxu0 %v2424
      %2504 = vmatprep.mubr.bf16.mxu0 %v471
      %2505 = vmatmul.mubr.bf16.gmra.mxu0 %v470
      %v2506 = vpop.f32.mrf.mxu0
      %v2507 = vadd.f32 0.0, %v2506
      %v2508 = vpop.f32.mrf.mxu0
      %v2509 = vadd.f32 0.0, %v2508
      %v2510 = vpop.f32.mrf.mxu0
      %v2511 = vpop.f32.mrf.mxu0
      %2512 = vdwg.mxu0
      %v2513 = vpack.c.bf16 %v2507, %v2507
      %v2514 = vpack.c.bf16 %v2509, %v2509
      %s2515 = scalar_lea.vmem %s4, 48
      %v2516 = vld [vmem:[%s2515] sm:$0xf]
      %v2517 = vld [vmem:[%s2515 + $0x4] sm:$0xf]
      %v2520 = vunpack.c.l.b16 %v2516
      %v2521 = vunpack.c.l.b16 %v2517
      %v2522 = vpack.c.b16 %v2521, %v2520
      %v2524 = vsel %vm718, %v2522, 0
      %v2527 = vand.u32 %v2513, %v725
      %v2530 = vand.u32 %v2514, %v725
      %2532 = vmatprep.subr.bf16.mxu0 0
      %2533 = vmatpush1.bf16.msra.mxu0 0
      %2534 = vmatprep.subr.bf16.mxu0 0
      %2535 = vmatpush1.bf16.msra.mxu0 0
      %2536 = vmatprep.subr.bf16.mxu0 0
      %2537 = vmatpush1.bf16.msra.mxu0 0
      %2538 = vmatprep.subr.bf16.mxu0 0
      %2539 = vmatpush1.bf16.msra.mxu0 0
      %2540 = vmatprep.subr.bf16.mxu0 0
      %2541 = vmatpush1.bf16.msra.mxu0 0
      %2542 = vmatprep.subr.bf16.mxu0 0
      %2543 = vmatpush1.bf16.msra.mxu0 0
      %2544 = vmatprep.subr.bf16.mxu0 0
      %2545 = vmatpush1.bf16.msra.mxu0 0
      %2546 = vmatprep.subr.bf16.mxu0 %v2530
      %2547 = vmatpush1.bf16.msra.mxu0 %v2527
      %2548 = vmatprep.subr.bf16.mxu0 0
      %2549 = vmatpush2.bf16.msra.mxu0 0
      %2550 = vmatprep.subr.bf16.mxu0 0
      %2551 = vmatpush2.bf16.msra.mxu0 0
      %2552 = vmatprep.subr.bf16.mxu0 0
      %2553 = vmatpush2.bf16.msra.mxu0 0
      %2554 = vmatprep.subr.bf16.mxu0 0
      %2555 = vmatpush2.bf16.msra.mxu0 0
      %2556 = vmatprep.subr.bf16.mxu0 0
      %2557 = vmatpush2.bf16.msra.mxu0 0
      %2558 = vmatprep.subr.bf16.mxu0 0
      %2559 = vmatpush2.bf16.msra.mxu0 0
      %2560 = vmatprep.subr.bf16.mxu0 0
      %2561 = vmatpush2.bf16.msra.mxu0 0
      %2562 = vmatprep.subr.bf16.mxu0 0
      %2563 = vmatpush2.bf16.msra.mxu0 0
      %2564 = vmatprep.mubr.bf16.mxu0 0
      %2565 = vmatmul.mubr.bf16.gmra.mxu0 %v2524
      %v2566 = vpop.f32.mrf.mxu0
      %v2567 = vadd.f32 0.0, %v2566
      %v2568 = vpop.f32.mrf.mxu0
      %v2569 = vadd.f32 0.0, %v2568
      %v2570 = vpop.f32.mrf.mxu0
      %v2571 = vadd.f32 0.0, %v2570
      %v2572 = vpop.f32.mrf.mxu0
      %v2573 = vadd.f32 0.0, %v2572
      %2574 = vdwg.mxu0
      %v2575 = vadd.f32 %v2275, %v2567
      %v2576 = vadd.f32 %v2276, %v2569
      %v2577 = vadd.f32 %v2277, %v2571
      %v2578 = vadd.f32 %v2278, %v2573
      %s2579 = scalar_lea.vmem %s3, 1792
      %v2580 = vld [vmem:[%s2579] sm:$0xff]
      %v2581 = vld [vmem:[%s2579 + $0x8] sm:$0xff]
      %v2582 = vld [vmem:[%s2579 + $0x10] sm:$0xff]
      %v2583 = vld [vmem:[%s2579 + $0x18] sm:$0xff]
      %v2584 = vld [vmem:[%s2579 + $0x20] sm:$0xff]
      %v2585 = vld [vmem:[%s2579 + $0x28] sm:$0xff]
      %v2586 = vld [vmem:[%s2579 + $0x30] sm:$0xff]
      %v2587 = vld [vmem:[%s2579 + $0x38] sm:$0xff]
      %v2588 = vld [vmem:[%s2579 + $0x40] sm:$0xff]
      %v2589 = vld [vmem:[%s2579 + $0x48] sm:$0xff]
      %v2590 = vld [vmem:[%s2579 + $0x50] sm:$0xff]
      %v2591 = vld [vmem:[%s2579 + $0x58] sm:$0xff]
      %v2592 = vld [vmem:[%s2579 + $0x60] sm:$0xff]
      %v2593 = vld [vmem:[%s2579 + $0x68] sm:$0xff]
      %v2594 = vld [vmem:[%s2579 + $0x70] sm:$0xff]
      %v2595 = vld [vmem:[%s2579 + $0x78] sm:$0xff]
      %v2596 = vld [vmem:[%s2579 + $0x80] sm:$0xff]
      %v2597 = vld [vmem:[%s2579 + $0x88] sm:$0xff]
      %v2598 = vld [vmem:[%s2579 + $0x90] sm:$0xff]
      %v2599 = vld [vmem:[%s2579 + $0x98] sm:$0xff]
      %v2600 = vld [vmem:[%s2579 + $0xa0] sm:$0xff]
      %v2601 = vld [vmem:[%s2579 + $0xa8] sm:$0xff]
      %v2602 = vld [vmem:[%s2579 + $0xb0] sm:$0xff]
      %v2603 = vld [vmem:[%s2579 + $0xb8] sm:$0xff]
      %v2604 = vld [vmem:[%s2579 + $0xc0] sm:$0xff]
      %v2605 = vld [vmem:[%s2579 + $0xc8] sm:$0xff]
      %v2606 = vld [vmem:[%s2579 + $0xd0] sm:$0xff]
      %v2607 = vld [vmem:[%s2579 + $0xd8] sm:$0xff]
      %v2608 = vld [vmem:[%s2579 + $0xe0] sm:$0xff]
      %v2609 = vld [vmem:[%s2579 + $0xe8] sm:$0xff]
      %v2610 = vld [vmem:[%s2579 + $0xf0] sm:$0xff]
      %v2611 = vld [vmem:[%s2579 + $0xf8] sm:$0xff]
      %v2644 = vunpack.c.l.b16 %v2580
      %v2645 = vunpack.c.h.b16 %v2580
      %v2646 = vunpack.c.l.b16 %v2581
      %v2647 = vunpack.c.h.b16 %v2581
      %v2648 = vunpack.c.l.b16 %v2582
      %v2649 = vunpack.c.h.b16 %v2582
      %v2650 = vunpack.c.l.b16 %v2583
      %v2651 = vunpack.c.h.b16 %v2583
      %v2652 = vunpack.c.l.b16 %v2584
      %v2653 = vunpack.c.h.b16 %v2584
      %v2654 = vunpack.c.l.b16 %v2585
      %v2655 = vunpack.c.h.b16 %v2585
      %v2656 = vunpack.c.l.b16 %v2586
      %v2657 = vunpack.c.h.b16 %v2586
      %v2658 = vunpack.c.l.b16 %v2587
      %v2659 = vunpack.c.h.b16 %v2587
      %v2660 = vunpack.c.l.b16 %v2588
      %v2661 = vunpack.c.h.b16 %v2588
      %v2662 = vunpack.c.l.b16 %v2589
      %v2663 = vunpack.c.h.b16 %v2589
      %v2664 = vunpack.c.l.b16 %v2590
      %v2665 = vunpack.c.h.b16 %v2590
      %v2666 = vunpack.c.l.b16 %v2591
      %v2667 = vunpack.c.h.b16 %v2591
      %v2668 = vunpack.c.l.b16 %v2592
      %v2669 = vunpack.c.h.b16 %v2592
      %v2670 = vunpack.c.l.b16 %v2593
      %v2671 = vunpack.c.h.b16 %v2593
      %v2672 = vunpack.c.l.b16 %v2594
      %v2673 = vunpack.c.h.b16 %v2594
      %v2674 = vunpack.c.l.b16 %v2595
      %v2675 = vunpack.c.h.b16 %v2595
      %v2676 = vunpack.c.l.b16 %v2596
      %v2677 = vunpack.c.h.b16 %v2596
      %v2678 = vunpack.c.l.b16 %v2597
      %v2679 = vunpack.c.h.b16 %v2597
      %v2680 = vunpack.c.l.b16 %v2598
      %v2681 = vunpack.c.h.b16 %v2598
      %v2682 = vunpack.c.l.b16 %v2599
      %v2683 = vunpack.c.h.b16 %v2599
      %v2684 = vunpack.c.l.b16 %v2600
      %v2685 = vunpack.c.h.b16 %v2600
      %v2686 = vunpack.c.l.b16 %v2601
      %v2687 = vunpack.c.h.b16 %v2601
      %v2688 = vunpack.c.l.b16 %v2602
      %v2689 = vunpack.c.h.b16 %v2602
      %v2690 = vunpack.c.l.b16 %v2603
      %v2691 = vunpack.c.h.b16 %v2603
      %v2692 = vunpack.c.l.b16 %v2604
      %v2693 = vunpack.c.h.b16 %v2604
      %v2694 = vunpack.c.l.b16 %v2605
      %v2695 = vunpack.c.h.b16 %v2605
      %v2696 = vunpack.c.l.b16 %v2606
      %v2697 = vunpack.c.h.b16 %v2606
      %v2698 = vunpack.c.l.b16 %v2607
      %v2699 = vunpack.c.h.b16 %v2607
      %v2700 = vunpack.c.l.b16 %v2608
      %v2701 = vunpack.c.h.b16 %v2608
      %v2702 = vunpack.c.l.b16 %v2609
      %v2703 = vunpack.c.h.b16 %v2609
      %v2704 = vunpack.c.l.b16 %v2610
      %v2705 = vunpack.c.h.b16 %v2610
      %v2706 = vunpack.c.l.b16 %v2611
      %v2707 = vunpack.c.h.b16 %v2611
      %v2708 = vpack.c.b16 %v2646, %v2644
      %v2709 = vpack.c.b16 %v2647, %v2645
      %v2710 = vpack.c.b16 %v2650, %v2648
      %v2711 = vpack.c.b16 %v2651, %v2649
      %v2712 = vpack.c.b16 %v2654, %v2652
      %v2713 = vpack.c.b16 %v2655, %v2653
      %v2714 = vpack.c.b16 %v2658, %v2656
      %v2715 = vpack.c.b16 %v2659, %v2657
      %v2716 = vpack.c.b16 %v2662, %v2660
      %v2717 = vpack.c.b16 %v2663, %v2661
      %v2718 = vpack.c.b16 %v2666, %v2664
      %v2719 = vpack.c.b16 %v2667, %v2665
      %v2720 = vpack.c.b16 %v2670, %v2668
      %v2721 = vpack.c.b16 %v2671, %v2669
      %v2722 = vpack.c.b16 %v2674, %v2672
      %v2723 = vpack.c.b16 %v2675, %v2673
      %v2724 = vpack.c.b16 %v2678, %v2676
      %v2725 = vpack.c.b16 %v2679, %v2677
      %v2726 = vpack.c.b16 %v2682, %v2680
      %v2727 = vpack.c.b16 %v2683, %v2681
      %v2728 = vpack.c.b16 %v2686, %v2684
      %v2729 = vpack.c.b16 %v2687, %v2685
      %v2730 = vpack.c.b16 %v2690, %v2688
      %v2731 = vpack.c.b16 %v2691, %v2689
      %v2732 = vpack.c.b16 %v2694, %v2692
      %v2733 = vpack.c.b16 %v2695, %v2693
      %v2734 = vpack.c.b16 %v2698, %v2696
      %v2735 = vpack.c.b16 %v2699, %v2697
      %v2736 = vpack.c.b16 %v2702, %v2700
      %v2737 = vpack.c.b16 %v2703, %v2701
      %v2738 = vpack.c.b16 %v2706, %v2704
      %v2739 = vpack.c.b16 %v2707, %v2705
      %2772 = vmatprep.subr.bf16.mxu0 %v2723
      %2773 = vmatpush1.bf16.msra.mxu0 %v2722
      %2774 = vmatprep.subr.bf16.mxu0 %v2721
      %2775 = vmatpush1.bf16.msra.mxu0 %v2720
      %2776 = vmatprep.subr.bf16.mxu0 %v2719
      %2777 = vmatpush1.bf16.msra.mxu0 %v2718
      %2778 = vmatprep.subr.bf16.mxu0 %v2717
      %2779 = vmatpush1.bf16.msra.mxu0 %v2716
      %2780 = vmatprep.subr.bf16.mxu0 %v2715
      %2781 = vmatpush1.bf16.msra.mxu0 %v2714
      %2782 = vmatprep.subr.bf16.mxu0 %v2713
      %2783 = vmatpush1.bf16.msra.mxu0 %v2712
      %2784 = vmatprep.subr.bf16.mxu0 %v2711
      %2785 = vmatpush1.bf16.msra.mxu0 %v2710
      %2786 = vmatprep.subr.bf16.mxu0 %v2709
      %2787 = vmatpush1.bf16.msra.mxu0 %v2708
      %2788 = vmatprep.subr.bf16.mxu0 %v2739
      %2789 = vmatpush2.bf16.msra.mxu0 %v2738
      %2790 = vmatprep.subr.bf16.mxu0 %v2737
      %2791 = vmatpush2.bf16.msra.mxu0 %v2736
      %2792 = vmatprep.subr.bf16.mxu0 %v2735
      %2793 = vmatpush2.bf16.msra.mxu0 %v2734
      %2794 = vmatprep.subr.bf16.mxu0 %v2733
      %2795 = vmatpush2.bf16.msra.mxu0 %v2732
      %2796 = vmatprep.subr.bf16.mxu0 %v2731
      %2797 = vmatpush2.bf16.msra.mxu0 %v2730
      %2798 = vmatprep.subr.bf16.mxu0 %v2729
      %2799 = vmatpush2.bf16.msra.mxu0 %v2728
      %2800 = vmatprep.subr.bf16.mxu0 %v2727
      %2801 = vmatpush2.bf16.msra.mxu0 %v2726
      %2802 = vmatprep.subr.bf16.mxu0 %v2725
      %2803 = vmatpush2.bf16.msra.mxu0 %v2724
      %2804 = vmatprep.mubr.bf16.mxu0 %v471
      %2805 = vmatmul.mubr.bf16.gmra.mxu0 %v470
      %v2806 = vpop.f32.mrf.mxu0
      %v2807 = vadd.f32 0.0, %v2806
      %v2808 = vpop.f32.mrf.mxu0
      %v2809 = vadd.f32 0.0, %v2808
      %v2810 = vpop.f32.mrf.mxu0
      %v2811 = vpop.f32.mrf.mxu0
      %2812 = vdwg.mxu0
      %v2813 = vpack.c.bf16 %v2807, %v2807
      %v2814 = vpack.c.bf16 %v2809, %v2809
      %s2815 = scalar_lea.vmem %s4, 56
      %v2816 = vld [vmem:[%s2815] sm:$0xf]
      %v2817 = vld [vmem:[%s2815 + $0x4] sm:$0xf]
      %v2820 = vunpack.c.l.b16 %v2816
      %v2821 = vunpack.c.l.b16 %v2817
      %v2822 = vpack.c.b16 %v2821, %v2820
      %v2824 = vsel %vm718, %v2822, 0
      %v2827 = vand.u32 %v2813, %v725
      %v2830 = vand.u32 %v2814, %v725
      %2832 = vmatprep.subr.bf16.mxu0 0
      %2833 = vmatpush1.bf16.msra.mxu0 0
      %2834 = vmatprep.subr.bf16.mxu0 0
      %2835 = vmatpush1.bf16.msra.mxu0 0
      %2836 = vmatprep.subr.bf16.mxu0 0
      %2837 = vmatpush1.bf16.msra.mxu0 0
      %2838 = vmatprep.subr.bf16.mxu0 0
      %2839 = vmatpush1.bf16.msra.mxu0 0
      %2840 = vmatprep.subr.bf16.mxu0 0
      %2841 = vmatpush1.bf16.msra.mxu0 0
      %2842 = vmatprep.subr.bf16.mxu0 0
      %2843 = vmatpush1.bf16.msra.mxu0 0
      %2844 = vmatprep.subr.bf16.mxu0 0
      %2845 = vmatpush1.bf16.msra.mxu0 0
      %2846 = vmatprep.subr.bf16.mxu0 %v2830
      %2847 = vmatpush1.bf16.msra.mxu0 %v2827
      %2848 = vmatprep.subr.bf16.mxu0 0
      %2849 = vmatpush2.bf16.msra.mxu0 0
      %2850 = vmatprep.subr.bf16.mxu0 0
      %2851 = vmatpush2.bf16.msra.mxu0 0
      %2852 = vmatprep.subr.bf16.mxu0 0
      %2853 = vmatpush2.bf16.msra.mxu0 0
      %2854 = vmatprep.subr.bf16.mxu0 0
      %2855 = vmatpush2.bf16.msra.mxu0 0
      %2856 = vmatprep.subr.bf16.mxu0 0
      %2857 = vmatpush2.bf16.msra.mxu0 0
      %2858 = vmatprep.subr.bf16.mxu0 0
      %2859 = vmatpush2.bf16.msra.mxu0 0
      %2860 = vmatprep.subr.bf16.mxu0 0
      %2861 = vmatpush2.bf16.msra.mxu0 0
      %2862 = vmatprep.subr.bf16.mxu0 0
      %2863 = vmatpush2.bf16.msra.mxu0 0
      %2864 = vmatprep.mubr.bf16.mxu0 0
      %2865 = vmatmul.mubr.bf16.gmra.mxu0 %v2824
      %v2866 = vpop.f32.mrf.mxu0
      %v2867 = vadd.f32 0.0, %v2866
      %v2868 = vpop.f32.mrf.mxu0
      %v2869 = vadd.f32 0.0, %v2868
      %v2870 = vpop.f32.mrf.mxu0
      %v2871 = vadd.f32 0.0, %v2870
      %v2872 = vpop.f32.mrf.mxu0
      %v2873 = vadd.f32 0.0, %v2872
      %2874 = vdwg.mxu0
      %v2875 = vadd.f32 %v2575, %v2867
      %v2876 = vadd.f32 %v2576, %v2869
      %v2877 = vadd.f32 %v2577, %v2871
      %v2878 = vadd.f32 %v2578, %v2873
      %s2879 = scalar_lea.vmem %s3, 2048
      %v2880 = vld [vmem:[%s2879] sm:$0xff]
      %v2881 = vld [vmem:[%s2879 + $0x8] sm:$0xff]
      %v2882 = vld [vmem:[%s2879 + $0x10] sm:$0xff]
      %v2883 = vld [vmem:[%s2879 + $0x18] sm:$0xff]
      %v2884 = vld [vmem:[%s2879 + $0x20] sm:$0xff]
      %v2885 = vld [vmem:[%s2879 + $0x28] sm:$0xff]
      %v2886 = vld [vmem:[%s2879 + $0x30] sm:$0xff]
      %v2887 = vld [vmem:[%s2879 + $0x38] sm:$0xff]
      %v2888 = vld [vmem:[%s2879 + $0x40] sm:$0xff]
      %v2889 = vld [vmem:[%s2879 + $0x48] sm:$0xff]
      %v2890 = vld [vmem:[%s2879 + $0x50] sm:$0xff]
      %v2891 = vld [vmem:[%s2879 + $0x58] sm:$0xff]
      %v2892 = vld [vmem:[%s2879 + $0x60] sm:$0xff]
      %v2893 = vld [vmem:[%s2879 + $0x68] sm:$0xff]
      %v2894 = vld [vmem:[%s2879 + $0x70] sm:$0xff]
      %v2895 = vld [vmem:[%s2879 + $0x78] sm:$0xff]
      %v2896 = vld [vmem:[%s2879 + $0x80] sm:$0xff]
      %v2897 = vld [vmem:[%s2879 + $0x88] sm:$0xff]
      %v2898 = vld [vmem:[%s2879 + $0x90] sm:$0xff]
      %v2899 = vld [vmem:[%s2879 + $0x98] sm:$0xff]
      %v2900 = vld [vmem:[%s2879 + $0xa0] sm:$0xff]
      %v2901 = vld [vmem:[%s2879 + $0xa8] sm:$0xff]
      %v2902 = vld [vmem:[%s2879 + $0xb0] sm:$0xff]
      %v2903 = vld [vmem:[%s2879 + $0xb8] sm:$0xff]
      %v2904 = vld [vmem:[%s2879 + $0xc0] sm:$0xff]
      %v2905 = vld [vmem:[%s2879 + $0xc8] sm:$0xff]
      %v2906 = vld [vmem:[%s2879 + $0xd0] sm:$0xff]
      %v2907 = vld [vmem:[%s2879 + $0xd8] sm:$0xff]
      %v2908 = vld [vmem:[%s2879 + $0xe0] sm:$0xff]
      %v2909 = vld [vmem:[%s2879 + $0xe8] sm:$0xff]
      %v2910 = vld [vmem:[%s2879 + $0xf0] sm:$0xff]
      %v2911 = vld [vmem:[%s2879 + $0xf8] sm:$0xff]
      %v2944 = vunpack.c.l.b16 %v2880
      %v2945 = vunpack.c.h.b16 %v2880
      %v2946 = vunpack.c.l.b16 %v2881
      %v2947 = vunpack.c.h.b16 %v2881
      %v2948 = vunpack.c.l.b16 %v2882
      %v2949 = vunpack.c.h.b16 %v2882
      %v2950 = vunpack.c.l.b16 %v2883
      %v2951 = vunpack.c.h.b16 %v2883
      %v2952 = vunpack.c.l.b16 %v2884
      %v2953 = vunpack.c.h.b16 %v2884
      %v2954 = vunpack.c.l.b16 %v2885
      %v2955 = vunpack.c.h.b16 %v2885
      %v2956 = vunpack.c.l.b16 %v2886
      %v2957 = vunpack.c.h.b16 %v2886
      %v2958 = vunpack.c.l.b16 %v2887
      %v2959 = vunpack.c.h.b16 %v2887
      %v2960 = vunpack.c.l.b16 %v2888
      %v2961 = vunpack.c.h.b16 %v2888
      %v2962 = vunpack.c.l.b16 %v2889
      %v2963 = vunpack.c.h.b16 %v2889
      %v2964 = vunpack.c.l.b16 %v2890
      %v2965 = vunpack.c.h.b16 %v2890
      %v2966 = vunpack.c.l.b16 %v2891
      %v2967 = vunpack.c.h.b16 %v2891
      %v2968 = vunpack.c.l.b16 %v2892
      %v2969 = vunpack.c.h.b16 %v2892
      %v2970 = vunpack.c.l.b16 %v2893
      %v2971 = vunpack.c.h.b16 %v2893
      %v2972 = vunpack.c.l.b16 %v2894
      %v2973 = vunpack.c.h.b16 %v2894
      %v2974 = vunpack.c.l.b16 %v2895
      %v2975 = vunpack.c.h.b16 %v2895
      %v2976 = vunpack.c.l.b16 %v2896
      %v2977 = vunpack.c.h.b16 %v2896
      %v2978 = vunpack.c.l.b16 %v2897
      %v2979 = vunpack.c.h.b16 %v2897
      %v2980 = vunpack.c.l.b16 %v2898
      %v2981 = vunpack.c.h.b16 %v2898
      %v2982 = vunpack.c.l.b16 %v2899
      %v2983 = vunpack.c.h.b16 %v2899
      %v2984 = vunpack.c.l.b16 %v2900
      %v2985 = vunpack.c.h.b16 %v2900
      %v2986 = vunpack.c.l.b16 %v2901
      %v2987 = vunpack.c.h.b16 %v2901
      %v2988 = vunpack.c.l.b16 %v2902
      %v2989 = vunpack.c.h.b16 %v2902
      %v2990 = vunpack.c.l.b16 %v2903
      %v2991 = vunpack.c.h.b16 %v2903
      %v2992 = vunpack.c.l.b16 %v2904
      %v2993 = vunpack.c.h.b16 %v2904
      %v2994 = vunpack.c.l.b16 %v2905
      %v2995 = vunpack.c.h.b16 %v2905
      %v2996 = vunpack.c.l.b16 %v2906
      %v2997 = vunpack.c.h.b16 %v2906
      %v2998 = vunpack.c.l.b16 %v2907
      %v2999 = vunpack.c.h.b16 %v2907
      %v3000 = vunpack.c.l.b16 %v2908
      %v3001 = vunpack.c.h.b16 %v2908
      %v3002 = vunpack.c.l.b16 %v2909
      %v3003 = vunpack.c.h.b16 %v2909
      %v3004 = vunpack.c.l.b16 %v2910
      %v3005 = vunpack.c.h.b16 %v2910
      %v3006 = vunpack.c.l.b16 %v2911
      %v3007 = vunpack.c.h.b16 %v2911
      %v3008 = vpack.c.b16 %v2946, %v2944
      %v3009 = vpack.c.b16 %v2947, %v2945
      %v3010 = vpack.c.b16 %v2950, %v2948
      %v3011 = vpack.c.b16 %v2951, %v2949
      %v3012 = vpack.c.b16 %v2954, %v2952
      %v3013 = vpack.c.b16 %v2955, %v2953
      %v3014 = vpack.c.b16 %v2958, %v2956
      %v3015 = vpack.c.b16 %v2959, %v2957
      %v3016 = vpack.c.b16 %v2962, %v2960
      %v3017 = vpack.c.b16 %v2963, %v2961
      %v3018 = vpack.c.b16 %v2966, %v2964
      %v3019 = vpack.c.b16 %v2967, %v2965
      %v3020 = vpack.c.b16 %v2970, %v2968
      %v3021 = vpack.c.b16 %v2971, %v2969
      %v3022 = vpack.c.b16 %v2974, %v2972
      %v3023 = vpack.c.b16 %v2975, %v2973
      %v3024 = vpack.c.b16 %v2978, %v2976
      %v3025 = vpack.c.b16 %v2979, %v2977
      %v3026 = vpack.c.b16 %v2982, %v2980
      %v3027 = vpack.c.b16 %v2983, %v2981
      %v3028 = vpack.c.b16 %v2986, %v2984
      %v3029 = vpack.c.b16 %v2987, %v2985
      %v3030 = vpack.c.b16 %v2990, %v2988
      %v3031 = vpack.c.b16 %v2991, %v2989
      %v3032 = vpack.c.b16 %v2994, %v2992
      %v3033 = vpack.c.b16 %v2995, %v2993
      %v3034 = vpack.c.b16 %v2998, %v2996
      %v3035 = vpack.c.b16 %v2999, %v2997
      %v3036 = vpack.c.b16 %v3002, %v3000
      %v3037 = vpack.c.b16 %v3003, %v3001
      %v3038 = vpack.c.b16 %v3006, %v3004
      %v3039 = vpack.c.b16 %v3007, %v3005
      %3072 = vmatprep.subr.bf16.mxu0 %v3023
      %3073 = vmatpush1.bf16.msra.mxu0 %v3022
      %3074 = vmatprep.subr.bf16.mxu0 %v3021
      %3075 = vmatpush1.bf16.msra.mxu0 %v3020
      %3076 = vmatprep.subr.bf16.mxu0 %v3019
      %3077 = vmatpush1.bf16.msra.mxu0 %v3018
      %3078 = vmatprep.subr.bf16.mxu0 %v3017
      %3079 = vmatpush1.bf16.msra.mxu0 %v3016
      %3080 = vmatprep.subr.bf16.mxu0 %v3015
      %3081 = vmatpush1.bf16.msra.mxu0 %v3014
      %3082 = vmatprep.subr.bf16.mxu0 %v3013
      %3083 = vmatpush1.bf16.msra.mxu0 %v3012
      %3084 = vmatprep.subr.bf16.mxu0 %v3011
      %3085 = vmatpush1.bf16.msra.mxu0 %v3010
      %3086 = vmatprep.subr.bf16.mxu0 %v3009
      %3087 = vmatpush1.bf16.msra.mxu0 %v3008
      %3088 = vmatprep.subr.bf16.mxu0 %v3039
      %3089 = vmatpush2.bf16.msra.mxu0 %v3038
      %3090 = vmatprep.subr.bf16.mxu0 %v3037
      %3091 = vmatpush2.bf16.msra.mxu0 %v3036
      %3092 = vmatprep.subr.bf16.mxu0 %v3035
      %3093 = vmatpush2.bf16.msra.mxu0 %v3034
      %3094 = vmatprep.subr.bf16.mxu0 %v3033
      %3095 = vmatpush2.bf16.msra.mxu0 %v3032
      %3096 = vmatprep.subr.bf16.mxu0 %v3031
      %3097 = vmatpush2.bf16.msra.mxu0 %v3030
      %3098 = vmatprep.subr.bf16.mxu0 %v3029
      %3099 = vmatpush2.bf16.msra.mxu0 %v3028
      %3100 = vmatprep.subr.bf16.mxu0 %v3027
      %3101 = vmatpush2.bf16.msra.mxu0 %v3026
      %3102 = vmatprep.subr.bf16.mxu0 %v3025
      %3103 = vmatpush2.bf16.msra.mxu0 %v3024
      %3104 = vmatprep.mubr.bf16.mxu0 %v471
      %3105 = vmatmul.mubr.bf16.gmra.mxu0 %v470
      %v3106 = vpop.f32.mrf.mxu0
      %v3107 = vadd.f32 0.0, %v3106
      %v3108 = vpop.f32.mrf.mxu0
      %v3109 = vadd.f32 0.0, %v3108
      %v3110 = vpop.f32.mrf.mxu0
      %v3111 = vpop.f32.mrf.mxu0
      %3112 = vdwg.mxu0
      %v3113 = vpack.c.bf16 %v3107, %v3107
      %v3114 = vpack.c.bf16 %v3109, %v3109
      %s3115 = scalar_lea.vmem %s4, 64
      %v3116 = vld [vmem:[%s3115] sm:$0xf]
      %v3117 = vld [vmem:[%s3115 + $0x4] sm:$0xf]
      %v3120 = vunpack.c.l.b16 %v3116
      %v3121 = vunpack.c.l.b16 %v3117
      %v3122 = vpack.c.b16 %v3121, %v3120
      %v3124 = vsel %vm718, %v3122, 0
      %v3127 = vand.u32 %v3113, %v725
      %v3130 = vand.u32 %v3114, %v725
      %3132 = vmatprep.subr.bf16.mxu0 0
      %3133 = vmatpush1.bf16.msra.mxu0 0
      %3134 = vmatprep.subr.bf16.mxu0 0
      %3135 = vmatpush1.bf16.msra.mxu0 0
      %3136 = vmatprep.subr.bf16.mxu0 0
      %3137 = vmatpush1.bf16.msra.mxu0 0
      %3138 = vmatprep.subr.bf16.mxu0 0
      %3139 = vmatpush1.bf16.msra.mxu0 0
      %3140 = vmatprep.subr.bf16.mxu0 0
      %3141 = vmatpush1.bf16.msra.mxu0 0
      %3142 = vmatprep.subr.bf16.mxu0 0
      %3143 = vmatpush1.bf16.msra.mxu0 0
      %3144 = vmatprep.subr.bf16.mxu0 0
      %3145 = vmatpush1.bf16.msra.mxu0 0
      %3146 = vmatprep.subr.bf16.mxu0 %v3130
      %3147 = vmatpush1.bf16.msra.mxu0 %v3127
      %3148 = vmatprep.subr.bf16.mxu0 0
      %3149 = vmatpush2.bf16.msra.mxu0 0
      %3150 = vmatprep.subr.bf16.mxu0 0
      %3151 = vmatpush2.bf16.msra.mxu0 0
      %3152 = vmatprep.subr.bf16.mxu0 0
      %3153 = vmatpush2.bf16.msra.mxu0 0
      %3154 = vmatprep.subr.bf16.mxu0 0
      %3155 = vmatpush2.bf16.msra.mxu0 0
      %3156 = vmatprep.subr.bf16.mxu0 0
      %3157 = vmatpush2.bf16.msra.mxu0 0
      %3158 = vmatprep.subr.bf16.mxu0 0
      %3159 = vmatpush2.bf16.msra.mxu0 0
      %3160 = vmatprep.subr.bf16.mxu0 0
      %3161 = vmatpush2.bf16.msra.mxu0 0
      %3162 = vmatprep.subr.bf16.mxu0 0
      %3163 = vmatpush2.bf16.msra.mxu0 0
      %3164 = vmatprep.mubr.bf16.mxu0 0
      %3165 = vmatmul.mubr.bf16.gmra.mxu0 %v3124
      %v3166 = vpop.f32.mrf.mxu0
      %v3167 = vadd.f32 0.0, %v3166
      %v3168 = vpop.f32.mrf.mxu0
      %v3169 = vadd.f32 0.0, %v3168
      %v3170 = vpop.f32.mrf.mxu0
      %v3171 = vadd.f32 0.0, %v3170
      %v3172 = vpop.f32.mrf.mxu0
      %v3173 = vadd.f32 0.0, %v3172
      %3174 = vdwg.mxu0
      %v3175 = vadd.f32 %v2875, %v3167
      %v3176 = vadd.f32 %v2876, %v3169
      %v3177 = vadd.f32 %v2877, %v3171
      %v3178 = vadd.f32 %v2878, %v3173
      %v3179 = vmax.f32 %v3175, 0.0
      %v3180 = vmax.f32 %v3176, 0.0
      %v3181 = vmax.f32 %v3177, 0.0
      %v3182 = vmax.f32 %v3178, 0.0
      %v3183 = vpack.c.bf16 %v3181, %v3179
      %v3184 = vpack.c.bf16 %v3182, %v3180
      %v3185 = vld [vmem:[%s6] sm:$0x3]
      %vm3186 = vcmask 130048
      %v3188 = vsel %vm3186, %v3185, 0
      %3190 = vmatprep.subr.bf16.mxu0 0
      %3191 = vmatpush1.bf16.msra.mxu0 0
      %3192 = vmatprep.subr.bf16.mxu0 0
      %3193 = vmatpush1.bf16.msra.mxu0 0
      %3194 = vmatprep.subr.bf16.mxu0 0
      %3195 = vmatpush1.bf16.msra.mxu0 0
      %3196 = vmatprep.subr.bf16.mxu0 0
      %3197 = vmatpush1.bf16.msra.mxu0 0
      %3198 = vmatprep.subr.bf16.mxu0 0
      %3199 = vmatpush1.bf16.msra.mxu0 0
      %3200 = vmatprep.subr.bf16.mxu0 0
      %3201 = vmatpush1.bf16.msra.mxu0 0
      %3202 = vmatprep.subr.bf16.mxu0 0
      %3203 = vmatpush1.bf16.msra.mxu0 0
      %3204 = vmatprep.subr.bf16.mxu0 %v3184
      %3205 = vmatpush1.bf16.msra.mxu0 %v3183
      %3206 = vmatprep.subr.bf16.mxu0 0
      %3207 = vmatpush2.bf16.msra.mxu0 0
      %3208 = vmatprep.subr.bf16.mxu0 0
      %3209 = vmatpush2.bf16.msra.mxu0 0
      %3210 = vmatprep.subr.bf16.mxu0 0
      %3211 = vmatpush2.bf16.msra.mxu0 0
      %3212 = vmatprep.subr.bf16.mxu0 0
      %3213 = vmatpush2.bf16.msra.mxu0 0
      %3214 = vmatprep.subr.bf16.mxu0 0
      %3215 = vmatpush2.bf16.msra.mxu0 0
      %3216 = vmatprep.subr.bf16.mxu0 0
      %3217 = vmatpush2.bf16.msra.mxu0 0
      %3218 = vmatprep.subr.bf16.mxu0 0
      %3219 = vmatpush2.bf16.msra.mxu0 0
      %3220 = vmatprep.subr.bf16.mxu0 0
      %3221 = vmatpush2.bf16.msra.mxu0 0
      %3222 = vmatprep.mubr.bf16.mxu0 0
      %3223 = vmatmul.mubr.bf16.gmra.mxu0 %v3188
      %v3224 = vpop.f32.mrf.mxu0
      %v3225 = vadd.f32 0.0, %v3224
      %v3226 = vpop.f32.mrf.mxu0
      %v3227 = vadd.f32 0.0, %v3226
      %v3228 = vpop.f32.mrf.mxu0
      %v3229 = vpop.f32.mrf.mxu0
      %3230 = vdwg.mxu0
      %v3231 = vpack.c.bf16 %v3225, %v3225
      %v3232 = vpack.c.bf16 %v3227, %v3227
      %s3233 = scalar_lea.vmem %s6, 2
      %v3234 = vld [vmem:[%s3233] sm:$0x3]
      %v3236 = vsel %vm3186, %v3234, 0
      %3238 = vmatprep.subr.bf16.mxu0 0
      %3239 = vmatpush1.bf16.msra.mxu0 0
      %3240 = vmatprep.subr.bf16.mxu0 0
      %3241 = vmatpush1.bf16.msra.mxu0 0
      %3242 = vmatprep.subr.bf16.mxu0 0
      %3243 = vmatpush1.bf16.msra.mxu0 0
      %3244 = vmatprep.subr.bf16.mxu0 0
      %3245 = vmatpush1.bf16.msra.mxu0 0
      %3246 = vmatprep.subr.bf16.mxu0 0
      %3247 = vmatpush1.bf16.msra.mxu0 0
      %3248 = vmatprep.subr.bf16.mxu0 0
      %3249 = vmatpush1.bf16.msra.mxu0 0
      %3250 = vmatprep.subr.bf16.mxu0 0
      %3251 = vmatpush1.bf16.msra.mxu0 0
      %3252 = vmatprep.subr.bf16.mxu0 %v3184
      %3253 = vmatpush1.bf16.msra.mxu0 %v3183
      %3254 = vmatprep.subr.bf16.mxu0 0
      %3255 = vmatpush2.bf16.msra.mxu0 0
      %3256 = vmatprep.subr.bf16.mxu0 0
      %3257 = vmatpush2.bf16.msra.mxu0 0
      %3258 = vmatprep.subr.bf16.mxu0 0
      %3259 = vmatpush2.bf16.msra.mxu0 0
      %3260 = vmatprep.subr.bf16.mxu0 0
      %3261 = vmatpush2.bf16.msra.mxu0 0
      %3262 = vmatprep.subr.bf16.mxu0 0
      %3263 = vmatpush2.bf16.msra.mxu0 0
      %3264 = vmatprep.subr.bf16.mxu0 0
      %3265 = vmatpush2.bf16.msra.mxu0 0
      %3266 = vmatprep.subr.bf16.mxu0 0
      %3267 = vmatpush2.bf16.msra.mxu0 0
      %3268 = vmatprep.subr.bf16.mxu0 0
      %3269 = vmatpush2.bf16.msra.mxu0 0
      %3270 = vmatprep.mubr.bf16.mxu0 0
      %3271 = vmatmul.mubr.bf16.gmra.mxu0 %v3236
      %v3272 = vpop.f32.mrf.mxu0
      %v3273 = vadd.f32 0.0, %v3272
      %v3274 = vpop.f32.mrf.mxu0
      %v3275 = vadd.f32 0.0, %v3274
      %v3276 = vpop.f32.mrf.mxu0
      %v3277 = vpop.f32.mrf.mxu0
      %3278 = vdwg.mxu0
      %v3279 = vpack.c.bf16 %v3273, %v3273
      %v3280 = vpack.c.bf16 %v3275, %v3275
      %3281 = vmatprep.subr.bf16.mxu0 %v923
      %3282 = vmatpush1.bf16.msra.mxu0 %v922
      %3283 = vmatprep.subr.bf16.mxu0 %v921
      %3284 = vmatpush1.bf16.msra.mxu0 %v920
      %3285 = vmatprep.subr.bf16.mxu0 %v919
      %3286 = vmatpush1.bf16.msra.mxu0 %v918
      %3287 = vmatprep.subr.bf16.mxu0 %v917
      %3288 = vmatpush1.bf16.msra.mxu0 %v916
      %3289 = vmatprep.subr.bf16.mxu0 %v915
      %3290 = vmatpush1.bf16.msra.mxu0 %v914
      %3291 = vmatprep.subr.bf16.mxu0 %v913
      %3292 = vmatpush1.bf16.msra.mxu0 %v912
      %3293 = vmatprep.subr.bf16.mxu0 %v911
      %3294 = vmatpush1.bf16.msra.mxu0 %v910
      %3295 = vmatprep.subr.bf16.mxu0 %v909
      %3296 = vmatpush1.bf16.msra.mxu0 %v908
      %3297 = vmatprep.subr.bf16.mxu0 %v939
      %3298 = vmatpush2.bf16.msra.mxu0 %v938
      %3299 = vmatprep.subr.bf16.mxu0 %v937
      %3300 = vmatpush2.bf16.msra.mxu0 %v936
      %3301 = vmatprep.subr.bf16.mxu0 %v935
      %3302 = vmatpush2.bf16.msra.mxu0 %v934
      %3303 = vmatprep.subr.bf16.mxu0 %v933
      %3304 = vmatpush2.bf16.msra.mxu0 %v932
      %3305 = vmatprep.subr.bf16.mxu0 %v931
      %3306 = vmatpush2.bf16.msra.mxu0 %v930
      %3307 = vmatprep.subr.bf16.mxu0 %v929
      %3308 = vmatpush2.bf16.msra.mxu0 %v928
      %3309 = vmatprep.subr.bf16.mxu0 %v927
      %3310 = vmatpush2.bf16.msra.mxu0 %v926
      %3311 = vmatprep.subr.bf16.mxu0 %v925
      %3312 = vmatpush2.bf16.msra.mxu0 %v924
      %3313 = vmatprep.mubr.bf16.mxu0 %v3280
      %3314 = vmatmul.mubr.bf16.gmra.mxu0 %v3279
      %v3315 = vpop.f32.mrf.mxu0
      %v3316 = vadd.f32 0.0, %v3315
      %v3317 = vpop.f32.mrf.mxu0
      %v3318 = vadd.f32 0.0, %v3317
      %v3319 = vpop.f32.mrf.mxu0
      %v3320 = vpop.f32.mrf.mxu0
      %3321 = vdwg.mxu0
      %3322 = vmatprep.subr.bf16.mxu0 %v619
      %3323 = vmatpush1.bf16.msra.mxu0 %v618
      %3324 = vmatprep.subr.bf16.mxu0 %v617
      %3325 = vmatpush1.bf16.msra.mxu0 %v616
      %3326 = vmatprep.subr.bf16.mxu0 %v615
      %3327 = vmatpush1.bf16.msra.mxu0 %v614
      %3328 = vmatprep.subr.bf16.mxu0 %v613
      %3329 = vmatpush1.bf16.msra.mxu0 %v612
      %3330 = vmatprep.subr.bf16.mxu0 %v611
      %3331 = vmatpush1.bf16.msra.mxu0 %v610
      %3332 = vmatprep.subr.bf16.mxu0 %v609
      %3333 = vmatpush1.bf16.msra.mxu0 %v608
      %3334 = vmatprep.subr.bf16.mxu0 %v607
      %3335 = vmatpush1.bf16.msra.mxu0 %v606
      %3336 = vmatprep.subr.bf16.mxu0 %v605
      %3337 = vmatpush1.bf16.msra.mxu0 %v604
      %3338 = vmatprep.subr.bf16.mxu0 %v635
      %3339 = vmatpush2.bf16.msra.mxu0 %v634
      %3340 = vmatprep.subr.bf16.mxu0 %v633
      %3341 = vmatpush2.bf16.msra.mxu0 %v632
      %3342 = vmatprep.subr.bf16.mxu0 %v631
      %3343 = vmatpush2.bf16.msra.mxu0 %v630
      %3344 = vmatprep.subr.bf16.mxu0 %v629
      %3345 = vmatpush2.bf16.msra.mxu0 %v628
      %3346 = vmatprep.subr.bf16.mxu0 %v627
      %3347 = vmatpush2.bf16.msra.mxu0 %v626
      %3348 = vmatprep.subr.bf16.mxu0 %v625
      %3349 = vmatpush2.bf16.msra.mxu0 %v624
      %3350 = vmatprep.subr.bf16.mxu0 %v623
      %3351 = vmatpush2.bf16.msra.mxu0 %v622
      %3352 = vmatprep.subr.bf16.mxu0 %v621
      %3353 = vmatpush2.bf16.msra.mxu0 %v620
      %3354 = vmatprep.mubr.bf16.mxu0 %v3232
      %3355 = vmatmul.mubr.bf16.gmra.mxu0 %v3231
      %v3356 = vpop.f32.mrf.mxu0
      %v3357 = vadd.f32 %v3316, %v3356
      %v3358 = vpop.f32.mrf.mxu0
      %v3359 = vadd.f32 %v3318, %v3358
      %v3360 = vpop.f32.mrf.mxu0
      %v3361 = vpop.f32.mrf.mxu0
      %3362 = vdwg.mxu0
      %s3363 = scalar_lea.vmem %s6, 4
      %v3364 = vld [vmem:[%s3363] sm:$0x3]
      %v3366 = vsel %vm3186, %v3364, 0
      %3368 = vmatprep.subr.bf16.mxu0 0
      %3369 = vmatpush1.bf16.msra.mxu0 0
      %3370 = vmatprep.subr.bf16.mxu0 0
      %3371 = vmatpush1.bf16.msra.mxu0 0
      %3372 = vmatprep.subr.bf16.mxu0 0
      %3373 = vmatpush1.bf16.msra.mxu0 0
      %3374 = vmatprep.subr.bf16.mxu0 0
      %3375 = vmatpush1.bf16.msra.mxu0 0
      %3376 = vmatprep.subr.bf16.mxu0 0
      %3377 = vmatpush1.bf16.msra.mxu0 0
      %3378 = vmatprep.subr.bf16.mxu0 0
      %3379 = vmatpush1.bf16.msra.mxu0 0
      %3380 = vmatprep.subr.bf16.mxu0 0
      %3381 = vmatpush1.bf16.msra.mxu0 0
      %3382 = vmatprep.subr.bf16.mxu0 %v3184
      %3383 = vmatpush1.bf16.msra.mxu0 %v3183
      %3384 = vmatprep.subr.bf16.mxu0 0
      %3385 = vmatpush2.bf16.msra.mxu0 0
      %3386 = vmatprep.subr.bf16.mxu0 0
      %3387 = vmatpush2.bf16.msra.mxu0 0
      %3388 = vmatprep.subr.bf16.mxu0 0
      %3389 = vmatpush2.bf16.msra.mxu0 0
      %3390 = vmatprep.subr.bf16.mxu0 0
      %3391 = vmatpush2.bf16.msra.mxu0 0
      %3392 = vmatprep.subr.bf16.mxu0 0
      %3393 = vmatpush2.bf16.msra.mxu0 0
      %3394 = vmatprep.subr.bf16.mxu0 0
      %3395 = vmatpush2.bf16.msra.mxu0 0
      %3396 = vmatprep.subr.bf16.mxu0 0
      %3397 = vmatpush2.bf16.msra.mxu0 0
      %3398 = vmatprep.subr.bf16.mxu0 0
      %3399 = vmatpush2.bf16.msra.mxu0 0
      %3400 = vmatprep.mubr.bf16.mxu0 0
      %3401 = vmatmul.mubr.bf16.gmra.mxu0 %v3366
      %v3402 = vpop.f32.mrf.mxu0
      %v3403 = vadd.f32 0.0, %v3402
      %v3404 = vpop.f32.mrf.mxu0
      %v3405 = vadd.f32 0.0, %v3404
      %v3406 = vpop.f32.mrf.mxu0
      %v3407 = vpop.f32.mrf.mxu0
      %3408 = vdwg.mxu0
      %v3409 = vpack.c.bf16 %v3403, %v3403
      %v3410 = vpack.c.bf16 %v3405, %v3405
      %3411 = vmatprep.subr.bf16.mxu0 %v1223
      %3412 = vmatpush1.bf16.msra.mxu0 %v1222
      %3413 = vmatprep.subr.bf16.mxu0 %v1221
      %3414 = vmatpush1.bf16.msra.mxu0 %v1220
      %3415 = vmatprep.subr.bf16.mxu0 %v1219
      %3416 = vmatpush1.bf16.msra.mxu0 %v1218
      %3417 = vmatprep.subr.bf16.mxu0 %v1217
      %3418 = vmatpush1.bf16.msra.mxu0 %v1216
      %3419 = vmatprep.subr.bf16.mxu0 %v1215
      %3420 = vmatpush1.bf16.msra.mxu0 %v1214
      %3421 = vmatprep.subr.bf16.mxu0 %v1213
      %3422 = vmatpush1.bf16.msra.mxu0 %v1212
      %3423 = vmatprep.subr.bf16.mxu0 %v1211
      %3424 = vmatpush1.bf16.msra.mxu0 %v1210
      %3425 = vmatprep.subr.bf16.mxu0 %v1209
      %3426 = vmatpush1.bf16.msra.mxu0 %v1208
      %3427 = vmatprep.subr.bf16.mxu0 %v1239
      %3428 = vmatpush2.bf16.msra.mxu0 %v1238
      %3429 = vmatprep.subr.bf16.mxu0 %v1237
      %3430 = vmatpush2.bf16.msra.mxu0 %v1236
      %3431 = vmatprep.subr.bf16.mxu0 %v1235
      %3432 = vmatpush2.bf16.msra.mxu0 %v1234
      %3433 = vmatprep.subr.bf16.mxu0 %v1233
      %3434 = vmatpush2.bf16.msra.mxu0 %v1232
      %3435 = vmatprep.subr.bf16.mxu0 %v1231
      %3436 = vmatpush2.bf16.msra.mxu0 %v1230
      %3437 = vmatprep.subr.bf16.mxu0 %v1229
      %3438 = vmatpush2.bf16.msra.mxu0 %v1228
      %3439 = vmatprep.subr.bf16.mxu0 %v1227
      %3440 = vmatpush2.bf16.msra.mxu0 %v1226
      %3441 = vmatprep.subr.bf16.mxu0 %v1225
      %3442 = vmatpush2.bf16.msra.mxu0 %v1224
      %3443 = vmatprep.mubr.bf16.mxu0 %v3410
      %3444 = vmatmul.mubr.bf16.gmra.mxu0 %v3409
      %v3445 = vpop.f32.mrf.mxu0
      %v3446 = vadd.f32 0.0, %v3445
      %v3447 = vpop.f32.mrf.mxu0
      %v3448 = vadd.f32 0.0, %v3447
      %v3449 = vpop.f32.mrf.mxu0
      %v3450 = vpop.f32.mrf.mxu0
      %3451 = vdwg.mxu0
      %v3452 = vadd.f32 %v3357, %v3446
      %v3453 = vadd.f32 %v3359, %v3448
      %s3454 = scalar_lea.vmem %s6, 6
      %v3455 = vld [vmem:[%s3454] sm:$0x3]
      %v3457 = vsel %vm3186, %v3455, 0
      %3459 = vmatprep.subr.bf16.mxu0 0
      %3460 = vmatpush1.bf16.msra.mxu0 0
      %3461 = vmatprep.subr.bf16.mxu0 0
      %3462 = vmatpush1.bf16.msra.mxu0 0
      %3463 = vmatprep.subr.bf16.mxu0 0
      %3464 = vmatpush1.bf16.msra.mxu0 0
      %3465 = vmatprep.subr.bf16.mxu0 0
      %3466 = vmatpush1.bf16.msra.mxu0 0
      %3467 = vmatprep.subr.bf16.mxu0 0
      %3468 = vmatpush1.bf16.msra.mxu0 0
      %3469 = vmatprep.subr.bf16.mxu0 0
      %3470 = vmatpush1.bf16.msra.mxu0 0
      %3471 = vmatprep.subr.bf16.mxu0 0
      %3472 = vmatpush1.bf16.msra.mxu0 0
      %3473 = vmatprep.subr.bf16.mxu0 %v3184
      %3474 = vmatpush1.bf16.msra.mxu0 %v3183
      %3475 = vmatprep.subr.bf16.mxu0 0
      %3476 = vmatpush2.bf16.msra.mxu0 0
      %3477 = vmatprep.subr.bf16.mxu0 0
      %3478 = vmatpush2.bf16.msra.mxu0 0
      %3479 = vmatprep.subr.bf16.mxu0 0
      %3480 = vmatpush2.bf16.msra.mxu0 0
      %3481 = vmatprep.subr.bf16.mxu0 0
      %3482 = vmatpush2.bf16.msra.mxu0 0
      %3483 = vmatprep.subr.bf16.mxu0 0
      %3484 = vmatpush2.bf16.msra.mxu0 0
      %3485 = vmatprep.subr.bf16.mxu0 0
      %3486 = vmatpush2.bf16.msra.mxu0 0
      %3487 = vmatprep.subr.bf16.mxu0 0
      %3488 = vmatpush2.bf16.msra.mxu0 0
      %3489 = vmatprep.subr.bf16.mxu0 0
      %3490 = vmatpush2.bf16.msra.mxu0 0
      %3491 = vmatprep.mubr.bf16.mxu0 0
      %3492 = vmatmul.mubr.bf16.gmra.mxu0 %v3457
      %v3493 = vpop.f32.mrf.mxu0
      %v3494 = vadd.f32 0.0, %v3493
      %v3495 = vpop.f32.mrf.mxu0
      %v3496 = vadd.f32 0.0, %v3495
      %v3497 = vpop.f32.mrf.mxu0
      %v3498 = vpop.f32.mrf.mxu0
      %3499 = vdwg.mxu0
      %v3500 = vpack.c.bf16 %v3494, %v3494
      %v3501 = vpack.c.bf16 %v3496, %v3496
      %3502 = vmatprep.subr.bf16.mxu0 %v1523
      %3503 = vmatpush1.bf16.msra.mxu0 %v1522
      %3504 = vmatprep.subr.bf16.mxu0 %v1521
      %3505 = vmatpush1.bf16.msra.mxu0 %v1520
      %3506 = vmatprep.subr.bf16.mxu0 %v1519
      %3507 = vmatpush1.bf16.msra.mxu0 %v1518
      %3508 = vmatprep.subr.bf16.mxu0 %v1517
      %3509 = vmatpush1.bf16.msra.mxu0 %v1516
      %3510 = vmatprep.subr.bf16.mxu0 %v1515
      %3511 = vmatpush1.bf16.msra.mxu0 %v1514
      %3512 = vmatprep.subr.bf16.mxu0 %v1513
      %3513 = vmatpush1.bf16.msra.mxu0 %v1512
      %3514 = vmatprep.subr.bf16.mxu0 %v1511
      %3515 = vmatpush1.bf16.msra.mxu0 %v1510
      %3516 = vmatprep.subr.bf16.mxu0 %v1509
      %3517 = vmatpush1.bf16.msra.mxu0 %v1508
      %3518 = vmatprep.subr.bf16.mxu0 %v1539
      %3519 = vmatpush2.bf16.msra.mxu0 %v1538
      %3520 = vmatprep.subr.bf16.mxu0 %v1537
      %3521 = vmatpush2.bf16.msra.mxu0 %v1536
      %3522 = vmatprep.subr.bf16.mxu0 %v1535
      %3523 = vmatpush2.bf16.msra.mxu0 %v1534
      %3524 = vmatprep.subr.bf16.mxu0 %v1533
      %3525 = vmatpush2.bf16.msra.mxu0 %v1532
      %3526 = vmatprep.subr.bf16.mxu0 %v1531
      %3527 = vmatpush2.bf16.msra.mxu0 %v1530
      %3528 = vmatprep.subr.bf16.mxu0 %v1529
      %3529 = vmatpush2.bf16.msra.mxu0 %v1528
      %3530 = vmatprep.subr.bf16.mxu0 %v1527
      %3531 = vmatpush2.bf16.msra.mxu0 %v1526
      %3532 = vmatprep.subr.bf16.mxu0 %v1525
      %3533 = vmatpush2.bf16.msra.mxu0 %v1524
      %3534 = vmatprep.mubr.bf16.mxu0 %v3501
      %3535 = vmatmul.mubr.bf16.gmra.mxu0 %v3500
      %v3536 = vpop.f32.mrf.mxu0
      %v3537 = vadd.f32 0.0, %v3536
      %v3538 = vpop.f32.mrf.mxu0
      %v3539 = vadd.f32 0.0, %v3538
      %v3540 = vpop.f32.mrf.mxu0
      %v3541 = vpop.f32.mrf.mxu0
      %3542 = vdwg.mxu0
      %v3543 = vadd.f32 %v3452, %v3537
      %v3544 = vadd.f32 %v3453, %v3539
      %s3545 = scalar_lea.vmem %s6, 8
      %v3546 = vld [vmem:[%s3545] sm:$0x3]
      %v3548 = vsel %vm3186, %v3546, 0
      %3550 = vmatprep.subr.bf16.mxu0 0
      %3551 = vmatpush1.bf16.msra.mxu0 0
      %3552 = vmatprep.subr.bf16.mxu0 0
      %3553 = vmatpush1.bf16.msra.mxu0 0
      %3554 = vmatprep.subr.bf16.mxu0 0
      %3555 = vmatpush1.bf16.msra.mxu0 0
      %3556 = vmatprep.subr.bf16.mxu0 0
      %3557 = vmatpush1.bf16.msra.mxu0 0
      %3558 = vmatprep.subr.bf16.mxu0 0
      %3559 = vmatpush1.bf16.msra.mxu0 0
      %3560 = vmatprep.subr.bf16.mxu0 0
      %3561 = vmatpush1.bf16.msra.mxu0 0
      %3562 = vmatprep.subr.bf16.mxu0 0
      %3563 = vmatpush1.bf16.msra.mxu0 0
      %3564 = vmatprep.subr.bf16.mxu0 %v3184
      %3565 = vmatpush1.bf16.msra.mxu0 %v3183
      %3566 = vmatprep.subr.bf16.mxu0 0
      %3567 = vmatpush2.bf16.msra.mxu0 0
      %3568 = vmatprep.subr.bf16.mxu0 0
      %3569 = vmatpush2.bf16.msra.mxu0 0
      %3570 = vmatprep.subr.bf16.mxu0 0
      %3571 = vmatpush2.bf16.msra.mxu0 0
      %3572 = vmatprep.subr.bf16.mxu0 0
      %3573 = vmatpush2.bf16.msra.mxu0 0
      %3574 = vmatprep.subr.bf16.mxu0 0
      %3575 = vmatpush2.bf16.msra.mxu0 0
      %3576 = vmatprep.subr.bf16.mxu0 0
      %3577 = vmatpush2.bf16.msra.mxu0 0
      %3578 = vmatprep.subr.bf16.mxu0 0
      %3579 = vmatpush2.bf16.msra.mxu0 0
      %3580 = vmatprep.subr.bf16.mxu0 0
      %3581 = vmatpush2.bf16.msra.mxu0 0
      %3582 = vmatprep.mubr.bf16.mxu0 0
      %3583 = vmatmul.mubr.bf16.gmra.mxu0 %v3548
      %v3584 = vpop.f32.mrf.mxu0
      %v3585 = vadd.f32 0.0, %v3584
      %v3586 = vpop.f32.mrf.mxu0
      %v3587 = vadd.f32 0.0, %v3586
      %v3588 = vpop.f32.mrf.mxu0
      %v3589 = vpop.f32.mrf.mxu0
      %3590 = vdwg.mxu0
      %v3591 = vpack.c.bf16 %v3585, %v3585
      %v3592 = vpack.c.bf16 %v3587, %v3587
      %3593 = vmatprep.subr.bf16.mxu0 %v1823
      %3594 = vmatpush1.bf16.msra.mxu0 %v1822
      %3595 = vmatprep.subr.bf16.mxu0 %v1821
      %3596 = vmatpush1.bf16.msra.mxu0 %v1820
      %3597 = vmatprep.subr.bf16.mxu0 %v1819
      %3598 = vmatpush1.bf16.msra.mxu0 %v1818
      %3599 = vmatprep.subr.bf16.mxu0 %v1817
      %3600 = vmatpush1.bf16.msra.mxu0 %v1816
      %3601 = vmatprep.subr.bf16.mxu0 %v1815
      %3602 = vmatpush1.bf16.msra.mxu0 %v1814
      %3603 = vmatprep.subr.bf16.mxu0 %v1813
      %3604 = vmatpush1.bf16.msra.mxu0 %v1812
      %3605 = vmatprep.subr.bf16.mxu0 %v1811
      %3606 = vmatpush1.bf16.msra.mxu0 %v1810
      %3607 = vmatprep.subr.bf16.mxu0 %v1809
      %3608 = vmatpush1.bf16.msra.mxu0 %v1808
      %3609 = vmatprep.subr.bf16.mxu0 %v1839
      %3610 = vmatpush2.bf16.msra.mxu0 %v1838
      %3611 = vmatprep.subr.bf16.mxu0 %v1837
      %3612 = vmatpush2.bf16.msra.mxu0 %v1836
      %3613 = vmatprep.subr.bf16.mxu0 %v1835
      %3614 = vmatpush2.bf16.msra.mxu0 %v1834
      %3615 = vmatprep.subr.bf16.mxu0 %v1833
      %3616 = vmatpush2.bf16.msra.mxu0 %v1832
      %3617 = vmatprep.subr.bf16.mxu0 %v1831
      %3618 = vmatpush2.bf16.msra.mxu0 %v1830
      %3619 = vmatprep.subr.bf16.mxu0 %v1829
      %3620 = vmatpush2.bf16.msra.mxu0 %v1828
      %3621 = vmatprep.subr.bf16.mxu0 %v1827
      %3622 = vmatpush2.bf16.msra.mxu0 %v1826
      %3623 = vmatprep.subr.bf16.mxu0 %v1825
      %3624 = vmatpush2.bf16.msra.mxu0 %v1824
      %3625 = vmatprep.mubr.bf16.mxu0 %v3592
      %3626 = vmatmul.mubr.bf16.gmra.mxu0 %v3591
      %v3627 = vpop.f32.mrf.mxu0
      %v3628 = vadd.f32 0.0, %v3627
      %v3629 = vpop.f32.mrf.mxu0
      %v3630 = vadd.f32 0.0, %v3629
      %v3631 = vpop.f32.mrf.mxu0
      %v3632 = vpop.f32.mrf.mxu0
      %3633 = vdwg.mxu0
      %v3634 = vadd.f32 %v3543, %v3628
      %v3635 = vadd.f32 %v3544, %v3630
      %s3636 = scalar_lea.vmem %s6, 10
      %v3637 = vld [vmem:[%s3636] sm:$0x3]
      %v3639 = vsel %vm3186, %v3637, 0
      %3641 = vmatprep.subr.bf16.mxu0 0
      %3642 = vmatpush1.bf16.msra.mxu0 0
      %3643 = vmatprep.subr.bf16.mxu0 0
      %3644 = vmatpush1.bf16.msra.mxu0 0
      %3645 = vmatprep.subr.bf16.mxu0 0
      %3646 = vmatpush1.bf16.msra.mxu0 0
      %3647 = vmatprep.subr.bf16.mxu0 0
      %3648 = vmatpush1.bf16.msra.mxu0 0
      %3649 = vmatprep.subr.bf16.mxu0 0
      %3650 = vmatpush1.bf16.msra.mxu0 0
      %3651 = vmatprep.subr.bf16.mxu0 0
      %3652 = vmatpush1.bf16.msra.mxu0 0
      %3653 = vmatprep.subr.bf16.mxu0 0
      %3654 = vmatpush1.bf16.msra.mxu0 0
      %3655 = vmatprep.subr.bf16.mxu0 %v3184
      %3656 = vmatpush1.bf16.msra.mxu0 %v3183
      %3657 = vmatprep.subr.bf16.mxu0 0
      %3658 = vmatpush2.bf16.msra.mxu0 0
      %3659 = vmatprep.subr.bf16.mxu0 0
      %3660 = vmatpush2.bf16.msra.mxu0 0
      %3661 = vmatprep.subr.bf16.mxu0 0
      %3662 = vmatpush2.bf16.msra.mxu0 0
      %3663 = vmatprep.subr.bf16.mxu0 0
      %3664 = vmatpush2.bf16.msra.mxu0 0
      %3665 = vmatprep.subr.bf16.mxu0 0
      %3666 = vmatpush2.bf16.msra.mxu0 0
      %3667 = vmatprep.subr.bf16.mxu0 0
      %3668 = vmatpush2.bf16.msra.mxu0 0
      %3669 = vmatprep.subr.bf16.mxu0 0
      %3670 = vmatpush2.bf16.msra.mxu0 0
      %3671 = vmatprep.subr.bf16.mxu0 0
      %3672 = vmatpush2.bf16.msra.mxu0 0
      %3673 = vmatprep.mubr.bf16.mxu0 0
      %3674 = vmatmul.mubr.bf16.gmra.mxu0 %v3639
      %v3675 = vpop.f32.mrf.mxu0
      %v3676 = vadd.f32 0.0, %v3675
      %v3677 = vpop.f32.mrf.mxu0
      %v3678 = vadd.f32 0.0, %v3677
      %v3679 = vpop.f32.mrf.mxu0
      %v3680 = vpop.f32.mrf.mxu0
      %3681 = vdwg.mxu0
      %v3682 = vpack.c.bf16 %v3676, %v3676
      %v3683 = vpack.c.bf16 %v3678, %v3678
      %3684 = vmatprep.subr.bf16.mxu0 %v2123
      %3685 = vmatpush1.bf16.msra.mxu0 %v2122
      %3686 = vmatprep.subr.bf16.mxu0 %v2121
      %3687 = vmatpush1.bf16.msra.mxu0 %v2120
      %3688 = vmatprep.subr.bf16.mxu0 %v2119
      %3689 = vmatpush1.bf16.msra.mxu0 %v2118
      %3690 = vmatprep.subr.bf16.mxu0 %v2117
      %3691 = vmatpush1.bf16.msra.mxu0 %v2116
      %3692 = vmatprep.subr.bf16.mxu0 %v2115
      %3693 = vmatpush1.bf16.msra.mxu0 %v2114
      %3694 = vmatprep.subr.bf16.mxu0 %v2113
      %3695 = vmatpush1.bf16.msra.mxu0 %v2112
      %3696 = vmatprep.subr.bf16.mxu0 %v2111
      %3697 = vmatpush1.bf16.msra.mxu0 %v2110
      %3698 = vmatprep.subr.bf16.mxu0 %v2109
      %3699 = vmatpush1.bf16.msra.mxu0 %v2108
      %3700 = vmatprep.subr.bf16.mxu0 %v2139
      %3701 = vmatpush2.bf16.msra.mxu0 %v2138
      %3702 = vmatprep.subr.bf16.mxu0 %v2137
      %3703 = vmatpush2.bf16.msra.mxu0 %v2136
      %3704 = vmatprep.subr.bf16.mxu0 %v2135
      %3705 = vmatpush2.bf16.msra.mxu0 %v2134
      %3706 = vmatprep.subr.bf16.mxu0 %v2133
      %3707 = vmatpush2.bf16.msra.mxu0 %v2132
      %3708 = vmatprep.subr.bf16.mxu0 %v2131
      %3709 = vmatpush2.bf16.msra.mxu0 %v2130
      %3710 = vmatprep.subr.bf16.mxu0 %v2129
      %3711 = vmatpush2.bf16.msra.mxu0 %v2128
      %3712 = vmatprep.subr.bf16.mxu0 %v2127
      %3713 = vmatpush2.bf16.msra.mxu0 %v2126
      %3714 = vmatprep.subr.bf16.mxu0 %v2125
      %3715 = vmatpush2.bf16.msra.mxu0 %v2124
      %3716 = vmatprep.mubr.bf16.mxu0 %v3683
      %3717 = vmatmul.mubr.bf16.gmra.mxu0 %v3682
      %v3718 = vpop.f32.mrf.mxu0
      %v3719 = vadd.f32 0.0, %v3718
      %v3720 = vpop.f32.mrf.mxu0
      %v3721 = vadd.f32 0.0, %v3720
      %v3722 = vpop.f32.mrf.mxu0
      %v3723 = vpop.f32.mrf.mxu0
      %3724 = vdwg.mxu0
      %v3725 = vadd.f32 %v3634, %v3719
      %v3726 = vadd.f32 %v3635, %v3721
      %s3727 = scalar_lea.vmem %s6, 12
      %v3728 = vld [vmem:[%s3727] sm:$0x3]
      %v3730 = vsel %vm3186, %v3728, 0
      %3732 = vmatprep.subr.bf16.mxu0 0
      %3733 = vmatpush1.bf16.msra.mxu0 0
      %3734 = vmatprep.subr.bf16.mxu0 0
      %3735 = vmatpush1.bf16.msra.mxu0 0
      %3736 = vmatprep.subr.bf16.mxu0 0
      %3737 = vmatpush1.bf16.msra.mxu0 0
      %3738 = vmatprep.subr.bf16.mxu0 0
      %3739 = vmatpush1.bf16.msra.mxu0 0
      %3740 = vmatprep.subr.bf16.mxu0 0
      %3741 = vmatpush1.bf16.msra.mxu0 0
      %3742 = vmatprep.subr.bf16.mxu0 0
      %3743 = vmatpush1.bf16.msra.mxu0 0
      %3744 = vmatprep.subr.bf16.mxu0 0
      %3745 = vmatpush1.bf16.msra.mxu0 0
      %3746 = vmatprep.subr.bf16.mxu0 %v3184
      %3747 = vmatpush1.bf16.msra.mxu0 %v3183
      %3748 = vmatprep.subr.bf16.mxu0 0
      %3749 = vmatpush2.bf16.msra.mxu0 0
      %3750 = vmatprep.subr.bf16.mxu0 0
      %3751 = vmatpush2.bf16.msra.mxu0 0
      %3752 = vmatprep.subr.bf16.mxu0 0
      %3753 = vmatpush2.bf16.msra.mxu0 0
      %3754 = vmatprep.subr.bf16.mxu0 0
      %3755 = vmatpush2.bf16.msra.mxu0 0
      %3756 = vmatprep.subr.bf16.mxu0 0
      %3757 = vmatpush2.bf16.msra.mxu0 0
      %3758 = vmatprep.subr.bf16.mxu0 0
      %3759 = vmatpush2.bf16.msra.mxu0 0
      %3760 = vmatprep.subr.bf16.mxu0 0
      %3761 = vmatpush2.bf16.msra.mxu0 0
      %3762 = vmatprep.subr.bf16.mxu0 0
      %3763 = vmatpush2.bf16.msra.mxu0 0
      %3764 = vmatprep.mubr.bf16.mxu0 0
      %3765 = vmatmul.mubr.bf16.gmra.mxu0 %v3730
      %v3766 = vpop.f32.mrf.mxu0
      %v3767 = vadd.f32 0.0, %v3766
      %v3768 = vpop.f32.mrf.mxu0
      %v3769 = vadd.f32 0.0, %v3768
      %v3770 = vpop.f32.mrf.mxu0
      %v3771 = vpop.f32.mrf.mxu0
      %3772 = vdwg.mxu0
      %v3773 = vpack.c.bf16 %v3767, %v3767
      %v3774 = vpack.c.bf16 %v3769, %v3769
      %3775 = vmatprep.subr.bf16.mxu0 %v2423
      %3776 = vmatpush1.bf16.msra.mxu0 %v2422
      %3777 = vmatprep.subr.bf16.mxu0 %v2421
      %3778 = vmatpush1.bf16.msra.mxu0 %v2420
      %3779 = vmatprep.subr.bf16.mxu0 %v2419
      %3780 = vmatpush1.bf16.msra.mxu0 %v2418
      %3781 = vmatprep.subr.bf16.mxu0 %v2417
      %3782 = vmatpush1.bf16.msra.mxu0 %v2416
      %3783 = vmatprep.subr.bf16.mxu0 %v2415
      %3784 = vmatpush1.bf16.msra.mxu0 %v2414
      %3785 = vmatprep.subr.bf16.mxu0 %v2413
      %3786 = vmatpush1.bf16.msra.mxu0 %v2412
      %3787 = vmatprep.subr.bf16.mxu0 %v2411
      %3788 = vmatpush1.bf16.msra.mxu0 %v2410
      %3789 = vmatprep.subr.bf16.mxu0 %v2409
      %3790 = vmatpush1.bf16.msra.mxu0 %v2408
      %3791 = vmatprep.subr.bf16.mxu0 %v2439
      %3792 = vmatpush2.bf16.msra.mxu0 %v2438
      %3793 = vmatprep.subr.bf16.mxu0 %v2437
      %3794 = vmatpush2.bf16.msra.mxu0 %v2436
      %3795 = vmatprep.subr.bf16.mxu0 %v2435
      %3796 = vmatpush2.bf16.msra.mxu0 %v2434
      %3797 = vmatprep.subr.bf16.mxu0 %v2433
      %3798 = vmatpush2.bf16.msra.mxu0 %v2432
      %3799 = vmatprep.subr.bf16.mxu0 %v2431
      %3800 = vmatpush2.bf16.msra.mxu0 %v2430
      %3801 = vmatprep.subr.bf16.mxu0 %v2429
      %3802 = vmatpush2.bf16.msra.mxu0 %v2428
      %3803 = vmatprep.subr.bf16.mxu0 %v2427
      %3804 = vmatpush2.bf16.msra.mxu0 %v2426
      %3805 = vmatprep.subr.bf16.mxu0 %v2425
      %3806 = vmatpush2.bf16.msra.mxu0 %v2424
      %3807 = vmatprep.mubr.bf16.mxu0 %v3774
      %3808 = vmatmul.mubr.bf16.gmra.mxu0 %v3773
      %v3809 = vpop.f32.mrf.mxu0
      %v3810 = vadd.f32 0.0, %v3809
      %v3811 = vpop.f32.mrf.mxu0
      %v3812 = vadd.f32 0.0, %v3811
      %v3813 = vpop.f32.mrf.mxu0
      %v3814 = vpop.f32.mrf.mxu0
      %3815 = vdwg.mxu0
      %v3816 = vadd.f32 %v3725, %v3810
      %v3817 = vadd.f32 %v3726, %v3812
      %s3818 = scalar_lea.vmem %s6, 14
      %v3819 = vld [vmem:[%s3818] sm:$0x3]
      %v3821 = vsel %vm3186, %v3819, 0
      %3823 = vmatprep.subr.bf16.mxu0 0
      %3824 = vmatpush1.bf16.msra.mxu0 0
      %3825 = vmatprep.subr.bf16.mxu0 0
      %3826 = vmatpush1.bf16.msra.mxu0 0
      %3827 = vmatprep.subr.bf16.mxu0 0
      %3828 = vmatpush1.bf16.msra.mxu0 0
      %3829 = vmatprep.subr.bf16.mxu0 0
      %3830 = vmatpush1.bf16.msra.mxu0 0
      %3831 = vmatprep.subr.bf16.mxu0 0
      %3832 = vmatpush1.bf16.msra.mxu0 0
      %3833 = vmatprep.subr.bf16.mxu0 0
      %3834 = vmatpush1.bf16.msra.mxu0 0
      %3835 = vmatprep.subr.bf16.mxu0 0
      %3836 = vmatpush1.bf16.msra.mxu0 0
      %3837 = vmatprep.subr.bf16.mxu0 %v3184
      %3838 = vmatpush1.bf16.msra.mxu0 %v3183
      %3839 = vmatprep.subr.bf16.mxu0 0
      %3840 = vmatpush2.bf16.msra.mxu0 0
      %3841 = vmatprep.subr.bf16.mxu0 0
      %3842 = vmatpush2.bf16.msra.mxu0 0
      %3843 = vmatprep.subr.bf16.mxu0 0
      %3844 = vmatpush2.bf16.msra.mxu0 0
      %3845 = vmatprep.subr.bf16.mxu0 0
      %3846 = vmatpush2.bf16.msra.mxu0 0
      %3847 = vmatprep.subr.bf16.mxu0 0
      %3848 = vmatpush2.bf16.msra.mxu0 0
      %3849 = vmatprep.subr.bf16.mxu0 0
      %3850 = vmatpush2.bf16.msra.mxu0 0
      %3851 = vmatprep.subr.bf16.mxu0 0
      %3852 = vmatpush2.bf16.msra.mxu0 0
      %3853 = vmatprep.subr.bf16.mxu0 0
      %3854 = vmatpush2.bf16.msra.mxu0 0
      %3855 = vmatprep.mubr.bf16.mxu0 0
      %3856 = vmatmul.mubr.bf16.gmra.mxu0 %v3821
      %v3857 = vpop.f32.mrf.mxu0
      %v3858 = vadd.f32 0.0, %v3857
      %v3859 = vpop.f32.mrf.mxu0
      %v3860 = vadd.f32 0.0, %v3859
      %v3861 = vpop.f32.mrf.mxu0
      %v3862 = vpop.f32.mrf.mxu0
      %3863 = vdwg.mxu0
      %v3864 = vpack.c.bf16 %v3858, %v3858
      %v3865 = vpack.c.bf16 %v3860, %v3860
      %3866 = vmatprep.subr.bf16.mxu0 %v2723
      %3867 = vmatpush1.bf16.msra.mxu0 %v2722
      %3868 = vmatprep.subr.bf16.mxu0 %v2721
      %3869 = vmatpush1.bf16.msra.mxu0 %v2720
      %3870 = vmatprep.subr.bf16.mxu0 %v2719
      %3871 = vmatpush1.bf16.msra.mxu0 %v2718
      %3872 = vmatprep.subr.bf16.mxu0 %v2717
      %3873 = vmatpush1.bf16.msra.mxu0 %v2716
      %3874 = vmatprep.subr.bf16.mxu0 %v2715
      %3875 = vmatpush1.bf16.msra.mxu0 %v2714
      %3876 = vmatprep.subr.bf16.mxu0 %v2713
      %3877 = vmatpush1.bf16.msra.mxu0 %v2712
      %3878 = vmatprep.subr.bf16.mxu0 %v2711
      %3879 = vmatpush1.bf16.msra.mxu0 %v2710
      %3880 = vmatprep.subr.bf16.mxu0 %v2709
      %3881 = vmatpush1.bf16.msra.mxu0 %v2708
      %3882 = vmatprep.subr.bf16.mxu0 %v2739
      %3883 = vmatpush2.bf16.msra.mxu0 %v2738
      %3884 = vmatprep.subr.bf16.mxu0 %v2737
      %3885 = vmatpush2.bf16.msra.mxu0 %v2736
      %3886 = vmatprep.subr.bf16.mxu0 %v2735
      %3887 = vmatpush2.bf16.msra.mxu0 %v2734
      %3888 = vmatprep.subr.bf16.mxu0 %v2733
      %3889 = vmatpush2.bf16.msra.mxu0 %v2732
      %3890 = vmatprep.subr.bf16.mxu0 %v2731
      %3891 = vmatpush2.bf16.msra.mxu0 %v2730
      %3892 = vmatprep.subr.bf16.mxu0 %v2729
      %3893 = vmatpush2.bf16.msra.mxu0 %v2728
      %3894 = vmatprep.subr.bf16.mxu0 %v2727
      %3895 = vmatpush2.bf16.msra.mxu0 %v2726
      %3896 = vmatprep.subr.bf16.mxu0 %v2725
      %3897 = vmatpush2.bf16.msra.mxu0 %v2724
      %3898 = vmatprep.mubr.bf16.mxu0 %v3865
      %3899 = vmatmul.mubr.bf16.gmra.mxu0 %v3864
      %v3900 = vpop.f32.mrf.mxu0
      %v3901 = vadd.f32 0.0, %v3900
      %v3902 = vpop.f32.mrf.mxu0
      %v3903 = vadd.f32 0.0, %v3902
      %v3904 = vpop.f32.mrf.mxu0
      %v3905 = vpop.f32.mrf.mxu0
      %3906 = vdwg.mxu0
      %v3907 = vadd.f32 %v3816, %v3901
      %v3908 = vadd.f32 %v3817, %v3903
      %s3909 = scalar_lea.vmem %s6, 16
      %v3910 = vld [vmem:[%s3909] sm:$0x3]
      %v3912 = vsel %vm3186, %v3910, 0
      %3914 = vmatprep.subr.bf16.mxu0 0
      %3915 = vmatpush1.bf16.msra.mxu0 0
      %3916 = vmatprep.subr.bf16.mxu0 0
      %3917 = vmatpush1.bf16.msra.mxu0 0
      %3918 = vmatprep.subr.bf16.mxu0 0
      %3919 = vmatpush1.bf16.msra.mxu0 0
      %3920 = vmatprep.subr.bf16.mxu0 0
      %3921 = vmatpush1.bf16.msra.mxu0 0
      %3922 = vmatprep.subr.bf16.mxu0 0
      %3923 = vmatpush1.bf16.msra.mxu0 0
      %3924 = vmatprep.subr.bf16.mxu0 0
      %3925 = vmatpush1.bf16.msra.mxu0 0
      %3926 = vmatprep.subr.bf16.mxu0 0
      %3927 = vmatpush1.bf16.msra.mxu0 0
      %3928 = vmatprep.subr.bf16.mxu0 %v3184
      %3929 = vmatpush1.bf16.msra.mxu0 %v3183
      %3930 = vmatprep.subr.bf16.mxu0 0
      %3931 = vmatpush2.bf16.msra.mxu0 0
      %3932 = vmatprep.subr.bf16.mxu0 0
      %3933 = vmatpush2.bf16.msra.mxu0 0
      %3934 = vmatprep.subr.bf16.mxu0 0
      %3935 = vmatpush2.bf16.msra.mxu0 0
      %3936 = vmatprep.subr.bf16.mxu0 0
      %3937 = vmatpush2.bf16.msra.mxu0 0
      %3938 = vmatprep.subr.bf16.mxu0 0
      %3939 = vmatpush2.bf16.msra.mxu0 0
      %3940 = vmatprep.subr.bf16.mxu0 0
      %3941 = vmatpush2.bf16.msra.mxu0 0
      %3942 = vmatprep.subr.bf16.mxu0 0
      %3943 = vmatpush2.bf16.msra.mxu0 0
      %3944 = vmatprep.subr.bf16.mxu0 0
      %3945 = vmatpush2.bf16.msra.mxu0 0
      %3946 = vmatprep.mubr.bf16.mxu0 0
      %3947 = vmatmul.mubr.bf16.gmra.mxu0 %v3912
      %v3948 = vpop.f32.mrf.mxu0
      %v3949 = vadd.f32 0.0, %v3948
      %v3950 = vpop.f32.mrf.mxu0
      %v3951 = vadd.f32 0.0, %v3950
      %v3952 = vpop.f32.mrf.mxu0
      %v3953 = vpop.f32.mrf.mxu0
      %3954 = vdwg.mxu0
      %v3955 = vpack.c.bf16 %v3949, %v3949
      %v3956 = vpack.c.bf16 %v3951, %v3951
      %3957 = vmatprep.subr.bf16.mxu0 %v3023
      %3958 = vmatpush1.bf16.msra.mxu0 %v3022
      %3959 = vmatprep.subr.bf16.mxu0 %v3021
      %3960 = vmatpush1.bf16.msra.mxu0 %v3020
      %3961 = vmatprep.subr.bf16.mxu0 %v3019
      %3962 = vmatpush1.bf16.msra.mxu0 %v3018
      %3963 = vmatprep.subr.bf16.mxu0 %v3017
      %3964 = vmatpush1.bf16.msra.mxu0 %v3016
      %3965 = vmatprep.subr.bf16.mxu0 %v3015
      %3966 = vmatpush1.bf16.msra.mxu0 %v3014
      %3967 = vmatprep.subr.bf16.mxu0 %v3013
      %3968 = vmatpush1.bf16.msra.mxu0 %v3012
      %3969 = vmatprep.subr.bf16.mxu0 %v3011
      %3970 = vmatpush1.bf16.msra.mxu0 %v3010
      %3971 = vmatprep.subr.bf16.mxu0 %v3009
      %3972 = vmatpush1.bf16.msra.mxu0 %v3008
      %3973 = vmatprep.subr.bf16.mxu0 %v3039
      %3974 = vmatpush2.bf16.msra.mxu0 %v3038
      %3975 = vmatprep.subr.bf16.mxu0 %v3037
      %3976 = vmatpush2.bf16.msra.mxu0 %v3036
      %3977 = vmatprep.subr.bf16.mxu0 %v3035
      %3978 = vmatpush2.bf16.msra.mxu0 %v3034
      %3979 = vmatprep.subr.bf16.mxu0 %v3033
      %3980 = vmatpush2.bf16.msra.mxu0 %v3032
      %3981 = vmatprep.subr.bf16.mxu0 %v3031
      %3982 = vmatpush2.bf16.msra.mxu0 %v3030
      %3983 = vmatprep.subr.bf16.mxu0 %v3029
      %3984 = vmatpush2.bf16.msra.mxu0 %v3028
      %3985 = vmatprep.subr.bf16.mxu0 %v3027
      %3986 = vmatpush2.bf16.msra.mxu0 %v3026
      %3987 = vmatprep.subr.bf16.mxu0 %v3025
      %3988 = vmatpush2.bf16.msra.mxu0 %v3024
      %3989 = vmatprep.mubr.bf16.mxu0 %v3956
      %3990 = vmatmul.mubr.bf16.gmra.mxu0 %v3955
      %v3991 = vpop.f32.mrf.mxu0
      %v3992 = vadd.f32 0.0, %v3991
      %v3993 = vpop.f32.mrf.mxu0
      %v3994 = vadd.f32 0.0, %v3993
      %v3995 = vpop.f32.mrf.mxu0
      %v3996 = vpop.f32.mrf.mxu0
      %3997 = vdwg.mxu0
      %v3998 = vadd.f32 %v3907, %v3992
      %v3999 = vadd.f32 %v3908, %v3994
      %v4000 = vld [vmem:[%s7] sm:$0x7]
      %4002 = vset.pattern.permute.xlu0 0
      %4003 = vperm.xlu0 %4002, %v4000
      %v4004 = vpop.permute.xlu0 %4003
      %v4006 = vadd.f32 %v3998, %v4004
      %v4007 = vadd.f32 %v3999, %v4004
      %v4008 = vmul.f32 %v4006, 127.5
      %v4009 = vmul.f32 %v4007, 127.5
      %v4010 = vmul.f32 %v466, 0.5
      %v4011 = vmul.f32 %v468, 0.5
      %v4012 = vadd.f32 %v4008, %v4010
      %v4013 = vadd.f32 %v4009, %v4011
      %v4016 = vcombine.low %v4012, %v4013
      %4018 = vst [vmem:[%s325] sm:$0x77] %v4016
      %p4019 = scmp.lt.s32.totalorder %s19, 1
      %s4020 = scalar_select %p4019, %s19, 1
      %s4021 = smul.addr %s4020, 2
      %s4022 = smul.addr %s4021, 4
      %s4023 = scalar_lea.vmem %s8, %s4022
      // Predicated region
      $region53: #{closed_call.3} parent=51 // pred_check
        %p4024 = pneg %p215
      $region54: #{closed_call.3} parent=51 // pred_check_branch
        %4026 = sbr.rel (%p4024) target = $region56
      $region55: #{closed_call.3} parent=51 // pred_region
        _
      $region56: #{closed_call.3} parent=51 // pred_fallthru
        _
    $region52: #{closed_call.3} parent=5 // pred_fallthru
      _
    %p4027 = scmp.le.s32.totalorder 2, %s14
    // Predicated region
    $region57: #{closed_call.3} parent=5 // pred_check
      %p4028 = pneg %p4027
    $region58: #{closed_call.3} parent=5 // pred_check_branch
      %4030 = sbr.rel (%p4028) target = $region60
    $region59: #{closed_call.3} parent=5 // pred_region
      %s4031 = ssub.s32 %s14, 2
      // Predicated region
      $region61: #{closed_call.3} parent=59 // pred_check
        %p4032 = pneg %p221
      $region62: #{closed_call.3} parent=59 // pred_check_branch
        %4034 = sbr.rel (%p4032) target = $region64
      $region63: #{closed_call.3} parent=59 // pred_region
        %p4035 = scmp.lt.s32.totalorder %s20, 1
        %s4036 = scalar_select %p4035, %s20, 1
        %s4037 = smul.addr %s4036, 2
        %s4038 = smul.addr %s4037, 4
        %s4039 = scalar_lea.vmem %s8, %s4038
      $region64: #{closed_call.3} parent=59 // pred_fallthru
        _
    $region60: #{closed_call.3} parent=5 // pred_fallthru
      _
  $region6: #{closed_call.3} parent=0 // loop_footer
    %s18 = sadd.s32 1, %s14
  $region7: #{closed_call.3} parent=0 // loop_footer_branch
    %13 = sbr.rel target = $region3
  $region8: #{closed_call.3} parent=0 // loop_exit
    _

</llo_original>
